<compile_context>
chip_gen: v5e
topology: v5e:2x2
jax: 0.10.0
libtpu: 0.0.40
codegen_flags: <defaults>
</compile_context>

<pallas_src>
import functools

import jax
import jax.numpy as jnp
from jax.experimental import pallas as pl
from jax.experimental.pallas import tpu as pltpu


# MXU operand dtype (accumulation is always f32; softmax / LayerNorm math is
# always f32, so this is safe on v5e as well — only MXU operands are bf16).
MATMUL_DTYPE = jnp.bfloat16

_VMEM_LIMIT = 64 * 1024 * 1024  # explicit headroom (v5e default scoped = 16MiB)


def _mxu(a, b, dn=None):
    """MXU matmul with f32 accumulation; operands cast to MATMUL_DTYPE."""
    a = a.astype(MATMUL_DTYPE)
    b = b.astype(MATMUL_DTYPE)
    if dn is None:
        return jnp.dot(a, b, preferred_element_type=jnp.float32)
    return jax.lax.dot_general(a, b, dn, preferred_element_type=jnp.float32)


def _layernorm(x, w, b, eps):
    mean = jnp.mean(x, axis=-1, keepdims=True)
    xc = x - mean
    var = jnp.mean(xc * xc, axis=-1, keepdims=True)
    return xc * jax.lax.rsqrt(var + eps) * w + b


def _seq_tile(n, max_rows=128):
    """Query-row tile for cross-attention (multiple of 8, divides n)."""
    if n <= max_rows:
        return n
    for cand in (128, 64, 32, 16, 8):
        if n % cand == 0:
            return cand
    return n


def _row_blocks(m, tile=256, max_single=512):
    """(block_rows, padded_rows) for row-tiled 2-D kernels."""
    if m <= max_single:
        return m, m
    mp = ((m + tile - 1) // tile) * tile
    return tile, mp


# ----------------------------------------------------------------------------
# Fused attention block kernel:
#   (optional pos adds) -> full-width QKV proj -> per-head softmax attention
#   (deferred normalization) -> single out-proj matmul -> residual -> LayerNorm
# One grid step per (batch, query-tile); all heads inside one launch.
# ----------------------------------------------------------------------------
def _attn_block_kernel(*refs, nhead, scale, eps, self_attn, has_qpos, has_kpos):
    refs = list(refs)
    o_ref = refs[-1]
    ins = refs[:-1]

    idx = 0
    x_ref = ins[idx]; idx += 1
    qpos_ref = None
    if has_qpos:
        qpos_ref = ins[idx]; idx += 1
    if not self_attn:
        kv_ref = ins[idx]; idx += 1
        kpos_ref = None
        if has_kpos:
            kpos_ref = ins[idx]; idx += 1
    (wq_ref, bq_ref, wk_ref, bk_ref, wv_ref, bv_ref,
     wo_ref, bo_ref, lnw_ref, lnb_ref) = ins[idx:]

    x = x_ref[0].astype(jnp.float32)                        # (Tb, C) residual
    q_in = (x + qpos_ref[0].astype(jnp.float32)) if has_qpos else x
    if self_attn:
        k_in = q_in                                          # k = q = tgt+qpos
        v_in = x                                             # v = tgt
    else:
        kv = kv_ref[0].astype(jnp.float32)                   # (S, C)
        k_in = (kv + kpos_ref[0].astype(jnp.float32)) if has_kpos else kv
        v_in = kv

    # Full-width, lane-dense projections: one MXU pass each.
    q = _mxu(q_in, wq_ref[...]) + bq_ref[...]                # (Tb, C) f32
    k = _mxu(k_in, wk_ref[...]) + bk_ref[...]                # (S, C)  f32
    v = _mxu(v_in, wv_ref[...]) + bv_ref[...]                # (S, C)  f32

    Tb, C = x.shape
    dh = C // nhead
    v_mm = v.astype(MATMUL_DTYPE)

    head_outs = []
    for h in range(nhead):                                   # static head loop
        lo = h * dh
        qh = q[:, lo:lo + dh]
        kh = k[:, lo:lo + dh]
        # scores = qh @ kh^T (transposed-rhs contraction, no explicit transpose)
        s = _mxu(qh, kh, (((1,), (1,)), ((), ()))) * scale   # (Tb, S) f32
        m = jnp.max(s, axis=-1, keepdims=True)
        p = jnp.exp(s - m)                                   # unnormalized
        l = jnp.sum(p, axis=-1, keepdims=True)
        oh = _mxu(p, v_mm[:, lo:lo + dh])                    # (Tb, dh)
        # deferred softmax normalization (scales (Tb,dh), not (Tb,S))
        head_outs.append(oh * pl.reciprocal(l, approx=True))

    o_cat = jnp.concatenate(head_outs, axis=-1)              # (Tb, C)
    attn = _mxu(o_cat, wo_ref[...]) + bo_ref[...]            # single out-proj

    y = x + attn                                             # residual
    out = _layernorm(y, lnw_ref[...], lnb_ref[...], eps)     # post-norm
    o_ref[0] = out.astype(o_ref.dtype)


def attn_block_pallas(x, q_pos, kv, k_pos, ap, ln_w, ln_b, nhead, *,
                      self_attn, eps=1e-5):
    """Fused MHA + residual + LayerNorm. Inputs are batch-first (B, L, C)."""
    B, T, C = x.shape
    dh = C // nhead
    scale = 1.0 / float(dh) ** 0.5

    has_qpos = q_pos is not None
    has_kpos = (not self_attn) and (k_pos is not None)

    # Query-row tiling (fills both v7x TensorCores at small batch).
    bt = T if self_attn else _seq_tile(T)
    nt = T // bt

    # Lane-dense (C, C) weights, pre-cast to bf16 once (halves weight DMA).
    wdt = MATMUL_DTYPE
    wq = ap["wq"].astype(wdt)
    wk = ap["wk"].astype(wdt)
    wv = ap["wv"].astype(wdt)
    wo = ap["wo"].astype(wdt)
    bq = ap["bq"].reshape(1, C)
    bk = ap["bk"].reshape(1, C)
    bv = ap["bv"].reshape(1, C)
    bo = ap["bo"].reshape(1, C)
    lnw = ln_w.reshape(1, C)
    lnb = ln_b.reshape(1, C)

    q_spec = pl.BlockSpec((1, bt, C), lambda b, t: (b, t, 0))
    w_spec = pl.BlockSpec((C, C), lambda b, t: (0, 0))
    v_spec = pl.BlockSpec((1, C), lambda b, t: (0, 0))

    args = [x]
    specs = [q_spec]
    if has_qpos:
        args.append(q_pos)
        specs.append(q_spec)
    if not self_attn:
        S = kv.shape[1]
        kv_spec = pl.BlockSpec((1, S, C), lambda b, t: (b, 0, 0))
        args.append(kv)
        specs.append(kv_spec)
        if has_kpos:
            args.append(k_pos)
            specs.append(kv_spec)
    args += [wq, bq, wk, bk, wv, bv, wo, bo, lnw, lnb]
    specs += [w_spec, v_spec, w_spec, v_spec, w_spec, v_spec,
              w_spec, v_spec, v_spec, v_spec]

    kern = functools.partial(_attn_block_kernel, nhead=nhead, scale=scale,
                             eps=eps, self_attn=self_attn,
                             has_qpos=has_qpos, has_kpos=has_kpos)

    return pl.pallas_call(
        kern,
        out_shape=jax.ShapeDtypeStruct((B, T, C), x.dtype),
        grid=(B, nt),
        in_specs=specs,
        out_specs=pl.BlockSpec((1, bt, C), lambda b, t: (b, t, 0)),
        compiler_params=pltpu.CompilerParams(
            dimension_semantics=("parallel", "parallel"),
            vmem_limit_bytes=_VMEM_LIMIT),
    )(*args)


# ----------------------------------------------------------------------------
# Fused FFN block kernel: Linear1 + ReLU + Linear2 + residual + LayerNorm
# (+ optional fused final decoder LayerNorm). Hidden activation stays in VMEM.
# ----------------------------------------------------------------------------
def _ffn_block_kernel(x_ref, w1_ref, b1_ref, w2_ref, b2_ref, lnw_ref, lnb_ref,
                      *rest, eps, fuse_final_ln):
    if fuse_final_ln:
        ln2w_ref, ln2b_ref, o_ref = rest
    else:
        (o_ref,) = rest
    x = x_ref[...].astype(jnp.float32)                       # (bm, C)
    h = _mxu(x, w1_ref[...]) + b1_ref[...]                   # (bm, DFF)
    h = jnp.maximum(h, 0.0)                                  # fused ReLU
    y = _mxu(h, w2_ref[...]) + b2_ref[...]                   # (bm, C)
    z = _layernorm(x + y, lnw_ref[...], lnb_ref[...], eps)   # residual + norm3
    if fuse_final_ln:                                        # final decoder LN
        z = _layernorm(z, ln2w_ref[...], ln2b_ref[...], eps)
    o_ref[...] = z.astype(o_ref.dtype)


def ffn_block_pallas(x2d, w1, b1, w2, b2, ln_w, ln_b, *, final_ln=None,
                     eps=1e-5):
    M, C = x2d.shape
    DFF = w1.shape[1]
    bm, Mp = _row_blocks(M)
    x_in = x2d if Mp == M else jnp.pad(x2d, ((0, Mp - M), (0, 0)))

    fuse_final_ln = final_ln is not None
    wdt = MATMUL_DTYPE
    args = [x_in, w1.astype(wdt), b1.reshape(1, DFF), w2.astype(wdt),
            b2.reshape(1, C), ln_w.reshape(1, C), ln_b.reshape(1, C)]
    specs = [
        pl.BlockSpec((bm, C), lambda i: (i, 0)),
        pl.BlockSpec((C, DFF), lambda i: (0, 0)),
        pl.BlockSpec((1, DFF), lambda i: (0, 0)),
        pl.BlockSpec((DFF, C), lambda i: (0, 0)),
        pl.BlockSpec((1, C), lambda i: (0, 0)),
        pl.BlockSpec((1, C), lambda i: (0, 0)),
        pl.BlockSpec((1, C), lambda i: (0, 0)),
    ]
    if fuse_final_ln:
        fw, fb = final_ln
        args += [fw.reshape(1, C), fb.reshape(1, C)]
        specs += [pl.BlockSpec((1, C), lambda i: (0, 0)),
                  pl.BlockSpec((1, C), lambda i: (0, 0))]

    kern = functools.partial(_ffn_block_kernel, eps=eps,
                             fuse_final_ln=fuse_final_ln)
    out = pl.pallas_call(
        kern,
        out_shape=jax.ShapeDtypeStruct((Mp, C), x2d.dtype),
        grid=(Mp // bm,),
        in_specs=specs,
        out_specs=pl.BlockSpec((bm, C), lambda i: (i, 0)),
        compiler_params=pltpu.CompilerParams(
            dimension_semantics=("parallel",),
            vmem_limit_bytes=_VMEM_LIMIT),
    )(*args)
    return out if Mp == M else out[:M]


# ----------------------------------------------------------------------------
# Standalone LayerNorm (return_intermediate path / norm-only fallback).
# ----------------------------------------------------------------------------
def _layernorm_kernel(x_ref, w_ref, b_ref, o_ref, *, eps):
    x = x_ref[...].astype(jnp.float32)
    o_ref[...] = _layernorm(x, w_ref[...], b_ref[...], eps).astype(o_ref.dtype)


def layernorm_pallas(x2d, weight, bias, eps=1e-5):
    M, C = x2d.shape
    bm, Mp = _row_blocks(M)
    x_in = x2d if Mp == M else jnp.pad(x2d, ((0, Mp - M), (0, 0)))
    kern = functools.partial(_layernorm_kernel, eps=eps)
    out = pl.pallas_call(
        kern,
        out_shape=jax.ShapeDtypeStruct((Mp, C), x2d.dtype),
        grid=(Mp // bm,),
        in_specs=[
            pl.BlockSpec((bm, C), lambda i: (i, 0)),
            pl.BlockSpec((1, C), lambda i: (0, 0)),
            pl.BlockSpec((1, C), lambda i: (0, 0)),
        ],
        out_specs=pl.BlockSpec((bm, C), lambda i: (i, 0)),
        compiler_params=pltpu.CompilerParams(
            dimension_semantics=("parallel",),
            vmem_limit_bytes=_VMEM_LIMIT),
    )(x_in, weight.reshape(1, C), bias.reshape(1, C))
    return out if Mp == M else out[:M]


# ----------------------------------------------------------------------------
# Decoder layer + decoder stack (3 fused pallas_calls per layer)
# ----------------------------------------------------------------------------
def decoder_layer_forward(tgt_b, mem_b, qpos_b, pos_b, lp, nhead,
                          final_ln=None):
    B, T, C = tgt_b.shape
    # self-attention (q=k=tgt+query_pos, v=tgt) + residual + norm1
    tgt_b = attn_block_pallas(tgt_b, qpos_b, None, None,
                              lp["self_attn"], lp["norm1_w"], lp["norm1_b"],
                              nhead, self_attn=True)
    # cross-attention (q=tgt+query_pos, k=mem+pos, v=mem) + residual + norm2
    tgt_b = attn_block_pallas(tgt_b, qpos_b, mem_b, pos_b,
                              lp["cross_attn"], lp["norm2_w"], lp["norm2_b"],
                              nhead, self_attn=False)
    # FFN + residual + norm3 (+ optional fused final decoder norm)
    y = ffn_block_pallas(tgt_b.reshape(B * T, C),
                         lp["ffn_w1"], lp["ffn_b1"],
                         lp["ffn_w2"], lp["ffn_b2"],
                         lp["norm3_w"], lp["norm3_b"],
                         final_ln=final_ln)
    return y.reshape(B, T, C)


def transformer_decoder_forward(tgt, memory, params, pos=None, query_pos=None,
                                nhead=4, return_intermediate=False):
    T, B, C = tgt.shape

    # one-time layout change to batch-first for the whole stack
    tgt_b = jnp.transpose(tgt, (1, 0, 2))                    # (B, T, C)
    mem_b = jnp.transpose(memory, (1, 0, 2))                 # (B, S, C)
    qpos_b = None if query_pos is None else jnp.transpose(query_pos, (1, 0, 2))
    pos_b = None if pos is None else jnp.transpose(pos, (1, 0, 2))

    norm_w, norm_b = params["norm_w"], params["norm_b"]
    has_norm = norm_w is not None
    n_layers = len(params["layers"])

    output = tgt_b
    intermediate = []
    final_fused = False
    for li, lp in enumerate(params["layers"]):
        fuse = has_norm and (li == n_layers - 1) and not return_intermediate
        output = decoder_layer_forward(
            output, mem_b, qpos_b, pos_b, lp, nhead,
            final_ln=((norm_w, norm_b) if fuse else None))
        final_fused = final_fused or fuse
        if return_intermediate:
            inter = output
            if has_norm:
                inter = layernorm_pallas(output.reshape(B * T, C),
                                         norm_w, norm_b).reshape(B, T, C)
            intermediate.append(inter)

    if has_norm and not final_fused:
        output = layernorm_pallas(output.reshape(B * T, C),
                                  norm_w, norm_b).reshape(B, T, C)
        if return_intermediate:
            intermediate.pop()
            intermediate.append(output)

    if return_intermediate:
        return jnp.stack([jnp.transpose(o, (1, 0, 2)) for o in intermediate])
    return jnp.transpose(output, (1, 0, 2))                  # back to (T, B, C)


# ----------------------------------------------------------------------------
# Deterministic parameter construction
# ----------------------------------------------------------------------------
def init_params(key, num_layers, d_model, dff):
    def w(k, shape, scale=0.05):
        return jax.random.normal(k, shape, dtype=jnp.float32) * scale

    def attn_params(k):
        ks = jax.random.split(k, 8)
        return {
            "wq": w(ks[0], (d_model, d_model)), "bq": w(ks[1], (d_model,)),
            "wk": w(ks[2], (d_model, d_model)), "bk": w(ks[3], (d_model,)),
            "wv": w(ks[4], (d_model, d_model)), "bv": w(ks[5], (d_model,)),
            "wo": w(ks[6], (d_model, d_model)), "bo": w(ks[7], (d_model,)),
        }

    keys = jax.random.split(key, num_layers + 1)
    layers = []
    for l in range(num_layers):
        ks = jax.random.split(keys[l], 6)
        layers.append({
            "self_attn": attn_params(ks[0]),
            "cross_attn": attn_params(ks[1]),
            "ffn_w1": w(ks[2], (d_model, dff)), "ffn_b1": w(ks[3], (dff,)),
            "ffn_w2": w(ks[4], (dff, d_model)), "ffn_b2": w(ks[5], (d_model,)),
            "norm1_w": jnp.ones((d_model,), jnp.float32),
            "norm1_b": jnp.zeros((d_model,), jnp.float32),
            "norm2_w": jnp.ones((d_model,), jnp.float32),
            "norm2_b": jnp.zeros((d_model,), jnp.float32),
            "norm3_w": jnp.ones((d_model,), jnp.float32),
            "norm3_b": jnp.zeros((d_model,), jnp.float32),
        })
    return {
        "layers": layers,
        "norm_w": jnp.ones((d_model,), jnp.float32),
        "norm_b": jnp.zeros((d_model,), jnp.float32),
    }


# ----------------------------------------------------------------------------
# Main
# ----------------------------------------------------------------------------
if __name__ == "__main__":
    T, S, B, C = 8, 16, 2, 64          # target len, memory len, batch, d_model
    NHEAD, DFF, NUM_LAYERS = 4, 128, 2

    key = jax.random.PRNGKey(0)
    k_tgt, k_mem, k_pos, k_qpos, k_par = jax.random.split(key, 5)

    tgt = jax.random.normal(k_tgt, (T, B, C), dtype=jnp.float32)
    memory = jax.random.normal(k_mem, (S, B, C), dtype=jnp.float32)
    pos = jax.random.normal(k_pos, (S, B, C), dtype=jnp.float32)
    query_pos = jax.random.normal(k_qpos, (T, B, C), dtype=jnp.float32)

    params = init_params(k_par, NUM_LAYERS, C, DFF)

    fwd = jax.jit(functools.partial(transformer_decoder_forward,
                                    nhead=NHEAD, return_intermediate=False))
    out = fwd(tgt, memory, params, pos, query_pos)
    out = jax.block_until_ready(out)
    assert out.shape == (T, B, C)
    assert bool(jnp.all(jnp.isfinite(out)))
    print("KERNEL_OK")
</pallas_src>

<mosaic_0001>
module attributes {stable_mosaic.version = 11 : i64} {
  func.func @_attn_block_kernel(%arg0: i32, %arg1: i32, %arg2: memref<1x8x64xf32, #tpu.memory_space<vmem>>, %arg3: memref<1x8x64xf32, #tpu.memory_space<vmem>>, %arg4: memref<1x16x64xf32, #tpu.memory_space<vmem>>, %arg5: memref<1x16x64xf32, #tpu.memory_space<vmem>>, %arg6: memref<64x64xbf16, #tpu.memory_space<vmem>>, %arg7: memref<1x64xf32, #tpu.memory_space<vmem>>, %arg8: memref<64x64xbf16, #tpu.memory_space<vmem>>, %arg9: memref<1x64xf32, #tpu.memory_space<vmem>>, %arg10: memref<64x64xbf16, #tpu.memory_space<vmem>>, %arg11: memref<1x64xf32, #tpu.memory_space<vmem>>, %arg12: memref<64x64xbf16, #tpu.memory_space<vmem>>, %arg13: memref<1x64xf32, #tpu.memory_space<vmem>>, %arg14: memref<1x64xf32, #tpu.memory_space<vmem>>, %arg15: memref<1x64xf32, #tpu.memory_space<vmem>>, %arg16: memref<1x8x64xf32, #tpu.memory_space<vmem>>) attributes {dimension_semantics = [#tpu.dimension_semantics<parallel>, #tpu.dimension_semantics<parallel>], iteration_bounds = array<i64: 2, 1>, scalar_prefetch = 0 : i64, scratch_operands = 0 : i64, tpu.core_type = #tpu.core_type<tc>, window_params = [{transform_indices = @transform_0, window_bounds = array<i64: 1, 8, 64>}, {transform_indices = @transform_1, window_bounds = array<i64: 1, 8, 64>}, {transform_indices = @transform_2, window_bounds = array<i64: 1, 16, 64>}, {transform_indices = @transform_3, window_bounds = array<i64: 1, 16, 64>}, {pipeline_mode = #tpu.pipeline_mode<synchronous>, transform_indices = @transform_4, window_bounds = array<i64: 64, 64>}, {pipeline_mode = #tpu.pipeline_mode<synchronous>, transform_indices = @transform_5, window_bounds = array<i64: 1, 64>}, {pipeline_mode = #tpu.pipeline_mode<synchronous>, transform_indices = @transform_6, window_bounds = array<i64: 64, 64>}, {pipeline_mode = #tpu.pipeline_mode<synchronous>, transform_indices = @transform_7, window_bounds = array<i64: 1, 64>}, {pipeline_mode = #tpu.pipeline_mode<synchronous>, transform_indices = @transform_8, window_bounds = array<i64: 64, 64>}, {pipeline_mode = #tpu.pipeline_mode<synchronous>, transform_indices = @transform_9, window_bounds = array<i64: 1, 64>}, {pipeline_mode = #tpu.pipeline_mode<synchronous>, transform_indices = @transform_10, window_bounds = array<i64: 64, 64>}, {pipeline_mode = #tpu.pipeline_mode<synchronous>, transform_indices = @transform_11, window_bounds = array<i64: 1, 64>}, {pipeline_mode = #tpu.pipeline_mode<synchronous>, transform_indices = @transform_12, window_bounds = array<i64: 1, 64>}, {pipeline_mode = #tpu.pipeline_mode<synchronous>, transform_indices = @transform_13, window_bounds = array<i64: 1, 64>}, {transform_indices = @transform_14, window_bounds = array<i64: 1, 8, 64>}]} {
    %c0 = arith.constant 0 : index
    %c0_0 = arith.constant 0 : index
    %c0_1 = arith.constant 0 : index
    %0 = vector.load %arg2[%c0, %c0_0, %c0_1] : memref<1x8x64xf32, #tpu.memory_space<vmem>>, vector<1x8x64xf32>
    %1 = vector.shape_cast %0 : vector<1x8x64xf32> to vector<8x64xf32>
    %c0_2 = arith.constant 0 : index
    %c0_3 = arith.constant 0 : index
    %c0_4 = arith.constant 0 : index
    %2 = vector.load %arg3[%c0_2, %c0_3, %c0_4] : memref<1x8x64xf32, #tpu.memory_space<vmem>>, vector<1x8x64xf32>
    %3 = vector.shape_cast %2 : vector<1x8x64xf32> to vector<8x64xf32>
    %4 = arith.addf %1, %3 : vector<8x64xf32>
    %c0_5 = arith.constant 0 : index
    %c0_6 = arith.constant 0 : index
    %c0_7 = arith.constant 0 : index
    %5 = vector.load %arg4[%c0_5, %c0_6, %c0_7] : memref<1x16x64xf32, #tpu.memory_space<vmem>>, vector<1x16x64xf32>
    %6 = vector.shape_cast %5 : vector<1x16x64xf32> to vector<16x64xf32>
    %c0_8 = arith.constant 0 : index
    %c0_9 = arith.constant 0 : index
    %c0_10 = arith.constant 0 : index
    %7 = vector.load %arg5[%c0_8, %c0_9, %c0_10] : memref<1x16x64xf32, #tpu.memory_space<vmem>>, vector<1x16x64xf32>
    %8 = vector.shape_cast %7 : vector<1x16x64xf32> to vector<16x64xf32>
    %9 = arith.addf %6, %8 : vector<16x64xf32>
    %c0_11 = arith.constant 0 : index
    %c0_12 = arith.constant 0 : index
    %10 = vector.load %arg6[%c0_11, %c0_12] : memref<64x64xbf16, #tpu.memory_space<vmem>>, vector<64x64xbf16>
    %11 = arith.truncf %4 : vector<8x64xf32> to vector<8x64xbf16>
    %cst = arith.constant dense<0.000000e+00> : vector<8x64xf32>
    %12 = tpu.matmul %11, %10, %cst {dimension_numbers = #tpu.dot_dimension_numbers<[1], [0], [0], [1], [0, 0, 1, 1], [], []>} : vector<8x64xbf16>, vector<64x64xbf16>, vector<8x64xf32> -> vector<8x64xf32>
    %c0_13 = arith.constant 0 : index
    %c0_14 = arith.constant 0 : index
    %13 = vector.load %arg7[%c0_13, %c0_14] : memref<1x64xf32, #tpu.memory_space<vmem>>, vector<1x64xf32>
    %14 = vector.broadcast %13 : vector<1x64xf32> to vector<8x64xf32>
    %15 = arith.addf %12, %14 : vector<8x64xf32>
    %c0_15 = arith.constant 0 : index
    %c0_16 = arith.constant 0 : index
    %16 = vector.load %arg8[%c0_15, %c0_16] : memref<64x64xbf16, #tpu.memory_space<vmem>>, vector<64x64xbf16>
    %17 = arith.truncf %9 : vector<16x64xf32> to vector<16x64xbf16>
    %cst_17 = arith.constant dense<0.000000e+00> : vector<16x64xf32>
    %18 = tpu.matmul %17, %16, %cst_17 {dimension_numbers = #tpu.dot_dimension_numbers<[1], [0], [0], [1], [0, 0, 1, 1], [], []>} : vector<16x64xbf16>, vector<64x64xbf16>, vector<16x64xf32> -> vector<16x64xf32>
    %c0_18 = arith.constant 0 : index
    %c0_19 = arith.constant 0 : index
    %19 = vector.load %arg9[%c0_18, %c0_19] : memref<1x64xf32, #tpu.memory_space<vmem>>, vector<1x64xf32>
    %20 = vector.broadcast %19 : vector<1x64xf32> to vector<16x64xf32>
    %21 = arith.addf %18, %20 : vector<16x64xf32>
    %c0_20 = arith.constant 0 : index
    %c0_21 = arith.constant 0 : index
    %22 = vector.load %arg10[%c0_20, %c0_21] : memref<64x64xbf16, #tpu.memory_space<vmem>>, vector<64x64xbf16>
    %23 = arith.truncf %6 : vector<16x64xf32> to vector<16x64xbf16>
    %cst_22 = arith.constant dense<0.000000e+00> : vector<16x64xf32>
    %24 = tpu.matmul %23, %22, %cst_22 {dimension_numbers = #tpu.dot_dimension_numbers<[1], [0], [0], [1], [0, 0, 1, 1], [], []>} : vector<16x64xbf16>, vector<64x64xbf16>, vector<16x64xf32> -> vector<16x64xf32>
    %c0_23 = arith.constant 0 : index
    %c0_24 = arith.constant 0 : index
    %25 = vector.load %arg11[%c0_23, %c0_24] : memref<1x64xf32, #tpu.memory_space<vmem>>, vector<1x64xf32>
    %26 = vector.broadcast %25 : vector<1x64xf32> to vector<16x64xf32>
    %27 = arith.addf %24, %26 : vector<16x64xf32>
    %28 = arith.truncf %27 : vector<16x64xf32> to vector<16x64xbf16>
    %29 = vector.extract_strided_slice %15 {offsets = [0, 0], sizes = [8, 16], strides = [1, 1]} : vector<8x64xf32> to vector<8x16xf32>
    %30 = vector.extract_strided_slice %21 {offsets = [0, 0], sizes = [16, 16], strides = [1, 1]} : vector<16x64xf32> to vector<16x16xf32>
    %31 = arith.truncf %29 : vector<8x16xf32> to vector<8x16xbf16>
    %32 = arith.truncf %30 : vector<16x16xf32> to vector<16x16xbf16>
    %cst_25 = arith.constant dense<0.000000e+00> : vector<8x16xf32>
    %33 = tpu.matmul %31, %32, %cst_25 {dimension_numbers = #tpu.dot_dimension_numbers<[1], [1], [0], [0], [0, 0, 1, 0], [], []>} : vector<8x16xbf16>, vector<16x16xbf16>, vector<8x16xf32> -> vector<8x16xf32>
    %cst_26 = arith.constant 2.500000e-01 : f32
    %34 = vector.broadcast %cst_26 : f32 to vector<8x16xf32>
    %35 = arith.mulf %33, %34 : vector<8x16xf32>
    %cst_27 = arith.constant dense<0xFF800000> : vector<8xf32>
    %36 = vector.multi_reduction <maximumf>, %35, %cst_27 [1] : vector<8x16xf32> to vector<8xf32>
    %37 = vector.shape_cast %36 : vector<8xf32> to vector<8x1xf32>
    %38 = vector.broadcast %37 : vector<8x1xf32> to vector<8x16xf32>
    %39 = arith.subf %35, %38 : vector<8x16xf32>
    %40 = math.exp %39 : vector<8x16xf32>
    %cst_28 = arith.constant dense<0.000000e+00> : vector<8xf32>
    %41 = vector.multi_reduction <add>, %40, %cst_28 [1] : vector<8x16xf32> to vector<8xf32>
    %42 = vector.shape_cast %41 : vector<8xf32> to vector<8x1xf32>
    %43 = vector.extract_strided_slice %28 {offsets = [0, 0], sizes = [16, 16], strides = [1, 1]} : vector<16x64xbf16> to vector<16x16xbf16>
    %44 = arith.truncf %40 : vector<8x16xf32> to vector<8x16xbf16>
    %cst_29 = arith.constant dense<0.000000e+00> : vector<8x16xf32>
    %45 = tpu.matmul %44, %43, %cst_29 {dimension_numbers = #tpu.dot_dimension_numbers<[1], [0], [0], [1], [0, 0, 1, 1], [], []>} : vector<8x16xbf16>, vector<16x16xbf16>, vector<8x16xf32> -> vector<8x16xf32>
    %46 = tpu.reciprocal %42 {approx = true} : vector<8x1xf32> -> vector<8x1xf32>
    %47 = vector.broadcast %46 : vector<8x1xf32> to vector<8x16xf32>
    %48 = arith.mulf %45, %47 : vector<8x16xf32>
    %49 = vector.extract_strided_slice %15 {offsets = [0, 16], sizes = [8, 16], strides = [1, 1]} : vector<8x64xf32> to vector<8x16xf32>
    %50 = vector.extract_strided_slice %21 {offsets = [0, 16], sizes = [16, 16], strides = [1, 1]} : vector<16x64xf32> to vector<16x16xf32>
    %51 = arith.truncf %49 : vector<8x16xf32> to vector<8x16xbf16>
    %52 = arith.truncf %50 : vector<16x16xf32> to vector<16x16xbf16>
    %cst_30 = arith.constant dense<0.000000e+00> : vector<8x16xf32>
    %53 = tpu.matmul %51, %52, %cst_30 {dimension_numbers = #tpu.dot_dimension_numbers<[1], [1], [0], [0], [0, 0, 1, 0], [], []>} : vector<8x16xbf16>, vector<16x16xbf16>, vector<8x16xf32> -> vector<8x16xf32>
    %cst_31 = arith.constant 2.500000e-01 : f32
    %54 = vector.broadcast %cst_31 : f32 to vector<8x16xf32>
    %55 = arith.mulf %53, %54 : vector<8x16xf32>
    %cst_32 = arith.constant dense<0xFF800000> : vector<8xf32>
    %56 = vector.multi_reduction <maximumf>, %55, %cst_32 [1] : vector<8x16xf32> to vector<8xf32>
    %57 = vector.shape_cast %56 : vector<8xf32> to vector<8x1xf32>
    %58 = vector.broadcast %57 : vector<8x1xf32> to vector<8x16xf32>
    %59 = arith.subf %55, %58 : vector<8x16xf32>
    %60 = math.exp %59 : vector<8x16xf32>
    %cst_33 = arith.constant dense<0.000000e+00> : vector<8xf32>
    %61 = vector.multi_reduction <add>, %60, %cst_33 [1] : vector<8x16xf32> to vector<8xf32>
    %62 = vector.shape_cast %61 : vector<8xf32> to vector<8x1xf32>
    %63 = vector.extract_strided_slice %28 {offsets = [0, 16], sizes = [16, 16], strides = [1, 1]} : vector<16x64xbf16> to vector<16x16xbf16>
    %64 = arith.truncf %60 : vector<8x16xf32> to vector<8x16xbf16>
    %cst_34 = arith.constant dense<0.000000e+00> : vector<8x16xf32>
    %65 = tpu.matmul %64, %63, %cst_34 {dimension_numbers = #tpu.dot_dimension_numbers<[1], [0], [0], [1], [0, 0, 1, 1], [], []>} : vector<8x16xbf16>, vector<16x16xbf16>, vector<8x16xf32> -> vector<8x16xf32>
    %66 = tpu.reciprocal %62 {approx = true} : vector<8x1xf32> -> vector<8x1xf32>
    %67 = vector.broadcast %66 : vector<8x1xf32> to vector<8x16xf32>
    %68 = arith.mulf %65, %67 : vector<8x16xf32>
    %69 = vector.extract_strided_slice %15 {offsets = [0, 32], sizes = [8, 16], strides = [1, 1]} : vector<8x64xf32> to vector<8x16xf32>
    %70 = vector.extract_strided_slice %21 {offsets = [0, 32], sizes = [16, 16], strides = [1, 1]} : vector<16x64xf32> to vector<16x16xf32>
    %71 = arith.truncf %69 : vector<8x16xf32> to vector<8x16xbf16>
    %72 = arith.truncf %70 : vector<16x16xf32> to vector<16x16xbf16>
    %cst_35 = arith.constant dense<0.000000e+00> : vector<8x16xf32>
    %73 = tpu.matmul %71, %72, %cst_35 {dimension_numbers = #tpu.dot_dimension_numbers<[1], [1], [0], [0], [0, 0, 1, 0], [], []>} : vector<8x16xbf16>, vector<16x16xbf16>, vector<8x16xf32> -> vector<8x16xf32>
    %cst_36 = arith.constant 2.500000e-01 : f32
    %74 = vector.broadcast %cst_36 : f32 to vector<8x16xf32>
    %75 = arith.mulf %73, %74 : vector<8x16xf32>
    %cst_37 = arith.constant dense<0xFF800000> : vector<8xf32>
    %76 = vector.multi_reduction <maximumf>, %75, %cst_37 [1] : vector<8x16xf32> to vector<8xf32>
    %77 = vector.shape_cast %76 : vector<8xf32> to vector<8x1xf32>
    %78 = vector.broadcast %77 : vector<8x1xf32> to vector<8x16xf32>
    %79 = arith.subf %75, %78 : vector<8x16xf32>
    %80 = math.exp %79 : vector<8x16xf32>
    %cst_38 = arith.constant dense<0.000000e+00> : vector<8xf32>
    %81 = vector.multi_reduction <add>, %80, %cst_38 [1] : vector<8x16xf32> to vector<8xf32>
    %82 = vector.shape_cast %81 : vector<8xf32> to vector<8x1xf32>
    %83 = vector.extract_strided_slice %28 {offsets = [0, 32], sizes = [16, 16], strides = [1, 1]} : vector<16x64xbf16> to vector<16x16xbf16>
    %84 = arith.truncf %80 : vector<8x16xf32> to vector<8x16xbf16>
    %cst_39 = arith.constant dense<0.000000e+00> : vector<8x16xf32>
    %85 = tpu.matmul %84, %83, %cst_39 {dimension_numbers = #tpu.dot_dimension_numbers<[1], [0], [0], [1], [0, 0, 1, 1], [], []>} : vector<8x16xbf16>, vector<16x16xbf16>, vector<8x16xf32> -> vector<8x16xf32>
    %86 = tpu.reciprocal %82 {approx = true} : vector<8x1xf32> -> vector<8x1xf32>
    %87 = vector.broadcast %86 : vector<8x1xf32> to vector<8x16xf32>
    %88 = arith.mulf %85, %87 : vector<8x16xf32>
    %89 = vector.extract_strided_slice %15 {offsets = [0, 48], sizes = [8, 16], strides = [1, 1]} : vector<8x64xf32> to vector<8x16xf32>
    %90 = vector.extract_strided_slice %21 {offsets = [0, 48], sizes = [16, 16], strides = [1, 1]} : vector<16x64xf32> to vector<16x16xf32>
    %91 = arith.truncf %89 : vector<8x16xf32> to vector<8x16xbf16>
    %92 = arith.truncf %90 : vector<16x16xf32> to vector<16x16xbf16>
    %cst_40 = arith.constant dense<0.000000e+00> : vector<8x16xf32>
    %93 = tpu.matmul %91, %92, %cst_40 {dimension_numbers = #tpu.dot_dimension_numbers<[1], [1], [0], [0], [0, 0, 1, 0], [], []>} : vector<8x16xbf16>, vector<16x16xbf16>, vector<8x16xf32> -> vector<8x16xf32>
    %cst_41 = arith.constant 2.500000e-01 : f32
    %94 = vector.broadcast %cst_41 : f32 to vector<8x16xf32>
    %95 = arith.mulf %93, %94 : vector<8x16xf32>
    %cst_42 = arith.constant dense<0xFF800000> : vector<8xf32>
    %96 = vector.multi_reduction <maximumf>, %95, %cst_42 [1] : vector<8x16xf32> to vector<8xf32>
    %97 = vector.shape_cast %96 : vector<8xf32> to vector<8x1xf32>
    %98 = vector.broadcast %97 : vector<8x1xf32> to vector<8x16xf32>
    %99 = arith.subf %95, %98 : vector<8x16xf32>
    %100 = math.exp %99 : vector<8x16xf32>
    %cst_43 = arith.constant dense<0.000000e+00> : vector<8xf32>
    %101 = vector.multi_reduction <add>, %100, %cst_43 [1] : vector<8x16xf32> to vector<8xf32>
    %102 = vector.shape_cast %101 : vector<8xf32> to vector<8x1xf32>
    %103 = vector.extract_strided_slice %28 {offsets = [0, 48], sizes = [16, 16], strides = [1, 1]} : vector<16x64xbf16> to vector<16x16xbf16>
    %104 = arith.truncf %100 : vector<8x16xf32> to vector<8x16xbf16>
    %cst_44 = arith.constant dense<0.000000e+00> : vector<8x16xf32>
    %105 = tpu.matmul %104, %103, %cst_44 {dimension_numbers = #tpu.dot_dimension_numbers<[1], [0], [0], [1], [0, 0, 1, 1], [], []>} : vector<8x16xbf16>, vector<16x16xbf16>, vector<8x16xf32> -> vector<8x16xf32>
    %106 = tpu.reciprocal %102 {approx = true} : vector<8x1xf32> -> vector<8x1xf32>
    %107 = vector.broadcast %106 : vector<8x1xf32> to vector<8x16xf32>
    %108 = arith.mulf %105, %107 : vector<8x16xf32>
    %109 = tpu.concatenate %48, %68, %88, %108 in 1 : vector<8x16xf32>, vector<8x16xf32>, vector<8x16xf32>, vector<8x16xf32> -> vector<8x64xf32>
    %c0_45 = arith.constant 0 : index
    %c0_46 = arith.constant 0 : index
    %110 = vector.load %arg12[%c0_45, %c0_46] : memref<64x64xbf16, #tpu.memory_space<vmem>>, vector<64x64xbf16>
    %111 = arith.truncf %109 : vector<8x64xf32> to vector<8x64xbf16>
    %cst_47 = arith.constant dense<0.000000e+00> : vector<8x64xf32>
    %112 = tpu.matmul %111, %110, %cst_47 {dimension_numbers = #tpu.dot_dimension_numbers<[1], [0], [0], [1], [0, 0, 1, 1], [], []>} : vector<8x64xbf16>, vector<64x64xbf16>, vector<8x64xf32> -> vector<8x64xf32>
    %c0_48 = arith.constant 0 : index
    %c0_49 = arith.constant 0 : index
    %113 = vector.load %arg13[%c0_48, %c0_49] : memref<1x64xf32, #tpu.memory_space<vmem>>, vector<1x64xf32>
    %114 = vector.broadcast %113 : vector<1x64xf32> to vector<8x64xf32>
    %115 = arith.addf %112, %114 : vector<8x64xf32>
    %116 = arith.addf %1, %115 : vector<8x64xf32>
    %c0_50 = arith.constant 0 : index
    %c0_51 = arith.constant 0 : index
    %117 = vector.load %arg14[%c0_50, %c0_51] : memref<1x64xf32, #tpu.memory_space<vmem>>, vector<1x64xf32>
    %c0_52 = arith.constant 0 : index
    %c0_53 = arith.constant 0 : index
    %118 = vector.load %arg15[%c0_52, %c0_53] : memref<1x64xf32, #tpu.memory_space<vmem>>, vector<1x64xf32>
    %cst_54 = arith.constant dense<0.000000e+00> : vector<8xf32>
    %119 = vector.multi_reduction <add>, %116, %cst_54 [1] : vector<8x64xf32> to vector<8xf32>
    %120 = vector.shape_cast %119 : vector<8xf32> to vector<8x1xf32>
    %cst_55 = arith.constant 6.400000e+01 : f32
    %121 = vector.broadcast %cst_55 : f32 to vector<8x1xf32>
    %122 = arith.divf %120, %121 : vector<8x1xf32>
    %123 = vector.broadcast %122 : vector<8x1xf32> to vector<8x64xf32>
    %124 = arith.subf %116, %123 : vector<8x64xf32>
    %125 = arith.mulf %124, %124 : vector<8x64xf32>
    %cst_56 = arith.constant dense<0.000000e+00> : vector<8xf32>
    %126 = vector.multi_reduction <add>, %125, %cst_56 [1] : vector<8x64xf32> to vector<8xf32>
    %127 = vector.shape_cast %126 : vector<8xf32> to vector<8x1xf32>
    %cst_57 = arith.constant 6.400000e+01 : f32
    %128 = vector.broadcast %cst_57 : f32 to vector<8x1xf32>
    %129 = arith.divf %127, %128 : vector<8x1xf32>
    %cst_58 = arith.constant 9.99999974E-6 : f32
    %130 = vector.broadcast %cst_58 : f32 to vector<8x1xf32>
    %131 = arith.addf %129, %130 : vector<8x1xf32>
    %132 = math.rsqrt %131 : vector<8x1xf32>
    %133 = vector.broadcast %132 : vector<8x1xf32> to vector<8x64xf32>
    %134 = arith.mulf %124, %133 : vector<8x64xf32>
    %135 = vector.broadcast %117 : vector<1x64xf32> to vector<8x64xf32>
    %136 = arith.mulf %134, %135 : vector<8x64xf32>
    %137 = vector.broadcast %118 : vector<1x64xf32> to vector<8x64xf32>
    %138 = arith.addf %136, %137 : vector<8x64xf32>
    %c0_59 = arith.constant 0 : index
    %c0_60 = arith.constant 0 : index
    %c0_61 = arith.constant 0 : index
    %139 = vector.load %arg16[%c0_59, %c0_60, %c0_61] : memref<1x8x64xf32, #tpu.memory_space<vmem>>, vector<1x8x64xf32>
    %140 = vector.shape_cast %139 : vector<1x8x64xf32> to vector<8x64xf32>
    %141 = vector.shape_cast %138 : vector<8x64xf32> to vector<1x8x64xf32>
    tpu.vector_store %arg16[%c0_59, %c0_60, %c0_61], %141 {strides = array<i32>} : memref<1x8x64xf32, #tpu.memory_space<vmem>>, vector<1x8x64xf32>,
    return
  }
  func.func @transform_0(%arg0: i32, %arg1: i32) -> (i32, i32, i32) {
    %c0_i32 = arith.constant 0 : i32
    %c0_i32_0 = arith.constant 0 : i32
    return %arg0, %arg1, %c0_i32 : i32, i32, i32
  }
  func.func @transform_1(%arg0: i32, %arg1: i32) -> (i32, i32, i32) {
    %c0_i32 = arith.constant 0 : i32
    %c0_i32_0 = arith.constant 0 : i32
    return %arg0, %arg1, %c0_i32 : i32, i32, i32
  }
  func.func @transform_2(%arg0: i32, %arg1: i32) -> (i32, i32, i32) {
    %c0_i32 = arith.constant 0 : i32
    %c0_i32_0 = arith.constant 0 : i32
    %c0_i32_1 = arith.constant 0 : i32
    return %arg0, %c0_i32, %c0_i32_0 : i32, i32, i32
  }
  func.func @transform_3(%arg0: i32, %arg1: i32) -> (i32, i32, i32) {
    %c0_i32 = arith.constant 0 : i32
    %c0_i32_0 = arith.constant 0 : i32
    %c0_i32_1 = arith.constant 0 : i32
    return %arg0, %c0_i32, %c0_i32_0 : i32, i32, i32
  }
  func.func @transform_4(%arg0: i32, %arg1: i32) -> (i32, i32) {
    %c0_i32 = arith.constant 0 : i32
    %c0_i32_0 = arith.constant 0 : i32
    %c0_i32_1 = arith.constant 0 : i32
    return %c0_i32, %c0_i32_0 : i32, i32
  }
  func.func @transform_5(%arg0: i32, %arg1: i32) -> (i32, i32) {
    %c0_i32 = arith.constant 0 : i32
    %c0_i32_0 = arith.constant 0 : i32
    %c0_i32_1 = arith.constant 0 : i32
    return %c0_i32, %c0_i32_0 : i32, i32
  }
  func.func @transform_6(%arg0: i32, %arg1: i32) -> (i32, i32) {
    %c0_i32 = arith.constant 0 : i32
    %c0_i32_0 = arith.constant 0 : i32
    %c0_i32_1 = arith.constant 0 : i32
    return %c0_i32, %c0_i32_0 : i32, i32
  }
  func.func @transform_7(%arg0: i32, %arg1: i32) -> (i32, i32) {
    %c0_i32 = arith.constant 0 : i32
    %c0_i32_0 = arith.constant 0 : i32
    %c0_i32_1 = arith.constant 0 : i32
    return %c0_i32, %c0_i32_0 : i32, i32
  }
  func.func @transform_8(%arg0: i32, %arg1: i32) -> (i32, i32) {
    %c0_i32 = arith.constant 0 : i32
    %c0_i32_0 = arith.constant 0 : i32
    %c0_i32_1 = arith.constant 0 : i32
    return %c0_i32, %c0_i32_0 : i32, i32
  }
  func.func @transform_9(%arg0: i32, %arg1: i32) -> (i32, i32) {
    %c0_i32 = arith.constant 0 : i32
    %c0_i32_0 = arith.constant 0 : i32
    %c0_i32_1 = arith.constant 0 : i32
    return %c0_i32, %c0_i32_0 : i32, i32
  }
  func.func @transform_10(%arg0: i32, %arg1: i32) -> (i32, i32) {
    %c0_i32 = arith.constant 0 : i32
    %c0_i32_0 = arith.constant 0 : i32
    %c0_i32_1 = arith.constant 0 : i32
    return %c0_i32, %c0_i32_0 : i32, i32
  }
  func.func @transform_11(%arg0: i32, %arg1: i32) -> (i32, i32) {
    %c0_i32 = arith.constant 0 : i32
    %c0_i32_0 = arith.constant 0 : i32
    %c0_i32_1 = arith.constant 0 : i32
    return %c0_i32, %c0_i32_0 : i32, i32
  }
  func.func @transform_12(%arg0: i32, %arg1: i32) -> (i32, i32) {
    %c0_i32 = arith.constant 0 : i32
    %c0_i32_0 = arith.constant 0 : i32
    %c0_i32_1 = arith.constant 0 : i32
    return %c0_i32, %c0_i32_0 : i32, i32
  }
  func.func @transform_13(%arg0: i32, %arg1: i32) -> (i32, i32) {
    %c0_i32 = arith.constant 0 : i32
    %c0_i32_0 = arith.constant 0 : i32
    %c0_i32_1 = arith.constant 0 : i32
    return %c0_i32, %c0_i32_0 : i32, i32
  }
  func.func @transform_14(%arg0: i32, %arg1: i32) -> (i32, i32, i32) {
    %c0_i32 = arith.constant 0 : i32
    %c0_i32_0 = arith.constant 0 : i32
    return %arg0, %arg1, %c0_i32 : i32, i32, i32
  }
}

module attributes {stable_mosaic.version = 11 : i64} {
  func.func @_attn_block_kernel(%arg0: i32, %arg1: i32, %arg2: memref<1x8x64xf32, #tpu.memory_space<vmem>>, %arg3: memref<1x8x64xf32, #tpu.memory_space<vmem>>, %arg4: memref<64x64xbf16, #tpu.memory_space<vmem>>, %arg5: memref<1x64xf32, #tpu.memory_space<vmem>>, %arg6: memref<64x64xbf16, #tpu.memory_space<vmem>>, %arg7: memref<1x64xf32, #tpu.memory_space<vmem>>, %arg8: memref<64x64xbf16, #tpu.memory_space<vmem>>, %arg9: memref<1x64xf32, #tpu.memory_space<vmem>>, %arg10: memref<64x64xbf16, #tpu.memory_space<vmem>>, %arg11: memref<1x64xf32, #tpu.memory_space<vmem>>, %arg12: memref<1x64xf32, #tpu.memory_space<vmem>>, %arg13: memref<1x64xf32, #tpu.memory_space<vmem>>, %arg14: memref<1x8x64xf32, #tpu.memory_space<vmem>>) attributes {dimension_semantics = [#tpu.dimension_semantics<parallel>, #tpu.dimension_semantics<parallel>], iteration_bounds = array<i64: 2, 1>, scalar_prefetch = 0 : i64, scratch_operands = 0 : i64, tpu.core_type = #tpu.core_type<tc>, window_params = [{transform_indices = @transform_0, window_bounds = array<i64: 1, 8, 64>}, {transform_indices = @transform_1, window_bounds = array<i64: 1, 8, 64>}, {pipeline_mode = #tpu.pipeline_mode<synchronous>, transform_indices = @transform_2, window_bounds = array<i64: 64, 64>}, {pipeline_mode = #tpu.pipeline_mode<synchronous>, transform_indices = @transform_3, window_bounds = array<i64: 1, 64>}, {pipeline_mode = #tpu.pipeline_mode<synchronous>, transform_indices = @transform_4, window_bounds = array<i64: 64, 64>}, {pipeline_mode = #tpu.pipeline_mode<synchronous>, transform_indices = @transform_5, window_bounds = array<i64: 1, 64>}, {pipeline_mode = #tpu.pipeline_mode<synchronous>, transform_indices = @transform_6, window_bounds = array<i64: 64, 64>}, {pipeline_mode = #tpu.pipeline_mode<synchronous>, transform_indices = @transform_7, window_bounds = array<i64: 1, 64>}, {pipeline_mode = #tpu.pipeline_mode<synchronous>, transform_indices = @transform_8, window_bounds = array<i64: 64, 64>}, {pipeline_mode = #tpu.pipeline_mode<synchronous>, transform_indices = @transform_9, window_bounds = array<i64: 1, 64>}, {pipeline_mode = #tpu.pipeline_mode<synchronous>, transform_indices = @transform_10, window_bounds = array<i64: 1, 64>}, {pipeline_mode = #tpu.pipeline_mode<synchronous>, transform_indices = @transform_11, window_bounds = array<i64: 1, 64>}, {transform_indices = @transform_12, window_bounds = array<i64: 1, 8, 64>}]} {
    %c0 = arith.constant 0 : index
    %c0_0 = arith.constant 0 : index
    %c0_1 = arith.constant 0 : index
    %0 = vector.load %arg2[%c0, %c0_0, %c0_1] : memref<1x8x64xf32, #tpu.memory_space<vmem>>, vector<1x8x64xf32>
    %1 = vector.shape_cast %0 : vector<1x8x64xf32> to vector<8x64xf32>
    %c0_2 = arith.constant 0 : index
    %c0_3 = arith.constant 0 : index
    %c0_4 = arith.constant 0 : index
    %2 = vector.load %arg3[%c0_2, %c0_3, %c0_4] : memref<1x8x64xf32, #tpu.memory_space<vmem>>, vector<1x8x64xf32>
    %3 = vector.shape_cast %2 : vector<1x8x64xf32> to vector<8x64xf32>
    %4 = arith.addf %1, %3 : vector<8x64xf32>
    %c0_5 = arith.constant 0 : index
    %c0_6 = arith.constant 0 : index
    %5 = vector.load %arg4[%c0_5, %c0_6] : memref<64x64xbf16, #tpu.memory_space<vmem>>, vector<64x64xbf16>
    %6 = arith.truncf %4 : vector<8x64xf32> to vector<8x64xbf16>
    %cst = arith.constant dense<0.000000e+00> : vector<8x64xf32>
    %7 = tpu.matmul %6, %5, %cst {dimension_numbers = #tpu.dot_dimension_numbers<[1], [0], [0], [1], [0, 0, 1, 1], [], []>} : vector<8x64xbf16>, vector<64x64xbf16>, vector<8x64xf32> -> vector<8x64xf32>
    %c0_7 = arith.constant 0 : index
    %c0_8 = arith.constant 0 : index
    %8 = vector.load %arg5[%c0_7, %c0_8] : memref<1x64xf32, #tpu.memory_space<vmem>>, vector<1x64xf32>
    %9 = vector.broadcast %8 : vector<1x64xf32> to vector<8x64xf32>
    %10 = arith.addf %7, %9 : vector<8x64xf32>
    %c0_9 = arith.constant 0 : index
    %c0_10 = arith.constant 0 : index
    %11 = vector.load %arg6[%c0_9, %c0_10] : memref<64x64xbf16, #tpu.memory_space<vmem>>, vector<64x64xbf16>
    %12 = arith.truncf %4 : vector<8x64xf32> to vector<8x64xbf16>
    %cst_11 = arith.constant dense<0.000000e+00> : vector<8x64xf32>
    %13 = tpu.matmul %12, %11, %cst_11 {dimension_numbers = #tpu.dot_dimension_numbers<[1], [0], [0], [1], [0, 0, 1, 1], [], []>} : vector<8x64xbf16>, vector<64x64xbf16>, vector<8x64xf32> -> vector<8x64xf32>
    %c0_12 = arith.constant 0 : index
    %c0_13 = arith.constant 0 : index
    %14 = vector.load %arg7[%c0_12, %c0_13] : memref<1x64xf32, #tpu.memory_space<vmem>>, vector<1x64xf32>
    %15 = vector.broadcast %14 : vector<1x64xf32> to vector<8x64xf32>
    %16 = arith.addf %13, %15 : vector<8x64xf32>
    %c0_14 = arith.constant 0 : index
    %c0_15 = arith.constant 0 : index
    %17 = vector.load %arg8[%c0_14, %c0_15] : memref<64x64xbf16, #tpu.memory_space<vmem>>, vector<64x64xbf16>
    %18 = arith.truncf %1 : vector<8x64xf32> to vector<8x64xbf16>
    %cst_16 = arith.constant dense<0.000000e+00> : vector<8x64xf32>
    %19 = tpu.matmul %18, %17, %cst_16 {dimension_numbers = #tpu.dot_dimension_numbers<[1], [0], [0], [1], [0, 0, 1, 1], [], []>} : vector<8x64xbf16>, vector<64x64xbf16>, vector<8x64xf32> -> vector<8x64xf32>
    %c0_17 = arith.constant 0 : index
    %c0_18 = arith.constant 0 : index
    %20 = vector.load %arg9[%c0_17, %c0_18] : memref<1x64xf32, #tpu.memory_space<vmem>>, vector<1x64xf32>
    %21 = vector.broadcast %20 : vector<1x64xf32> to vector<8x64xf32>
    %22 = arith.addf %19, %21 : vector<8x64xf32>
    %23 = arith.truncf %22 : vector<8x64xf32> to vector<8x64xbf16>
    %24 = vector.extract_strided_slice %10 {offsets = [0, 0], sizes = [8, 16], strides = [1, 1]} : vector<8x64xf32> to vector<8x16xf32>
    %25 = vector.extract_strided_slice %16 {offsets = [0, 0], sizes = [8, 16], strides = [1, 1]} : vector<8x64xf32> to vector<8x16xf32>
    %26 = arith.truncf %24 : vector<8x16xf32> to vector<8x16xbf16>
    %27 = arith.truncf %25 : vector<8x16xf32> to vector<8x16xbf16>
    %cst_19 = arith.constant dense<0.000000e+00> : vector<8x8xf32>
    %28 = tpu.matmul %26, %27, %cst_19 {dimension_numbers = #tpu.dot_dimension_numbers<[1], [1], [0], [0], [0, 0, 1, 0], [], []>} : vector<8x16xbf16>, vector<8x16xbf16>, vector<8x8xf32> -> vector<8x8xf32>
    %cst_20 = arith.constant 2.500000e-01 : f32
    %29 = vector.broadcast %cst_20 : f32 to vector<8x8xf32>
    %30 = arith.mulf %28, %29 : vector<8x8xf32>
    %cst_21 = arith.constant dense<0xFF800000> : vector<8xf32>
    %31 = vector.multi_reduction <maximumf>, %30, %cst_21 [1] : vector<8x8xf32> to vector<8xf32>
    %32 = vector.shape_cast %31 : vector<8xf32> to vector<8x1xf32>
    %33 = vector.broadcast %32 : vector<8x1xf32> to vector<8x8xf32>
    %34 = arith.subf %30, %33 : vector<8x8xf32>
    %35 = math.exp %34 : vector<8x8xf32>
    %cst_22 = arith.constant dense<0.000000e+00> : vector<8xf32>
    %36 = vector.multi_reduction <add>, %35, %cst_22 [1] : vector<8x8xf32> to vector<8xf32>
    %37 = vector.shape_cast %36 : vector<8xf32> to vector<8x1xf32>
    %38 = vector.extract_strided_slice %23 {offsets = [0, 0], sizes = [8, 16], strides = [1, 1]} : vector<8x64xbf16> to vector<8x16xbf16>
    %39 = arith.truncf %35 : vector<8x8xf32> to vector<8x8xbf16>
    %cst_23 = arith.constant dense<0.000000e+00> : vector<8x16xf32>
    %40 = tpu.matmul %39, %38, %cst_23 {dimension_numbers = #tpu.dot_dimension_numbers<[1], [0], [0], [1], [0, 0, 1, 1], [], []>} : vector<8x8xbf16>, vector<8x16xbf16>, vector<8x16xf32> -> vector<8x16xf32>
    %41 = tpu.reciprocal %37 {approx = true} : vector<8x1xf32> -> vector<8x1xf32>
    %42 = vector.broadcast %41 : vector<8x1xf32> to vector<8x16xf32>
    %43 = arith.mulf %40, %42 : vector<8x16xf32>
    %44 = vector.extract_strided_slice %10 {offsets = [0, 16], sizes = [8, 16], strides = [1, 1]} : vector<8x64xf32> to vector<8x16xf32>
    %45 = vector.extract_strided_slice %16 {offsets = [0, 16], sizes = [8, 16], strides = [1, 1]} : vector<8x64xf32> to vector<8x16xf32>
    %46 = arith.truncf %44 : vector<8x16xf32> to vector<8x16xbf16>
    %47 = arith.truncf %45 : vector<8x16xf32> to vector<8x16xbf16>
    %cst_24 = arith.constant dense<0.000000e+00> : vector<8x8xf32>
    %48 = tpu.matmul %46, %47, %cst_24 {dimension_numbers = #tpu.dot_dimension_numbers<[1], [1], [0], [0], [0, 0, 1, 0], [], []>} : vector<8x16xbf16>, vector<8x16xbf16>, vector<8x8xf32> -> vector<8x8xf32>
    %cst_25 = arith.constant 2.500000e-01 : f32
    %49 = vector.broadcast %cst_25 : f32 to vector<8x8xf32>
    %50 = arith.mulf %48, %49 : vector<8x8xf32>
    %cst_26 = arith.constant dense<0xFF800000> : vector<8xf32>
    %51 = vector.multi_reduction <maximumf>, %50, %cst_26 [1] : vector<8x8xf32> to vector<8xf32>
    %52 = vector.shape_cast %51 : vector<8xf32> to vector<8x1xf32>
    %53 = vector.broadcast %52 : vector<8x1xf32> to vector<8x8xf32>
    %54 = arith.subf %50, %53 : vector<8x8xf32>
    %55 = math.exp %54 : vector<8x8xf32>
    %cst_27 = arith.constant dense<0.000000e+00> : vector<8xf32>
    %56 = vector.multi_reduction <add>, %55, %cst_27 [1] : vector<8x8xf32> to vector<8xf32>
    %57 = vector.shape_cast %56 : vector<8xf32> to vector<8x1xf32>
    %58 = vector.extract_strided_slice %23 {offsets = [0, 16], sizes = [8, 16], strides = [1, 1]} : vector<8x64xbf16> to vector<8x16xbf16>
    %59 = arith.truncf %55 : vector<8x8xf32> to vector<8x8xbf16>
    %cst_28 = arith.constant dense<0.000000e+00> : vector<8x16xf32>
    %60 = tpu.matmul %59, %58, %cst_28 {dimension_numbers = #tpu.dot_dimension_numbers<[1], [0], [0], [1], [0, 0, 1, 1], [], []>} : vector<8x8xbf16>, vector<8x16xbf16>, vector<8x16xf32> -> vector<8x16xf32>
    %61 = tpu.reciprocal %57 {approx = true} : vector<8x1xf32> -> vector<8x1xf32>
    %62 = vector.broadcast %61 : vector<8x1xf32> to vector<8x16xf32>
    %63 = arith.mulf %60, %62 : vector<8x16xf32>
    %64 = vector.extract_strided_slice %10 {offsets = [0, 32], sizes = [8, 16], strides = [1, 1]} : vector<8x64xf32> to vector<8x16xf32>
    %65 = vector.extract_strided_slice %16 {offsets = [0, 32], sizes = [8, 16], strides = [1, 1]} : vector<8x64xf32> to vector<8x16xf32>
    %66 = arith.truncf %64 : vector<8x16xf32> to vector<8x16xbf16>
    %67 = arith.truncf %65 : vector<8x16xf32> to vector<8x16xbf16>
    %cst_29 = arith.constant dense<0.000000e+00> : vector<8x8xf32>
    %68 = tpu.matmul %66, %67, %cst_29 {dimension_numbers = #tpu.dot_dimension_numbers<[1], [1], [0], [0], [0, 0, 1, 0], [], []>} : vector<8x16xbf16>, vector<8x16xbf16>, vector<8x8xf32> -> vector<8x8xf32>
    %cst_30 = arith.constant 2.500000e-01 : f32
    %69 = vector.broadcast %cst_30 : f32 to vector<8x8xf32>
    %70 = arith.mulf %68, %69 : vector<8x8xf32>
    %cst_31 = arith.constant dense<0xFF800000> : vector<8xf32>
    %71 = vector.multi_reduction <maximumf>, %70, %cst_31 [1] : vector<8x8xf32> to vector<8xf32>
    %72 = vector.shape_cast %71 : vector<8xf32> to vector<8x1xf32>
    %73 = vector.broadcast %72 : vector<8x1xf32> to vector<8x8xf32>
    %74 = arith.subf %70, %73 : vector<8x8xf32>
    %75 = math.exp %74 : vector<8x8xf32>
    %cst_32 = arith.constant dense<0.000000e+00> : vector<8xf32>
    %76 = vector.multi_reduction <add>, %75, %cst_32 [1] : vector<8x8xf32> to vector<8xf32>
    %77 = vector.shape_cast %76 : vector<8xf32> to vector<8x1xf32>
    %78 = vector.extract_strided_slice %23 {offsets = [0, 32], sizes = [8, 16], strides = [1, 1]} : vector<8x64xbf16> to vector<8x16xbf16>
    %79 = arith.truncf %75 : vector<8x8xf32> to vector<8x8xbf16>
    %cst_33 = arith.constant dense<0.000000e+00> : vector<8x16xf32>
    %80 = tpu.matmul %79, %78, %cst_33 {dimension_numbers = #tpu.dot_dimension_numbers<[1], [0], [0], [1], [0, 0, 1, 1], [], []>} : vector<8x8xbf16>, vector<8x16xbf16>, vector<8x16xf32> -> vector<8x16xf32>
    %81 = tpu.reciprocal %77 {approx = true} : vector<8x1xf32> -> vector<8x1xf32>
    %82 = vector.broadcast %81 : vector<8x1xf32> to vector<8x16xf32>
    %83 = arith.mulf %80, %82 : vector<8x16xf32>
    %84 = vector.extract_strided_slice %10 {offsets = [0, 48], sizes = [8, 16], strides = [1, 1]} : vector<8x64xf32> to vector<8x16xf32>
    %85 = vector.extract_strided_slice %16 {offsets = [0, 48], sizes = [8, 16], strides = [1, 1]} : vector<8x64xf32> to vector<8x16xf32>
    %86 = arith.truncf %84 : vector<8x16xf32> to vector<8x16xbf16>
    %87 = arith.truncf %85 : vector<8x16xf32> to vector<8x16xbf16>
    %cst_34 = arith.constant dense<0.000000e+00> : vector<8x8xf32>
    %88 = tpu.matmul %86, %87, %cst_34 {dimension_numbers = #tpu.dot_dimension_numbers<[1], [1], [0], [0], [0, 0, 1, 0], [], []>} : vector<8x16xbf16>, vector<8x16xbf16>, vector<8x8xf32> -> vector<8x8xf32>
    %cst_35 = arith.constant 2.500000e-01 : f32
    %89 = vector.broadcast %cst_35 : f32 to vector<8x8xf32>
    %90 = arith.mulf %88, %89 : vector<8x8xf32>
    %cst_36 = arith.constant dense<0xFF800000> : vector<8xf32>
    %91 = vector.multi_reduction <maximumf>, %90, %cst_36 [1] : vector<8x8xf32> to vector<8xf32>
    %92 = vector.shape_cast %91 : vector<8xf32> to vector<8x1xf32>
    %93 = vector.broadcast %92 : vector<8x1xf32> to vector<8x8xf32>
    %94 = arith.subf %90, %93 : vector<8x8xf32>
    %95 = math.exp %94 : vector<8x8xf32>
    %cst_37 = arith.constant dense<0.000000e+00> : vector<8xf32>
    %96 = vector.multi_reduction <add>, %95, %cst_37 [1] : vector<8x8xf32> to vector<8xf32>
    %97 = vector.shape_cast %96 : vector<8xf32> to vector<8x1xf32>
    %98 = vector.extract_strided_slice %23 {offsets = [0, 48], sizes = [8, 16], strides = [1, 1]} : vector<8x64xbf16> to vector<8x16xbf16>
    %99 = arith.truncf %95 : vector<8x8xf32> to vector<8x8xbf16>
    %cst_38 = arith.constant dense<0.000000e+00> : vector<8x16xf32>
    %100 = tpu.matmul %99, %98, %cst_38 {dimension_numbers = #tpu.dot_dimension_numbers<[1], [0], [0], [1], [0, 0, 1, 1], [], []>} : vector<8x8xbf16>, vector<8x16xbf16>, vector<8x16xf32> -> vector<8x16xf32>
    %101 = tpu.reciprocal %97 {approx = true} : vector<8x1xf32> -> vector<8x1xf32>
    %102 = vector.broadcast %101 : vector<8x1xf32> to vector<8x16xf32>
    %103 = arith.mulf %100, %102 : vector<8x16xf32>
    %104 = tpu.concatenate %43, %63, %83, %103 in 1 : vector<8x16xf32>, vector<8x16xf32>, vector<8x16xf32>, vector<8x16xf32> -> vector<8x64xf32>
    %c0_39 = arith.constant 0 : index
    %c0_40 = arith.constant 0 : index
    %105 = vector.load %arg10[%c0_39, %c0_40] : memref<64x64xbf16, #tpu.memory_space<vmem>>, vector<64x64xbf16>
    %106 = arith.truncf %104 : vector<8x64xf32> to vector<8x64xbf16>
    %cst_41 = arith.constant dense<0.000000e+00> : vector<8x64xf32>
    %107 = tpu.matmul %106, %105, %cst_41 {dimension_numbers = #tpu.dot_dimension_numbers<[1], [0], [0], [1], [0, 0, 1, 1], [], []>} : vector<8x64xbf16>, vector<64x64xbf16>, vector<8x64xf32> -> vector<8x64xf32>
    %c0_42 = arith.constant 0 : index
    %c0_43 = arith.constant 0 : index
    %108 = vector.load %arg11[%c0_42, %c0_43] : memref<1x64xf32, #tpu.memory_space<vmem>>, vector<1x64xf32>
    %109 = vector.broadcast %108 : vector<1x64xf32> to vector<8x64xf32>
    %110 = arith.addf %107, %109 : vector<8x64xf32>
    %111 = arith.addf %1, %110 : vector<8x64xf32>
    %c0_44 = arith.constant 0 : index
    %c0_45 = arith.constant 0 : index
    %112 = vector.load %arg12[%c0_44, %c0_45] : memref<1x64xf32, #tpu.memory_space<vmem>>, vector<1x64xf32>
    %c0_46 = arith.constant 0 : index
    %c0_47 = arith.constant 0 : index
    %113 = vector.load %arg13[%c0_46, %c0_47] : memref<1x64xf32, #tpu.memory_space<vmem>>, vector<1x64xf32>
    %cst_48 = arith.constant dense<0.000000e+00> : vector<8xf32>
    %114 = vector.multi_reduction <add>, %111, %cst_48 [1] : vector<8x64xf32> to vector<8xf32>
    %115 = vector.shape_cast %114 : vector<8xf32> to vector<8x1xf32>
    %cst_49 = arith.constant 6.400000e+01 : f32
    %116 = vector.broadcast %cst_49 : f32 to vector<8x1xf32>
    %117 = arith.divf %115, %116 : vector<8x1xf32>
    %118 = vector.broadcast %117 : vector<8x1xf32> to vector<8x64xf32>
    %119 = arith.subf %111, %118 : vector<8x64xf32>
    %120 = arith.mulf %119, %119 : vector<8x64xf32>
    %cst_50 = arith.constant dense<0.000000e+00> : vector<8xf32>
    %121 = vector.multi_reduction <add>, %120, %cst_50 [1] : vector<8x64xf32> to vector<8xf32>
    %122 = vector.shape_cast %121 : vector<8xf32> to vector<8x1xf32>
    %cst_51 = arith.constant 6.400000e+01 : f32
    %123 = vector.broadcast %cst_51 : f32 to vector<8x1xf32>
    %124 = arith.divf %122, %123 : vector<8x1xf32>
    %cst_52 = arith.constant 9.99999974E-6 : f32
    %125 = vector.broadcast %cst_52 : f32 to vector<8x1xf32>
    %126 = arith.addf %124, %125 : vector<8x1xf32>
    %127 = math.rsqrt %126 : vector<8x1xf32>
    %128 = vector.broadcast %127 : vector<8x1xf32> to vector<8x64xf32>
    %129 = arith.mulf %119, %128 : vector<8x64xf32>
    %130 = vector.broadcast %112 : vector<1x64xf32> to vector<8x64xf32>
    %131 = arith.mulf %129, %130 : vector<8x64xf32>
    %132 = vector.broadcast %113 : vector<1x64xf32> to vector<8x64xf32>
    %133 = arith.addf %131, %132 : vector<8x64xf32>
    %c0_53 = arith.constant 0 : index
    %c0_54 = arith.constant 0 : index
    %c0_55 = arith.constant 0 : index
    %134 = vector.load %arg14[%c0_53, %c0_54, %c0_55] : memref<1x8x64xf32, #tpu.memory_space<vmem>>, vector<1x8x64xf32>
    %135 = vector.shape_cast %134 : vector<1x8x64xf32> to vector<8x64xf32>
    %136 = vector.shape_cast %133 : vector<8x64xf32> to vector<1x8x64xf32>
    tpu.vector_store %arg14[%c0_53, %c0_54, %c0_55], %136 {strides = array<i32>} : memref<1x8x64xf32, #tpu.memory_space<vmem>>, vector<1x8x64xf32>,
    return
  }
  func.func @transform_0(%arg0: i32, %arg1: i32) -> (i32, i32, i32) {
    %c0_i32 = arith.constant 0 : i32
    %c0_i32_0 = arith.constant 0 : i32
    return %arg0, %arg1, %c0_i32 : i32, i32, i32
  }
  func.func @transform_1(%arg0: i32, %arg1: i32) -> (i32, i32, i32) {
    %c0_i32 = arith.constant 0 : i32
    %c0_i32_0 = arith.constant 0 : i32
    return %arg0, %arg1, %c0_i32 : i32, i32, i32
  }
  func.func @transform_2(%arg0: i32, %arg1: i32) -> (i32, i32) {
    %c0_i32 = arith.constant 0 : i32
    %c0_i32_0 = arith.constant 0 : i32
    %c0_i32_1 = arith.constant 0 : i32
    return %c0_i32, %c0_i32_0 : i32, i32
  }
  func.func @transform_3(%arg0: i32, %arg1: i32) -> (i32, i32) {
    %c0_i32 = arith.constant 0 : i32
    %c0_i32_0 = arith.constant 0 : i32
    %c0_i32_1 = arith.constant 0 : i32
    return %c0_i32, %c0_i32_0 : i32, i32
  }
  func.func @transform_4(%arg0: i32, %arg1: i32) -> (i32, i32) {
    %c0_i32 = arith.constant 0 : i32
    %c0_i32_0 = arith.constant 0 : i32
    %c0_i32_1 = arith.constant 0 : i32
    return %c0_i32, %c0_i32_0 : i32, i32
  }
  func.func @transform_5(%arg0: i32, %arg1: i32) -> (i32, i32) {
    %c0_i32 = arith.constant 0 : i32
    %c0_i32_0 = arith.constant 0 : i32
    %c0_i32_1 = arith.constant 0 : i32
    return %c0_i32, %c0_i32_0 : i32, i32
  }
  func.func @transform_6(%arg0: i32, %arg1: i32) -> (i32, i32) {
    %c0_i32 = arith.constant 0 : i32
    %c0_i32_0 = arith.constant 0 : i32
    %c0_i32_1 = arith.constant 0 : i32
    return %c0_i32, %c0_i32_0 : i32, i32
  }
  func.func @transform_7(%arg0: i32, %arg1: i32) -> (i32, i32) {
    %c0_i32 = arith.constant 0 : i32
    %c0_i32_0 = arith.constant 0 : i32
    %c0_i32_1 = arith.constant 0 : i32
    return %c0_i32, %c0_i32_0 : i32, i32
  }
  func.func @transform_8(%arg0: i32, %arg1: i32) -> (i32, i32) {
    %c0_i32 = arith.constant 0 : i32
    %c0_i32_0 = arith.constant 0 : i32
    %c0_i32_1 = arith.constant 0 : i32
    return %c0_i32, %c0_i32_0 : i32, i32
  }
  func.func @transform_9(%arg0: i32, %arg1: i32) -> (i32, i32) {
    %c0_i32 = arith.constant 0 : i32
    %c0_i32_0 = arith.constant 0 : i32
    %c0_i32_1 = arith.constant 0 : i32
    return %c0_i32, %c0_i32_0 : i32, i32
  }
  func.func @transform_10(%arg0: i32, %arg1: i32) -> (i32, i32) {
    %c0_i32 = arith.constant 0 : i32
    %c0_i32_0 = arith.constant 0 : i32
    %c0_i32_1 = arith.constant 0 : i32
    return %c0_i32, %c0_i32_0 : i32, i32
  }
  func.func @transform_11(%arg0: i32, %arg1: i32) -> (i32, i32) {
    %c0_i32 = arith.constant 0 : i32
    %c0_i32_0 = arith.constant 0 : i32
    %c0_i32_1 = arith.constant 0 : i32
    return %c0_i32, %c0_i32_0 : i32, i32
  }
  func.func @transform_12(%arg0: i32, %arg1: i32) -> (i32, i32, i32) {
    %c0_i32 = arith.constant 0 : i32
    %c0_i32_0 = arith.constant 0 : i32
    return %arg0, %arg1, %c0_i32 : i32, i32, i32
  }
}

module attributes {stable_mosaic.version = 11 : i64} {
  func.func @_ffn_block_kernel(%arg0: i32, %arg1: memref<16x64xf32, #tpu.memory_space<vmem>>, %arg2: memref<64x128xbf16, #tpu.memory_space<vmem>>, %arg3: memref<1x128xf32, #tpu.memory_space<vmem>>, %arg4: memref<128x64xbf16, #tpu.memory_space<vmem>>, %arg5: memref<1x64xf32, #tpu.memory_space<vmem>>, %arg6: memref<1x64xf32, #tpu.memory_space<vmem>>, %arg7: memref<1x64xf32, #tpu.memory_space<vmem>>, %arg8: memref<16x64xf32, #tpu.memory_space<vmem>>) attributes {dimension_semantics = [#tpu.dimension_semantics<parallel>], iteration_bounds = array<i64: 1>, scalar_prefetch = 0 : i64, scratch_operands = 0 : i64, tpu.core_type = #tpu.core_type<tc>, window_params = [{transform_indices = @transform_0, window_bounds = array<i64: 16, 64>}, {pipeline_mode = #tpu.pipeline_mode<synchronous>, transform_indices = @transform_1, window_bounds = array<i64: 64, 128>}, {pipeline_mode = #tpu.pipeline_mode<synchronous>, transform_indices = @transform_2, window_bounds = array<i64: 1, 128>}, {pipeline_mode = #tpu.pipeline_mode<synchronous>, transform_indices = @transform_3, window_bounds = array<i64: 128, 64>}, {pipeline_mode = #tpu.pipeline_mode<synchronous>, transform_indices = @transform_4, window_bounds = array<i64: 1, 64>}, {pipeline_mode = #tpu.pipeline_mode<synchronous>, transform_indices = @transform_5, window_bounds = array<i64: 1, 64>}, {pipeline_mode = #tpu.pipeline_mode<synchronous>, transform_indices = @transform_6, window_bounds = array<i64: 1, 64>}, {transform_indices = @transform_7, window_bounds = array<i64: 16, 64>}]} {
    %c0 = arith.constant 0 : index
    %c0_0 = arith.constant 0 : index
    %0 = vector.load %arg1[%c0, %c0_0] : memref<16x64xf32, #tpu.memory_space<vmem>>, vector<16x64xf32>
    %c0_1 = arith.constant 0 : index
    %c0_2 = arith.constant 0 : index
    %1 = vector.load %arg2[%c0_1, %c0_2] : memref<64x128xbf16, #tpu.memory_space<vmem>>, vector<64x128xbf16>
    %2 = arith.truncf %0 : vector<16x64xf32> to vector<16x64xbf16>
    %cst = arith.constant dense<0.000000e+00> : vector<16x128xf32>
    %3 = tpu.matmul %2, %1, %cst {dimension_numbers = #tpu.dot_dimension_numbers<[1], [0], [0], [1], [0, 0, 1, 1], [], []>} : vector<16x64xbf16>, vector<64x128xbf16>, vector<16x128xf32> -> vector<16x128xf32>
    %c0_3 = arith.constant 0 : index
    %c0_4 = arith.constant 0 : index
    %4 = vector.load %arg3[%c0_3, %c0_4] : memref<1x128xf32, #tpu.memory_space<vmem>>, vector<1x128xf32>
    %5 = vector.broadcast %4 : vector<1x128xf32> to vector<16x128xf32>
    %6 = arith.addf %3, %5 : vector<16x128xf32>
    %cst_5 = arith.constant 0.000000e+00 : f32
    %7 = vector.broadcast %cst_5 : f32 to vector<16x128xf32>
    %8 = arith.maximumf %6, %7 : vector<16x128xf32>
    %c0_6 = arith.constant 0 : index
    %c0_7 = arith.constant 0 : index
    %9 = vector.load %arg4[%c0_6, %c0_7] : memref<128x64xbf16, #tpu.memory_space<vmem>>, vector<128x64xbf16>
    %10 = arith.truncf %8 : vector<16x128xf32> to vector<16x128xbf16>
    %cst_8 = arith.constant dense<0.000000e+00> : vector<16x64xf32>
    %11 = tpu.matmul %10, %9, %cst_8 {dimension_numbers = #tpu.dot_dimension_numbers<[1], [0], [0], [1], [0, 0, 1, 1], [], []>} : vector<16x128xbf16>, vector<128x64xbf16>, vector<16x64xf32> -> vector<16x64xf32>
    %c0_9 = arith.constant 0 : index
    %c0_10 = arith.constant 0 : index
    %12 = vector.load %arg5[%c0_9, %c0_10] : memref<1x64xf32, #tpu.memory_space<vmem>>, vector<1x64xf32>
    %13 = vector.broadcast %12 : vector<1x64xf32> to vector<16x64xf32>
    %14 = arith.addf %11, %13 : vector<16x64xf32>
    %15 = arith.addf %0, %14 : vector<16x64xf32>
    %c0_11 = arith.constant 0 : index
    %c0_12 = arith.constant 0 : index
    %16 = vector.load %arg6[%c0_11, %c0_12] : memref<1x64xf32, #tpu.memory_space<vmem>>, vector<1x64xf32>
    %c0_13 = arith.constant 0 : index
    %c0_14 = arith.constant 0 : index
    %17 = vector.load %arg7[%c0_13, %c0_14] : memref<1x64xf32, #tpu.memory_space<vmem>>, vector<1x64xf32>
    %cst_15 = arith.constant dense<0.000000e+00> : vector<16xf32>
    %18 = vector.multi_reduction <add>, %15, %cst_15 [1] : vector<16x64xf32> to vector<16xf32>
    %19 = vector.shape_cast %18 : vector<16xf32> to vector<16x1xf32>
    %cst_16 = arith.constant 6.400000e+01 : f32
    %20 = vector.broadcast %cst_16 : f32 to vector<16x1xf32>
    %21 = arith.divf %19, %20 : vector<16x1xf32>
    %22 = vector.broadcast %21 : vector<16x1xf32> to vector<16x64xf32>
    %23 = arith.subf %15, %22 : vector<16x64xf32>
    %24 = arith.mulf %23, %23 : vector<16x64xf32>
    %cst_17 = arith.constant dense<0.000000e+00> : vector<16xf32>
    %25 = vector.multi_reduction <add>, %24, %cst_17 [1] : vector<16x64xf32> to vector<16xf32>
    %26 = vector.shape_cast %25 : vector<16xf32> to vector<16x1xf32>
    %cst_18 = arith.constant 6.400000e+01 : f32
    %27 = vector.broadcast %cst_18 : f32 to vector<16x1xf32>
    %28 = arith.divf %26, %27 : vector<16x1xf32>
    %cst_19 = arith.constant 9.99999974E-6 : f32
    %29 = vector.broadcast %cst_19 : f32 to vector<16x1xf32>
    %30 = arith.addf %28, %29 : vector<16x1xf32>
    %31 = math.rsqrt %30 : vector<16x1xf32>
    %32 = vector.broadcast %31 : vector<16x1xf32> to vector<16x64xf32>
    %33 = arith.mulf %23, %32 : vector<16x64xf32>
    %34 = vector.broadcast %16 : vector<1x64xf32> to vector<16x64xf32>
    %35 = arith.mulf %33, %34 : vector<16x64xf32>
    %36 = vector.broadcast %17 : vector<1x64xf32> to vector<16x64xf32>
    %37 = arith.addf %35, %36 : vector<16x64xf32>
    %c0_20 = arith.constant 0 : index
    %c0_21 = arith.constant 0 : index
    %38 = vector.load %arg8[%c0_20, %c0_21] : memref<16x64xf32, #tpu.memory_space<vmem>>, vector<16x64xf32>
    tpu.vector_store %arg8[%c0_20, %c0_21], %37 {strides = array<i32>} : memref<16x64xf32, #tpu.memory_space<vmem>>, vector<16x64xf32>,
    return
  }
  func.func @transform_0(%arg0: i32) -> (i32, i32) {
    %c0_i32 = arith.constant 0 : i32
    %c0_i32_0 = arith.constant 0 : i32
    return %arg0, %c0_i32 : i32, i32
  }
  func.func @transform_1(%arg0: i32) -> (i32, i32) {
    %c0_i32 = arith.constant 0 : i32
    %c0_i32_0 = arith.constant 0 : i32
    %c0_i32_1 = arith.constant 0 : i32
    return %c0_i32, %c0_i32_0 : i32, i32
  }
  func.func @transform_2(%arg0: i32) -> (i32, i32) {
    %c0_i32 = arith.constant 0 : i32
    %c0_i32_0 = arith.constant 0 : i32
    %c0_i32_1 = arith.constant 0 : i32
    return %c0_i32, %c0_i32_0 : i32, i32
  }
  func.func @transform_3(%arg0: i32) -> (i32, i32) {
    %c0_i32 = arith.constant 0 : i32
    %c0_i32_0 = arith.constant 0 : i32
    %c0_i32_1 = arith.constant 0 : i32
    return %c0_i32, %c0_i32_0 : i32, i32
  }
  func.func @transform_4(%arg0: i32) -> (i32, i32) {
    %c0_i32 = arith.constant 0 : i32
    %c0_i32_0 = arith.constant 0 : i32
    %c0_i32_1 = arith.constant 0 : i32
    return %c0_i32, %c0_i32_0 : i32, i32
  }
  func.func @transform_5(%arg0: i32) -> (i32, i32) {
    %c0_i32 = arith.constant 0 : i32
    %c0_i32_0 = arith.constant 0 : i32
    %c0_i32_1 = arith.constant 0 : i32
    return %c0_i32, %c0_i32_0 : i32, i32
  }
  func.func @transform_6(%arg0: i32) -> (i32, i32) {
    %c0_i32 = arith.constant 0 : i32
    %c0_i32_0 = arith.constant 0 : i32
    %c0_i32_1 = arith.constant 0 : i32
    return %c0_i32, %c0_i32_0 : i32, i32
  }
  func.func @transform_7(%arg0: i32) -> (i32, i32) {
    %c0_i32 = arith.constant 0 : i32
    %c0_i32_0 = arith.constant 0 : i32
    return %arg0, %c0_i32 : i32, i32
  }
}

module attributes {stable_mosaic.version = 11 : i64} {
  func.func @_ffn_block_kernel(%arg0: i32, %arg1: memref<16x64xf32, #tpu.memory_space<vmem>>, %arg2: memref<64x128xbf16, #tpu.memory_space<vmem>>, %arg3: memref<1x128xf32, #tpu.memory_space<vmem>>, %arg4: memref<128x64xbf16, #tpu.memory_space<vmem>>, %arg5: memref<1x64xf32, #tpu.memory_space<vmem>>, %arg6: memref<1x64xf32, #tpu.memory_space<vmem>>, %arg7: memref<1x64xf32, #tpu.memory_space<vmem>>, %arg8: memref<1x64xf32, #tpu.memory_space<vmem>>, %arg9: memref<1x64xf32, #tpu.memory_space<vmem>>, %arg10: memref<16x64xf32, #tpu.memory_space<vmem>>) attributes {dimension_semantics = [#tpu.dimension_semantics<parallel>], iteration_bounds = array<i64: 1>, scalar_prefetch = 0 : i64, scratch_operands = 0 : i64, tpu.core_type = #tpu.core_type<tc>, window_params = [{transform_indices = @transform_0, window_bounds = array<i64: 16, 64>}, {pipeline_mode = #tpu.pipeline_mode<synchronous>, transform_indices = @transform_1, window_bounds = array<i64: 64, 128>}, {pipeline_mode = #tpu.pipeline_mode<synchronous>, transform_indices = @transform_2, window_bounds = array<i64: 1, 128>}, {pipeline_mode = #tpu.pipeline_mode<synchronous>, transform_indices = @transform_3, window_bounds = array<i64: 128, 64>}, {pipeline_mode = #tpu.pipeline_mode<synchronous>, transform_indices = @transform_4, window_bounds = array<i64: 1, 64>}, {pipeline_mode = #tpu.pipeline_mode<synchronous>, transform_indices = @transform_5, window_bounds = array<i64: 1, 64>}, {pipeline_mode = #tpu.pipeline_mode<synchronous>, transform_indices = @transform_6, window_bounds = array<i64: 1, 64>}, {pipeline_mode = #tpu.pipeline_mode<synchronous>, transform_indices = @transform_7, window_bounds = array<i64: 1, 64>}, {pipeline_mode = #tpu.pipeline_mode<synchronous>, transform_indices = @transform_8, window_bounds = array<i64: 1, 64>}, {transform_indices = @transform_9, window_bounds = array<i64: 16, 64>}]} {
    %c0 = arith.constant 0 : index
    %c0_0 = arith.constant 0 : index
    %0 = vector.load %arg1[%c0, %c0_0] : memref<16x64xf32, #tpu.memory_space<vmem>>, vector<16x64xf32>
    %c0_1 = arith.constant 0 : index
    %c0_2 = arith.constant 0 : index
    %1 = vector.load %arg2[%c0_1, %c0_2] : memref<64x128xbf16, #tpu.memory_space<vmem>>, vector<64x128xbf16>
    %2 = arith.truncf %0 : vector<16x64xf32> to vector<16x64xbf16>
    %cst = arith.constant dense<0.000000e+00> : vector<16x128xf32>
    %3 = tpu.matmul %2, %1, %cst {dimension_numbers = #tpu.dot_dimension_numbers<[1], [0], [0], [1], [0, 0, 1, 1], [], []>} : vector<16x64xbf16>, vector<64x128xbf16>, vector<16x128xf32> -> vector<16x128xf32>
    %c0_3 = arith.constant 0 : index
    %c0_4 = arith.constant 0 : index
    %4 = vector.load %arg3[%c0_3, %c0_4] : memref<1x128xf32, #tpu.memory_space<vmem>>, vector<1x128xf32>
    %5 = vector.broadcast %4 : vector<1x128xf32> to vector<16x128xf32>
    %6 = arith.addf %3, %5 : vector<16x128xf32>
    %cst_5 = arith.constant 0.000000e+00 : f32
    %7 = vector.broadcast %cst_5 : f32 to vector<16x128xf32>
    %8 = arith.maximumf %6, %7 : vector<16x128xf32>
    %c0_6 = arith.constant 0 : index
    %c0_7 = arith.constant 0 : index
    %9 = vector.load %arg4[%c0_6, %c0_7] : memref<128x64xbf16, #tpu.memory_space<vmem>>, vector<128x64xbf16>
    %10 = arith.truncf %8 : vector<16x128xf32> to vector<16x128xbf16>
    %cst_8 = arith.constant dense<0.000000e+00> : vector<16x64xf32>
    %11 = tpu.matmul %10, %9, %cst_8 {dimension_numbers = #tpu.dot_dimension_numbers<[1], [0], [0], [1], [0, 0, 1, 1], [], []>} : vector<16x128xbf16>, vector<128x64xbf16>, vector<16x64xf32> -> vector<16x64xf32>
    %c0_9 = arith.constant 0 : index
    %c0_10 = arith.constant 0 : index
    %12 = vector.load %arg5[%c0_9, %c0_10] : memref<1x64xf32, #tpu.memory_space<vmem>>, vector<1x64xf32>
    %13 = vector.broadcast %12 : vector<1x64xf32> to vector<16x64xf32>
    %14 = arith.addf %11, %13 : vector<16x64xf32>
    %15 = arith.addf %0, %14 : vector<16x64xf32>
    %c0_11 = arith.constant 0 : index
    %c0_12 = arith.constant 0 : index
    %16 = vector.load %arg6[%c0_11, %c0_12] : memref<1x64xf32, #tpu.memory_space<vmem>>, vector<1x64xf32>
    %c0_13 = arith.constant 0 : index
    %c0_14 = arith.constant 0 : index
    %17 = vector.load %arg7[%c0_13, %c0_14] : memref<1x64xf32, #tpu.memory_space<vmem>>, vector<1x64xf32>
    %cst_15 = arith.constant dense<0.000000e+00> : vector<16xf32>
    %18 = vector.multi_reduction <add>, %15, %cst_15 [1] : vector<16x64xf32> to vector<16xf32>
    %19 = vector.shape_cast %18 : vector<16xf32> to vector<16x1xf32>
    %cst_16 = arith.constant 6.400000e+01 : f32
    %20 = vector.broadcast %cst_16 : f32 to vector<16x1xf32>
    %21 = arith.divf %19, %20 : vector<16x1xf32>
    %22 = vector.broadcast %21 : vector<16x1xf32> to vector<16x64xf32>
    %23 = arith.subf %15, %22 : vector<16x64xf32>
    %24 = arith.mulf %23, %23 : vector<16x64xf32>
    %cst_17 = arith.constant dense<0.000000e+00> : vector<16xf32>
    %25 = vector.multi_reduction <add>, %24, %cst_17 [1] : vector<16x64xf32> to vector<16xf32>
    %26 = vector.shape_cast %25 : vector<16xf32> to vector<16x1xf32>
    %cst_18 = arith.constant 6.400000e+01 : f32
    %27 = vector.broadcast %cst_18 : f32 to vector<16x1xf32>
    %28 = arith.divf %26, %27 : vector<16x1xf32>
    %cst_19 = arith.constant 9.99999974E-6 : f32
    %29 = vector.broadcast %cst_19 : f32 to vector<16x1xf32>
    %30 = arith.addf %28, %29 : vector<16x1xf32>
    %31 = math.rsqrt %30 : vector<16x1xf32>
    %32 = vector.broadcast %31 : vector<16x1xf32> to vector<16x64xf32>
    %33 = arith.mulf %23, %32 : vector<16x64xf32>
    %34 = vector.broadcast %16 : vector<1x64xf32> to vector<16x64xf32>
    %35 = arith.mulf %33, %34 : vector<16x64xf32>
    %36 = vector.broadcast %17 : vector<1x64xf32> to vector<16x64xf32>
    %37 = arith.addf %35, %36 : vector<16x64xf32>
    %c0_20 = arith.constant 0 : index
    %c0_21 = arith.constant 0 : index
    %38 = vector.load %arg8[%c0_20, %c0_21] : memref<1x64xf32, #tpu.memory_space<vmem>>, vector<1x64xf32>
    %c0_22 = arith.constant 0 : index
    %c0_23 = arith.constant 0 : index
    %39 = vector.load %arg9[%c0_22, %c0_23] : memref<1x64xf32, #tpu.memory_space<vmem>>, vector<1x64xf32>
    %cst_24 = arith.constant dense<0.000000e+00> : vector<16xf32>
    %40 = vector.multi_reduction <add>, %37, %cst_24 [1] : vector<16x64xf32> to vector<16xf32>
    %41 = vector.shape_cast %40 : vector<16xf32> to vector<16x1xf32>
    %cst_25 = arith.constant 6.400000e+01 : f32
    %42 = vector.broadcast %cst_25 : f32 to vector<16x1xf32>
    %43 = arith.divf %41, %42 : vector<16x1xf32>
    %44 = vector.broadcast %43 : vector<16x1xf32> to vector<16x64xf32>
    %45 = arith.subf %37, %44 : vector<16x64xf32>
    %46 = arith.mulf %45, %45 : vector<16x64xf32>
    %cst_26 = arith.constant dense<0.000000e+00> : vector<16xf32>
    %47 = vector.multi_reduction <add>, %46, %cst_26 [1] : vector<16x64xf32> to vector<16xf32>
    %48 = vector.shape_cast %47 : vector<16xf32> to vector<16x1xf32>
    %cst_27 = arith.constant 6.400000e+01 : f32
    %49 = vector.broadcast %cst_27 : f32 to vector<16x1xf32>
    %50 = arith.divf %48, %49 : vector<16x1xf32>
    %cst_28 = arith.constant 9.99999974E-6 : f32
    %51 = vector.broadcast %cst_28 : f32 to vector<16x1xf32>
    %52 = arith.addf %50, %51 : vector<16x1xf32>
    %53 = math.rsqrt %52 : vector<16x1xf32>
    %54 = vector.broadcast %53 : vector<16x1xf32> to vector<16x64xf32>
    %55 = arith.mulf %45, %54 : vector<16x64xf32>
    %56 = vector.broadcast %38 : vector<1x64xf32> to vector<16x64xf32>
    %57 = arith.mulf %55, %56 : vector<16x64xf32>
    %58 = vector.broadcast %39 : vector<1x64xf32> to vector<16x64xf32>
    %59 = arith.addf %57, %58 : vector<16x64xf32>
    %c0_29 = arith.constant 0 : index
    %c0_30 = arith.constant 0 : index
    %60 = vector.load %arg10[%c0_29, %c0_30] : memref<16x64xf32, #tpu.memory_space<vmem>>, vector<16x64xf32>
    tpu.vector_store %arg10[%c0_29, %c0_30], %59 {strides = array<i32>} : memref<16x64xf32, #tpu.memory_space<vmem>>, vector<16x64xf32>,
    return
  }
  func.func @transform_0(%arg0: i32) -> (i32, i32) {
    %c0_i32 = arith.constant 0 : i32
    %c0_i32_0 = arith.constant 0 : i32
    return %arg0, %c0_i32 : i32, i32
  }
  func.func @transform_1(%arg0: i32) -> (i32, i32) {
    %c0_i32 = arith.constant 0 : i32
    %c0_i32_0 = arith.constant 0 : i32
    %c0_i32_1 = arith.constant 0 : i32
    return %c0_i32, %c0_i32_0 : i32, i32
  }
  func.func @transform_2(%arg0: i32) -> (i32, i32) {
    %c0_i32 = arith.constant 0 : i32
    %c0_i32_0 = arith.constant 0 : i32
    %c0_i32_1 = arith.constant 0 : i32
    return %c0_i32, %c0_i32_0 : i32, i32
  }
  func.func @transform_3(%arg0: i32) -> (i32, i32) {
    %c0_i32 = arith.constant 0 : i32
    %c0_i32_0 = arith.constant 0 : i32
    %c0_i32_1 = arith.constant 0 : i32
    return %c0_i32, %c0_i32_0 : i32, i32
  }
  func.func @transform_4(%arg0: i32) -> (i32, i32) {
    %c0_i32 = arith.constant 0 : i32
    %c0_i32_0 = arith.constant 0 : i32
    %c0_i32_1 = arith.constant 0 : i32
    return %c0_i32, %c0_i32_0 : i32, i32
  }
  func.func @transform_5(%arg0: i32) -> (i32, i32) {
    %c0_i32 = arith.constant 0 : i32
    %c0_i32_0 = arith.constant 0 : i32
    %c0_i32_1 = arith.constant 0 : i32
    return %c0_i32, %c0_i32_0 : i32, i32
  }
  func.func @transform_6(%arg0: i32) -> (i32, i32) {
    %c0_i32 = arith.constant 0 : i32
    %c0_i32_0 = arith.constant 0 : i32
    %c0_i32_1 = arith.constant 0 : i32
    return %c0_i32, %c0_i32_0 : i32, i32
  }
  func.func @transform_7(%arg0: i32) -> (i32, i32) {
    %c0_i32 = arith.constant 0 : i32
    %c0_i32_0 = arith.constant 0 : i32
    %c0_i32_1 = arith.constant 0 : i32
    return %c0_i32, %c0_i32_0 : i32, i32
  }
  func.func @transform_8(%arg0: i32) -> (i32, i32) {
    %c0_i32 = arith.constant 0 : i32
    %c0_i32_0 = arith.constant 0 : i32
    %c0_i32_1 = arith.constant 0 : i32
    return %c0_i32, %c0_i32_0 : i32, i32
  }
  func.func @transform_9(%arg0: i32) -> (i32, i32) {
    %c0_i32 = arith.constant 0 : i32
    %c0_i32_0 = arith.constant 0 : i32
    return %arg0, %c0_i32 : i32, i32
  }
}

</mosaic_0001>

<llo_original>
// kernel: transformer_decoder_forward.8
$region0: #{transformer_decoder_forward.8}
  #allocation0 [shape = 'u32[]', space=smem, size = 0x4, offset = 0x4, fixed_abs, tag = 'smem constant byte address 0x4 - core index']
  #allocation1 [shape = 'u32[72,128]{1,0:T(1,128)}', space=vmem, size = 0x9000, scoped, tag = 'internal scratch']
  %s0 = inlined_call_operand.vmem [shape: f32[16,64], index: 0, kind: input, shape index: {}]
  %s1 = inlined_call_operand.vmem [shape: bf16[64,128], index: 1, kind: input, shape index: {}]
  %s2 = inlined_call_operand.vmem [shape: f32[1,128], index: 2, kind: input, shape index: {}]
  %s3 = inlined_call_operand.vmem [shape: bf16[128,64], index: 3, kind: input, shape index: {}]
  %s4 = inlined_call_operand.vmem [shape: f32[1,64], index: 4, kind: input, shape index: {}]
  %s5 = inlined_call_operand.vmem [shape: f32[1,64], index: 5, kind: input, shape index: {}]
  %s6 = inlined_call_operand.vmem [shape: f32[1,64], index: 6, kind: input, shape index: {}]
  %s7 = inlined_call_operand.vmem [shape: f32[16,64], index: 7, kind: output, shape index: {}]
  %s8 = sld [smem:[#allocation0]]
  $region38: #{transformer_decoder_forward.8} parent=0
    _
  %s10 = ssub.s32 1, %s8
  %s11 = scalar_select 0, %s10, %s8
  // Predicated region
  $region2: #{transformer_decoder_forward.8} parent=0 // pred_check
    _
  $region3: #{transformer_decoder_forward.8} parent=0 // pred_check_branch
    %13 = sbr.rel (0) target = $region5
  $region4: #{transformer_decoder_forward.8} parent=0 // pred_region
    _
  $region5: #{transformer_decoder_forward.8} parent=0 // pred_fallthru
    _
  // Predicated region
  $region6: #{transformer_decoder_forward.8} parent=0 // pred_check
    _
  $region7: #{transformer_decoder_forward.8} parent=0 // pred_check_branch
    %15 = sbr.rel (0) target = $region9
  $region8: #{transformer_decoder_forward.8} parent=0 // pred_region
    _
  $region9: #{transformer_decoder_forward.8} parent=0 // pred_fallthru
    _
  // Predicated region
  $region10: #{transformer_decoder_forward.8} parent=0 // pred_check
    _
  $region11: #{transformer_decoder_forward.8} parent=0 // pred_check_branch
    %17 = sbr.rel (0) target = $region13
  $region12: #{transformer_decoder_forward.8} parent=0 // pred_region
    _
  $region13: #{transformer_decoder_forward.8} parent=0 // pred_fallthru
    _
  // Predicated region
  $region14: #{transformer_decoder_forward.8} parent=0 // pred_check
    _
  $region15: #{transformer_decoder_forward.8} parent=0 // pred_check_branch
    %19 = sbr.rel (0) target = $region17
  $region16: #{transformer_decoder_forward.8} parent=0 // pred_region
    _
  $region17: #{transformer_decoder_forward.8} parent=0 // pred_fallthru
    _
  // Predicated region
  $region18: #{transformer_decoder_forward.8} parent=0 // pred_check
    _
  $region19: #{transformer_decoder_forward.8} parent=0 // pred_check_branch
    %21 = sbr.rel (0) target = $region21
  $region20: #{transformer_decoder_forward.8} parent=0 // pred_region
    _
  $region21: #{transformer_decoder_forward.8} parent=0 // pred_fallthru
    _
  // Predicated region
  $region22: #{transformer_decoder_forward.8} parent=0 // pred_check
    _
  $region23: #{transformer_decoder_forward.8} parent=0 // pred_check_branch
    %23 = sbr.rel (0) target = $region25
  $region24: #{transformer_decoder_forward.8} parent=0 // pred_region
    _
  $region25: #{transformer_decoder_forward.8} parent=0 // pred_fallthru
    _
  // Predicated region
  $region26: #{transformer_decoder_forward.8} parent=0 // pred_check
    _
  $region27: #{transformer_decoder_forward.8} parent=0 // pred_check_branch
    %25 = sbr.rel (0) target = $region29
  $region28: #{transformer_decoder_forward.8} parent=0 // pred_region
    _
  $region29: #{transformer_decoder_forward.8} parent=0 // pred_fallthru
    _
  %v27 = vld [vmem:[%s0] sm:$0xff]
  %v28 = vld [vmem:[%s0 + $0x8] sm:$0xff]
  %v29 = vld [vmem:[%s1] sm:$0xf]
  %v30 = vld [vmem:[%s1 + $0x4] sm:$0xf]
  %v31 = vld [vmem:[%s1 + $0x8] sm:$0xf]
  %v32 = vld [vmem:[%s1 + $0xc] sm:$0xf]
  %v33 = vld [vmem:[%s1 + $0x10] sm:$0xf]
  %v34 = vld [vmem:[%s1 + $0x14] sm:$0xf]
  %v35 = vld [vmem:[%s1 + $0x18] sm:$0xf]
  %v36 = vld [vmem:[%s1 + $0x1c] sm:$0xf]
  %v37 = vpack.c.bf16 %v28, %v27
  %v38 = vld [vmem:[%s2] sm:$0x1]
  %v40 = vperm.slane %v38, 0
  %v50 = vunpack.c.l.b16 %v29
  %v51 = vunpack.c.l.b16 %v30
  %v52 = vunpack.c.l.b16 %v31
  %v53 = vunpack.c.l.b16 %v32
  %v54 = vunpack.c.l.b16 %v33
  %v55 = vunpack.c.l.b16 %v34
  %v56 = vunpack.c.l.b16 %v35
  %v57 = vunpack.c.l.b16 %v36
  %v58 = vpack.c.b16 %v51, %v50
  %v59 = vpack.c.b16 %v53, %v52
  %v60 = vpack.c.b16 %v55, %v54
  %v61 = vpack.c.b16 %v57, %v56
  %vm66 = vcmask 523264
  %v68 = vsel %vm66, %v37, 0
  %70 = vmatpush.bf16.msra.mxu0 0
  %71 = vmatpush.bf16.msra.mxu0 0
  %72 = vmatpush.bf16.msra.mxu0 0
  %73 = vmatpush.bf16.msra.mxu0 0
  %74 = vmatpush.bf16.msra.mxu0 %v61
  %75 = vmatpush.bf16.msra.mxu0 %v60
  %76 = vmatpush.bf16.msra.mxu0 %v59
  %77 = vmatpush.bf16.msra.mxu0 %v58
  %78 = vmatmul.bf16.gmra.mxu0 %v68
  %v79 = vpop.f32.mrf.mxu0
  %v80 = vadd.f32 %v40, %v79
  %v81 = vpop.f32.mrf.mxu0
  %v82 = vadd.f32 %v40, %v81
  %83 = vdwg.mxu0
  %v84 = vmax.f32 %v80, 0.0
  %v85 = vmax.f32 %v82, 0.0
  %v86 = vld [vmem:[%s3] sm:$0xf]
  %v87 = vld [vmem:[%s3 + $0x4] sm:$0xf]
  %v88 = vld [vmem:[%s3 + $0x8] sm:$0xf]
  %v89 = vld [vmem:[%s3 + $0xc] sm:$0xf]
  %v90 = vld [vmem:[%s3 + $0x10] sm:$0xf]
  %v91 = vld [vmem:[%s3 + $0x14] sm:$0xf]
  %v92 = vld [vmem:[%s3 + $0x18] sm:$0xf]
  %v93 = vld [vmem:[%s3 + $0x1c] sm:$0xf]
  %v94 = vld [vmem:[%s3 + $0x20] sm:$0xf]
  %v95 = vld [vmem:[%s3 + $0x24] sm:$0xf]
  %v96 = vld [vmem:[%s3 + $0x28] sm:$0xf]
  %v97 = vld [vmem:[%s3 + $0x2c] sm:$0xf]
  %v98 = vld [vmem:[%s3 + $0x30] sm:$0xf]
  %v99 = vld [vmem:[%s3 + $0x34] sm:$0xf]
  %v100 = vld [vmem:[%s3 + $0x38] sm:$0xf]
  %v101 = vld [vmem:[%s3 + $0x3c] sm:$0xf]
  %v102 = vpack.c.bf16 %v85, %v84
  %v103 = vld [vmem:[%s4] sm:$0x1]
  %v105 = vperm.slane %v103, 0
  %v123 = vunpack.c.l.b16 %v86
  %v124 = vunpack.c.l.b16 %v87
  %v125 = vunpack.c.l.b16 %v88
  %v126 = vunpack.c.l.b16 %v89
  %v127 = vunpack.c.l.b16 %v90
  %v128 = vunpack.c.l.b16 %v91
  %v129 = vunpack.c.l.b16 %v92
  %v130 = vunpack.c.l.b16 %v93
  %v131 = vunpack.c.l.b16 %v94
  %v132 = vunpack.c.l.b16 %v95
  %v133 = vunpack.c.l.b16 %v96
  %v134 = vunpack.c.l.b16 %v97
  %v135 = vunpack.c.l.b16 %v98
  %v136 = vunpack.c.l.b16 %v99
  %v137 = vunpack.c.l.b16 %v100
  %v138 = vunpack.c.l.b16 %v101
  %v139 = vpack.c.b16 %v124, %v123
  %v140 = vpack.c.b16 %v126, %v125
  %v141 = vpack.c.b16 %v128, %v127
  %v142 = vpack.c.b16 %v130, %v129
  %v143 = vpack.c.b16 %v132, %v131
  %v144 = vpack.c.b16 %v134, %v133
  %v145 = vpack.c.b16 %v136, %v135
  %v146 = vpack.c.b16 %v138, %v137
  %155 = vmatpush.bf16.msra.mxu0 %v146
  %156 = vmatpush.bf16.msra.mxu0 %v145
  %157 = vmatpush.bf16.msra.mxu0 %v144
  %158 = vmatpush.bf16.msra.mxu0 %v143
  %159 = vmatpush.bf16.msra.mxu0 %v142
  %160 = vmatpush.bf16.msra.mxu0 %v141
  %161 = vmatpush.bf16.msra.mxu0 %v140
  %162 = vmatpush.bf16.msra.mxu0 %v139
  %163 = vmatmul.bf16.gmra.mxu0 %v102
  %v164 = vpop.f32.mrf.mxu0
  %v165 = vadd.f32 %v105, %v164
  %v166 = vpop.f32.mrf.mxu0
  %v167 = vadd.f32 %v105, %v166
  %168 = vdwg.mxu0
  %v169 = vadd.f32 %v27, %v165
  %v170 = vadd.f32 %v28, %v167
  %v171 = vld [vmem:[%s5] sm:$0x1]
  %v172 = vld [vmem:[%s6] sm:$0x1]
  %v173 = vsel %vm66, %v169, 0.0
  %174 = vadd.xlane.f32.xlu0 %v173
  %v175 = vpop.xlane.xlu0 %174
  %v176 = vsel %vm66, %v170, 0.0
  %177 = vadd.xlane.f32.xlu0 %v176
  %v178 = vpop.xlane.xlu0 %177
  %v179 = vrcp.pop 64.0
  %v180 = vmul.f32 64.0, %v179
  %v181 = vsub.f32 1.0, %v180
  %v182 = vmul.f32 %v179, %v181
  %v183 = vadd.f32 %v179, %v182
  %vm184 = vweird.f32 %v179
  %v185 = vsel %vm184, %v179, %v183
  %v186 = vmul.f32 %v175, %v185
  %v187 = vmul.f32 %v178, %v185
  %v188 = vsub.f32 %v169, %v186
  %v189 = vsub.f32 %v170, %v187
  %v190 = vmul.f32 %v188, %v188
  %v191 = vmul.f32 %v189, %v189
  %v192 = vsel %vm66, %v190, 0.0
  %193 = vadd.xlane.f32.xlu0 %v192
  %v194 = vpop.xlane.xlu0 %193
  %v195 = vsel %vm66, %v191, 0.0
  %196 = vadd.xlane.f32.xlu0 %v195
  %v197 = vpop.xlane.xlu0 %196
  %v198 = vmul.f32 %v194, %v185
  %v199 = vmul.f32 %v197, %v185
  %v200 = vadd.f32 %v198, 1e-05
  %v201 = vadd.f32 %v199, 1e-05
  %v202 = vrsqrt.pop %v200
  %v203 = vmul.f32 %v202, %v200
  %v204 = vmul.f32 %v203, %v202
  %v205 = vmul.f32 0.5, %v204
  %v206 = vsub.f32 1.5, %v205
  %v207 = vmul.f32 %v202, %v206
  %vm208 = vweird.f32 %v200
  %vm209 = vweird.f32 %v202
  %vm210 = vmor %vm208, %vm209
  %v211 = vsel %vm210, %v202, %v207
  %v212 = vrsqrt.pop %v201
  %v213 = vmul.f32 %v212, %v201
  %v214 = vmul.f32 %v213, %v212
  %v215 = vmul.f32 0.5, %v214
  %v216 = vsub.f32 1.5, %v215
  %v217 = vmul.f32 %v212, %v216
  %vm218 = vweird.f32 %v201
  %vm219 = vweird.f32 %v212
  %vm220 = vmor %vm218, %vm219
  %v221 = vsel %vm220, %v212, %v217
  %v222 = vmul.f32 %v188, %v211
  %v223 = vmul.f32 %v189, %v221
  %v225 = vperm.slane %v171, 0
  %v227 = vmul.f32 %v222, %v225
  %v228 = vmul.f32 %v223, %v225
  %v230 = vperm.slane %v172, 0
  %v232 = vadd.f32 %v227, %v230
  %v233 = vadd.f32 %v228, %v230
  %234 = vst.msk [vmem:[%s7] sm:$0xff] %vm66, %v232
  %235 = vst.msk [vmem:[%s7 + $0x8] sm:$0xff] %vm66, %v233
  // Predicated region
  $region30: #{transformer_decoder_forward.8} parent=0 // pred_check
    _
  $region31: #{transformer_decoder_forward.8} parent=0 // pred_check_branch
    %237 = sbr.rel (0) target = $region33
  $region32: #{transformer_decoder_forward.8} parent=0 // pred_region
    _
  $region33: #{transformer_decoder_forward.8} parent=0 // pred_fallthru
    _
  // Predicated region
  $region34: #{transformer_decoder_forward.8} parent=0 // pred_check
    _
  $region35: #{transformer_decoder_forward.8} parent=0 // pred_check_branch
    %239 = sbr.rel (0) target = $region37
  $region36: #{transformer_decoder_forward.8} parent=0 // pred_region
    _
  $region37: #{transformer_decoder_forward.8} parent=0 // pred_fallthru
    _

// kernel: transformer_decoder_forward.7
$region0: #{transformer_decoder_forward.7}
  #allocation0 [shape = 'u32[]', space=smem, size = 0x4, offset = 0x4, fixed_abs, tag = 'smem constant byte address 0x4 - core index']
  #allocation1 [shape = 'u32[72,128]{1,0:T(1,128)}', space=vmem, size = 0x9000, scoped, tag = 'internal scratch']
  %s0 = inlined_call_operand.vmem [shape: f32[2,8,64], index: 0, kind: input, shape index: {}]
  %s1 = inlined_call_operand.vmem [shape: f32[2,8,64], index: 1, kind: input, shape index: {}]
  %s2 = inlined_call_operand.vmem [shape: f32[2,16,64], index: 2, kind: input, shape index: {}]
  %s3 = inlined_call_operand.vmem [shape: f32[2,16,64], index: 3, kind: input, shape index: {}]
  %s4 = inlined_call_operand.vmem [shape: bf16[64,64], index: 4, kind: input, shape index: {}]
  %s5 = inlined_call_operand.vmem [shape: f32[1,64], index: 5, kind: input, shape index: {}]
  %s6 = inlined_call_operand.vmem [shape: bf16[64,64], index: 6, kind: input, shape index: {}]
  %s7 = inlined_call_operand.vmem [shape: f32[1,64], index: 7, kind: input, shape index: {}]
  %s8 = inlined_call_operand.vmem [shape: bf16[64,64], index: 8, kind: input, shape index: {}]
  %s9 = inlined_call_operand.vmem [shape: f32[1,64], index: 9, kind: input, shape index: {}]
  %s10 = inlined_call_operand.vmem [shape: bf16[64,64], index: 10, kind: input, shape index: {}]
  %s11 = inlined_call_operand.vmem [shape: f32[1,64], index: 11, kind: input, shape index: {}]
  %s12 = inlined_call_operand.vmem [shape: f32[1,64], index: 12, kind: input, shape index: {}]
  %s13 = inlined_call_operand.vmem [shape: f32[1,64], index: 13, kind: input, shape index: {}]
  %s14 = inlined_call_operand.vmem [shape: f32[2,8,64], index: 14, kind: output, shape index: {}]
  %s15 = sld [smem:[#allocation0]]
  $region89: #{transformer_decoder_forward.7} parent=0
    _
  %s17 = ssub.s32 1, %s15
  %s18 = scalar_select 0, %s17, %s15
  loop: start=0, step=1, limit=4
  $region2: #{transformer_decoder_forward.7} parent=0 // loop_pre_header
    _
  $region3: #{transformer_decoder_forward.7} parent=0 // loop_header
    %s20 = sphi 0, %s24
    %p21 = scmp.ge.s32.totalorder %s20, 4
    %s27 = sphi 0, %s39
    %s28 = sphi 0, %s35
    %s29 = sphi 0, %s27
    %s30 = sphi 0, %s28
    %s31 = sphi 0, %s29
    %s32 = sphi 0, %s30
    %s44 = sphi 0, %s46
    %s47 = sphi 0, %s44
    %s48 = sphi 0, %s47
    %s64 = sphi 0, %s48
    %s72 = sphi 0, %s74
    %s75 = sphi 0, %s72
    %s76 = sphi 0, %s75
    %s92 = sphi 0, %s76
    %s98 = sphi 0, %s100
    %s101 = sphi 0, %s98
    %s102 = sphi 0, %s101
    %s118 = sphi 0, %s102
    %s124 = sphi 0, %s126
    %s127 = sphi 0, %s124
    %s128 = sphi 0, %s127
    %s144 = sphi 0, %s128
    %s148 = sphi 0, %s148
    %s150 = sphi 0, %s148
    %s151 = sphi 0, %s150
    %s165 = sphi 0, %s151
    %s169 = sphi 0, %s169
    %s171 = sphi 0, %s169
    %s172 = sphi 0, %s171
    %s186 = sphi 0, %s172
    %s190 = sphi 0, %s190
    %s192 = sphi 0, %s190
    %s193 = sphi 0, %s192
    %s207 = sphi 0, %s193
    %s211 = sphi 0, %s211
    %s213 = sphi 0, %s211
    %s214 = sphi 0, %s213
    %s228 = sphi 0, %s214
    %s232 = sphi 0, %s232
    %s234 = sphi 0, %s232
    %s235 = sphi 0, %s234
    %s249 = sphi 0, %s235
    %s253 = sphi 0, %s253
    %s255 = sphi 0, %s253
    %s256 = sphi 0, %s255
    %s270 = sphi 0, %s256
    %s274 = sphi 0, %s274
    %s276 = sphi 0, %s274
    %s277 = sphi 0, %s276
    %s291 = sphi 0, %s277
    %s295 = sphi 0, %s295
    %s297 = sphi 0, %s295
    %s298 = sphi 0, %s297
    %s312 = sphi 0, %s298
    %s316 = sphi 0, %s316
    %s318 = sphi 0, %s316
    %s319 = sphi 0, %s318
    %s333 = sphi 0, %s319
    %s337 = sphi 0, %s337
    %s339 = sphi 0, %s337
    %s340 = sphi 0, %s339
    %s354 = sphi 0, %s340
    %s362 = sphi 0, %s364
    %s365 = sphi 0, %s362
    %s366 = sphi 0, %s365
    %s382 = sphi 0, %s366
  $region4: #{transformer_decoder_forward.7} parent=0 // loop_header_branch
    %23 = sbr.rel (%p21) target = $region8
  $region5: #{transformer_decoder_forward.7} parent=0 // loop_body
    %s25 = ssub.s32 %s20, 1
    %s26 = ssub.s32 %s20, 2
    %s33 = sadd.s32 1, %s28
    %p34 = scmp.ge.s32.totalorder %s33, 1
    %s35 = scalar_select %p34, 0, %s33
    %s36 = sadd.s32 1, %s27
    %s37 = scalar_select %p34, %s36, %s27
    %p38 = scmp.ge.s32.totalorder %s37, 2
    %s39 = scalar_select %p38, 0, %s37
    %s40 = ssub.s32 %s27, %s39
    %s41 = ssub.s32 %s28, %s35
    %s42 = sor.u32 %s40, %s41
    %p43 = scmp.eq.s32.totalorder %s42, 0
    %s45 = sadd.s32 %s44, 1
    %s46 = scalar_select %p43, %s44, %s45
    %p49 = pneg %p43
    %p50 = scmp.eq.s32.totalorder %s20, 1
    %p51 = por %p49, %p50
    %p52 = scmp.ne.s32.totalorder %s44, %s47
    %p53 = scmp.eq.s32.totalorder %s20, 0
    %p54 = por %p52, %p53
    %p55 = scmp.ne.s32.totalorder %s44, %s47
    %p56 = scmp.eq.s32.totalorder %s25, 1
    %p57 = por %p55, %p56
    %p58 = scmp.ne.s32.totalorder %s47, %s48
    %p59 = scmp.eq.s32.totalorder %s25, 0
    %p60 = por %p58, %p59
    %p61 = scmp.ne.s32.totalorder %s47, %s48
    %p62 = scmp.eq.s32.totalorder %s26, 1
    %p63 = por %p61, %p62
    %p65 = scmp.ne.s32.totalorder %s48, %s64
    %p66 = scmp.eq.s32.totalorder %s26, 0
    %p67 = por %p65, %p66
    %s68 = ssub.s32 %s27, %s39
    %s69 = ssub.s32 %s28, %s35
    %s70 = sor.u32 %s68, %s69
    %p71 = scmp.eq.s32.totalorder %s70, 0
    %s73 = sadd.s32 %s72, 1
    %s74 = scalar_select %p71, %s72, %s73
    %p77 = pneg %p71
    %p78 = scmp.eq.s32.totalorder %s20, 1
    %p79 = por %p77, %p78
    %p80 = scmp.ne.s32.totalorder %s72, %s75
    %p81 = scmp.eq.s32.totalorder %s20, 0
    %p82 = por %p80, %p81
    %p83 = scmp.ne.s32.totalorder %s72, %s75
    %p84 = scmp.eq.s32.totalorder %s25, 1
    %p85 = por %p83, %p84
    %p86 = scmp.ne.s32.totalorder %s75, %s76
    %p87 = scmp.eq.s32.totalorder %s25, 0
    %p88 = por %p86, %p87
    %p89 = scmp.ne.s32.totalorder %s75, %s76
    %p90 = scmp.eq.s32.totalorder %s26, 1
    %p91 = por %p89, %p90
    %p93 = scmp.ne.s32.totalorder %s76, %s92
    %p94 = scmp.eq.s32.totalorder %s26, 0
    %p95 = por %p93, %p94
    %s96 = ssub.s32 %s27, %s39
    %p97 = scmp.eq.s32.totalorder %s96, 0
    %s99 = sadd.s32 %s98, 1
    %s100 = scalar_select %p97, %s98, %s99
    %p103 = pneg %p97
    %p104 = scmp.eq.s32.totalorder %s20, 1
    %p105 = por %p103, %p104
    %p106 = scmp.ne.s32.totalorder %s98, %s101
    %p107 = scmp.eq.s32.totalorder %s20, 0
    %p108 = por %p106, %p107
    %p109 = scmp.ne.s32.totalorder %s98, %s101
    %p110 = scmp.eq.s32.totalorder %s25, 1
    %p111 = por %p109, %p110
    %p112 = scmp.ne.s32.totalorder %s101, %s102
    %p113 = scmp.eq.s32.totalorder %s25, 0
    %p114 = por %p112, %p113
    %p115 = scmp.ne.s32.totalorder %s101, %s102
    %p116 = scmp.eq.s32.totalorder %s26, 1
    %p117 = por %p115, %p116
    %p119 = scmp.ne.s32.totalorder %s102, %s118
    %p120 = scmp.eq.s32.totalorder %s26, 0
    %p121 = por %p119, %p120
    %s122 = ssub.s32 %s27, %s39
    %p123 = scmp.eq.s32.totalorder %s122, 0
    %s125 = sadd.s32 %s124, 1
    %s126 = scalar_select %p123, %s124, %s125
    %p129 = pneg %p123
    %p130 = scmp.eq.s32.totalorder %s20, 1
    %p131 = por %p129, %p130
    %p132 = scmp.ne.s32.totalorder %s124, %s127
    %p133 = scmp.eq.s32.totalorder %s20, 0
    %p134 = por %p132, %p133
    %p135 = scmp.ne.s32.totalorder %s124, %s127
    %p136 = scmp.eq.s32.totalorder %s25, 1
    %p137 = por %p135, %p136
    %p138 = scmp.ne.s32.totalorder %s127, %s128
    %p139 = scmp.eq.s32.totalorder %s25, 0
    %p140 = por %p138, %p139
    %p141 = scmp.ne.s32.totalorder %s127, %s128
    %p142 = scmp.eq.s32.totalorder %s26, 1
    %p143 = por %p141, %p142
    %p145 = scmp.ne.s32.totalorder %s128, %s144
    %p146 = scmp.eq.s32.totalorder %s26, 0
    %p147 = por %p145, %p146
    %s149 = sadd.s32 %s148, 1
    %p152 = scmp.eq.s32.totalorder %s20, 1
    %p153 = scmp.ne.s32.totalorder %s148, %s150
    %p154 = scmp.eq.s32.totalorder %s20, 0
    %p155 = por %p153, %p154
    %p156 = scmp.ne.s32.totalorder %s148, %s150
    %p157 = scmp.eq.s32.totalorder %s25, 1
    %p158 = por %p156, %p157
    %p159 = scmp.ne.s32.totalorder %s150, %s151
    %p160 = scmp.eq.s32.totalorder %s25, 0
    %p161 = por %p159, %p160
    %p162 = scmp.ne.s32.totalorder %s150, %s151
    %p163 = scmp.eq.s32.totalorder %s26, 1
    %p164 = por %p162, %p163
    %p166 = scmp.ne.s32.totalorder %s151, %s165
    %p167 = scmp.eq.s32.totalorder %s26, 0
    %p168 = por %p166, %p167
    %s170 = sadd.s32 %s169, 1
    %p173 = scmp.eq.s32.totalorder %s20, 1
    %p174 = scmp.ne.s32.totalorder %s169, %s171
    %p175 = scmp.eq.s32.totalorder %s20, 0
    %p176 = por %p174, %p175
    %p177 = scmp.ne.s32.totalorder %s169, %s171
    %p178 = scmp.eq.s32.totalorder %s25, 1
    %p179 = por %p177, %p178
    %p180 = scmp.ne.s32.totalorder %s171, %s172
    %p181 = scmp.eq.s32.totalorder %s25, 0
    %p182 = por %p180, %p181
    %p183 = scmp.ne.s32.totalorder %s171, %s172
    %p184 = scmp.eq.s32.totalorder %s26, 1
    %p185 = por %p183, %p184
    %p187 = scmp.ne.s32.totalorder %s172, %s186
    %p188 = scmp.eq.s32.totalorder %s26, 0
    %p189 = por %p187, %p188
    %s191 = sadd.s32 %s190, 1
    %p194 = scmp.eq.s32.totalorder %s20, 1
    %p195 = scmp.ne.s32.totalorder %s190, %s192
    %p196 = scmp.eq.s32.totalorder %s20, 0
    %p197 = por %p195, %p196
    %p198 = scmp.ne.s32.totalorder %s190, %s192
    %p199 = scmp.eq.s32.totalorder %s25, 1
    %p200 = por %p198, %p199
    %p201 = scmp.ne.s32.totalorder %s192, %s193
    %p202 = scmp.eq.s32.totalorder %s25, 0
    %p203 = por %p201, %p202
    %p204 = scmp.ne.s32.totalorder %s192, %s193
    %p205 = scmp.eq.s32.totalorder %s26, 1
    %p206 = por %p204, %p205
    %p208 = scmp.ne.s32.totalorder %s193, %s207
    %p209 = scmp.eq.s32.totalorder %s26, 0
    %p210 = por %p208, %p209
    %s212 = sadd.s32 %s211, 1
    %p215 = scmp.eq.s32.totalorder %s20, 1
    %p216 = scmp.ne.s32.totalorder %s211, %s213
    %p217 = scmp.eq.s32.totalorder %s20, 0
    %p218 = por %p216, %p217
    %p219 = scmp.ne.s32.totalorder %s211, %s213
    %p220 = scmp.eq.s32.totalorder %s25, 1
    %p221 = por %p219, %p220
    %p222 = scmp.ne.s32.totalorder %s213, %s214
    %p223 = scmp.eq.s32.totalorder %s25, 0
    %p224 = por %p222, %p223
    %p225 = scmp.ne.s32.totalorder %s213, %s214
    %p226 = scmp.eq.s32.totalorder %s26, 1
    %p227 = por %p225, %p226
    %p229 = scmp.ne.s32.totalorder %s214, %s228
    %p230 = scmp.eq.s32.totalorder %s26, 0
    %p231 = por %p229, %p230
    %s233 = sadd.s32 %s232, 1
    %p236 = scmp.eq.s32.totalorder %s20, 1
    %p237 = scmp.ne.s32.totalorder %s232, %s234
    %p238 = scmp.eq.s32.totalorder %s20, 0
    %p239 = por %p237, %p238
    %p240 = scmp.ne.s32.totalorder %s232, %s234
    %p241 = scmp.eq.s32.totalorder %s25, 1
    %p242 = por %p240, %p241
    %p243 = scmp.ne.s32.totalorder %s234, %s235
    %p244 = scmp.eq.s32.totalorder %s25, 0
    %p245 = por %p243, %p244
    %p246 = scmp.ne.s32.totalorder %s234, %s235
    %p247 = scmp.eq.s32.totalorder %s26, 1
    %p248 = por %p246, %p247
    %p250 = scmp.ne.s32.totalorder %s235, %s249
    %p251 = scmp.eq.s32.totalorder %s26, 0
    %p252 = por %p250, %p251
    %s254 = sadd.s32 %s253, 1
    %p257 = scmp.eq.s32.totalorder %s20, 1
    %p258 = scmp.ne.s32.totalorder %s253, %s255
    %p259 = scmp.eq.s32.totalorder %s20, 0
    %p260 = por %p258, %p259
    %p261 = scmp.ne.s32.totalorder %s253, %s255
    %p262 = scmp.eq.s32.totalorder %s25, 1
    %p263 = por %p261, %p262
    %p264 = scmp.ne.s32.totalorder %s255, %s256
    %p265 = scmp.eq.s32.totalorder %s25, 0
    %p266 = por %p264, %p265
    %p267 = scmp.ne.s32.totalorder %s255, %s256
    %p268 = scmp.eq.s32.totalorder %s26, 1
    %p269 = por %p267, %p268
    %p271 = scmp.ne.s32.totalorder %s256, %s270
    %p272 = scmp.eq.s32.totalorder %s26, 0
    %p273 = por %p271, %p272
    %s275 = sadd.s32 %s274, 1
    %p278 = scmp.eq.s32.totalorder %s20, 1
    %p279 = scmp.ne.s32.totalorder %s274, %s276
    %p280 = scmp.eq.s32.totalorder %s20, 0
    %p281 = por %p279, %p280
    %p282 = scmp.ne.s32.totalorder %s274, %s276
    %p283 = scmp.eq.s32.totalorder %s25, 1
    %p284 = por %p282, %p283
    %p285 = scmp.ne.s32.totalorder %s276, %s277
    %p286 = scmp.eq.s32.totalorder %s25, 0
    %p287 = por %p285, %p286
    %p288 = scmp.ne.s32.totalorder %s276, %s277
    %p289 = scmp.eq.s32.totalorder %s26, 1
    %p290 = por %p288, %p289
    %p292 = scmp.ne.s32.totalorder %s277, %s291
    %p293 = scmp.eq.s32.totalorder %s26, 0
    %p294 = por %p292, %p293
    %s296 = sadd.s32 %s295, 1
    %p299 = scmp.eq.s32.totalorder %s20, 1
    %p300 = scmp.ne.s32.totalorder %s295, %s297
    %p301 = scmp.eq.s32.totalorder %s20, 0
    %p302 = por %p300, %p301
    %p303 = scmp.ne.s32.totalorder %s295, %s297
    %p304 = scmp.eq.s32.totalorder %s25, 1
    %p305 = por %p303, %p304
    %p306 = scmp.ne.s32.totalorder %s297, %s298
    %p307 = scmp.eq.s32.totalorder %s25, 0
    %p308 = por %p306, %p307
    %p309 = scmp.ne.s32.totalorder %s297, %s298
    %p310 = scmp.eq.s32.totalorder %s26, 1
    %p311 = por %p309, %p310
    %p313 = scmp.ne.s32.totalorder %s298, %s312
    %p314 = scmp.eq.s32.totalorder %s26, 0
    %p315 = por %p313, %p314
    %s317 = sadd.s32 %s316, 1
    %p320 = scmp.eq.s32.totalorder %s20, 1
    %p321 = scmp.ne.s32.totalorder %s316, %s318
    %p322 = scmp.eq.s32.totalorder %s20, 0
    %p323 = por %p321, %p322
    %p324 = scmp.ne.s32.totalorder %s316, %s318
    %p325 = scmp.eq.s32.totalorder %s25, 1
    %p326 = por %p324, %p325
    %p327 = scmp.ne.s32.totalorder %s318, %s319
    %p328 = scmp.eq.s32.totalorder %s25, 0
    %p329 = por %p327, %p328
    %p330 = scmp.ne.s32.totalorder %s318, %s319
    %p331 = scmp.eq.s32.totalorder %s26, 1
    %p332 = por %p330, %p331
    %p334 = scmp.ne.s32.totalorder %s319, %s333
    %p335 = scmp.eq.s32.totalorder %s26, 0
    %p336 = por %p334, %p335
    %s338 = sadd.s32 %s337, 1
    %p341 = scmp.eq.s32.totalorder %s20, 1
    %p342 = scmp.ne.s32.totalorder %s337, %s339
    %p343 = scmp.eq.s32.totalorder %s20, 0
    %p344 = por %p342, %p343
    %p345 = scmp.ne.s32.totalorder %s337, %s339
    %p346 = scmp.eq.s32.totalorder %s25, 1
    %p347 = por %p345, %p346
    %p348 = scmp.ne.s32.totalorder %s339, %s340
    %p349 = scmp.eq.s32.totalorder %s25, 0
    %p350 = por %p348, %p349
    %p351 = scmp.ne.s32.totalorder %s339, %s340
    %p352 = scmp.eq.s32.totalorder %s26, 1
    %p353 = por %p351, %p352
    %p355 = scmp.ne.s32.totalorder %s340, %s354
    %p356 = scmp.eq.s32.totalorder %s26, 0
    %p357 = por %p355, %p356
    %s358 = ssub.s32 %s27, %s39
    %s359 = ssub.s32 %s28, %s35
    %s360 = sor.u32 %s358, %s359
    %p361 = scmp.eq.s32.totalorder %s360, 0
    %s363 = sadd.s32 %s362, 1
    %s364 = scalar_select %p361, %s362, %s363
    %p367 = pneg %p361
    %p368 = scmp.eq.s32.totalorder %s20, 1
    %p369 = por %p367, %p368
    %p370 = scmp.ne.s32.totalorder %s362, %s365
    %p371 = scmp.eq.s32.totalorder %s20, 0
    %p372 = por %p370, %p371
    %p373 = scmp.ne.s32.totalorder %s362, %s365
    %p374 = scmp.eq.s32.totalorder %s25, 1
    %p375 = por %p373, %p374
    %p376 = scmp.ne.s32.totalorder %s365, %s366
    %p377 = scmp.eq.s32.totalorder %s25, 0
    %p378 = por %p376, %p377
    %p379 = scmp.ne.s32.totalorder %s365, %s366
    %p380 = scmp.eq.s32.totalorder %s26, 1
    %p381 = por %p379, %p380
    %p383 = scmp.ne.s32.totalorder %s366, %s382
    %p384 = scmp.eq.s32.totalorder %s26, 0
    %p385 = por %p383, %p384
    %p386 = scmp.le.s32.totalorder 1, %s20
    %p387 = scmp.lt.s32.totalorder %s20, 3
    %p388 = pnand %p386, %p387
    %p389 = pneg %p388
    // Predicated region
    $region9: #{transformer_decoder_forward.7} parent=5 // pred_check
      _
    $region10: #{transformer_decoder_forward.7} parent=5 // pred_check_branch
      %391 = sbr.rel (%p388) target = $region12
    $region11: #{transformer_decoder_forward.7} parent=5 // pred_region
      %s392 = ssub.s32 %s20, 1
      // Predicated region
      $region13: #{transformer_decoder_forward.7} parent=11 // pred_check
        %p393 = pneg %p161
      $region14: #{transformer_decoder_forward.7} parent=11 // pred_check_branch
        %395 = sbr.rel (%p393) target = $region16
      $region15: #{transformer_decoder_forward.7} parent=11 // pred_region
        _
      $region16: #{transformer_decoder_forward.7} parent=11 // pred_fallthru
        _
      // Predicated region
      $region17: #{transformer_decoder_forward.7} parent=11 // pred_check
        %p396 = pneg %p182
      $region18: #{transformer_decoder_forward.7} parent=11 // pred_check_branch
        %398 = sbr.rel (%p396) target = $region20
      $region19: #{transformer_decoder_forward.7} parent=11 // pred_region
        _
      $region20: #{transformer_decoder_forward.7} parent=11 // pred_fallthru
        _
      // Predicated region
      $region21: #{transformer_decoder_forward.7} parent=11 // pred_check
        %p399 = pneg %p203
      $region22: #{transformer_decoder_forward.7} parent=11 // pred_check_branch
        %401 = sbr.rel (%p399) target = $region24
      $region23: #{transformer_decoder_forward.7} parent=11 // pred_region
        _
      $region24: #{transformer_decoder_forward.7} parent=11 // pred_fallthru
        _
      // Predicated region
      $region25: #{transformer_decoder_forward.7} parent=11 // pred_check
        %p402 = pneg %p224
      $region26: #{transformer_decoder_forward.7} parent=11 // pred_check_branch
        %404 = sbr.rel (%p402) target = $region28
      $region27: #{transformer_decoder_forward.7} parent=11 // pred_region
        _
      $region28: #{transformer_decoder_forward.7} parent=11 // pred_fallthru
        _
      // Predicated region
      $region29: #{transformer_decoder_forward.7} parent=11 // pred_check
        %p405 = pneg %p245
      $region30: #{transformer_decoder_forward.7} parent=11 // pred_check_branch
        %407 = sbr.rel (%p405) target = $region32
      $region31: #{transformer_decoder_forward.7} parent=11 // pred_region
        _
      $region32: #{transformer_decoder_forward.7} parent=11 // pred_fallthru
        _
      // Predicated region
      $region33: #{transformer_decoder_forward.7} parent=11 // pred_check
        %p408 = pneg %p266
      $region34: #{transformer_decoder_forward.7} parent=11 // pred_check_branch
        %410 = sbr.rel (%p408) target = $region36
      $region35: #{transformer_decoder_forward.7} parent=11 // pred_region
        _
      $region36: #{transformer_decoder_forward.7} parent=11 // pred_fallthru
        _
      // Predicated region
      $region37: #{transformer_decoder_forward.7} parent=11 // pred_check
        %p411 = pneg %p287
      $region38: #{transformer_decoder_forward.7} parent=11 // pred_check_branch
        %413 = sbr.rel (%p411) target = $region40
      $region39: #{transformer_decoder_forward.7} parent=11 // pred_region
        _
      $region40: #{transformer_decoder_forward.7} parent=11 // pred_fallthru
        _
      // Predicated region
      $region41: #{transformer_decoder_forward.7} parent=11 // pred_check
        %p414 = pneg %p308
      $region42: #{transformer_decoder_forward.7} parent=11 // pred_check_branch
        %416 = sbr.rel (%p414) target = $region44
      $region43: #{transformer_decoder_forward.7} parent=11 // pred_region
        _
      $region44: #{transformer_decoder_forward.7} parent=11 // pred_fallthru
        _
      // Predicated region
      $region45: #{transformer_decoder_forward.7} parent=11 // pred_check
        %p417 = pneg %p329
      $region46: #{transformer_decoder_forward.7} parent=11 // pred_check_branch
        %419 = sbr.rel (%p417) target = $region48
      $region47: #{transformer_decoder_forward.7} parent=11 // pred_region
        _
      $region48: #{transformer_decoder_forward.7} parent=11 // pred_fallthru
        _
      // Predicated region
      $region49: #{transformer_decoder_forward.7} parent=11 // pred_check
        %p420 = pneg %p350
      $region50: #{transformer_decoder_forward.7} parent=11 // pred_check_branch
        %422 = sbr.rel (%p420) target = $region52
      $region51: #{transformer_decoder_forward.7} parent=11 // pred_region
        _
      $region52: #{transformer_decoder_forward.7} parent=11 // pred_fallthru
        _
    $region12: #{transformer_decoder_forward.7} parent=5 // pred_fallthru
      _
    %p423 = scmp.lt.s32.totalorder %s20, 2
    // Predicated region
    $region53: #{transformer_decoder_forward.7} parent=5 // pred_check
      %p424 = pneg %p423
    $region54: #{transformer_decoder_forward.7} parent=5 // pred_check_branch
      %426 = sbr.rel (%p424) target = $region56
    $region55: #{transformer_decoder_forward.7} parent=5 // pred_region
      // Predicated region
      $region57: #{transformer_decoder_forward.7} parent=55 // pred_check
        %p427 = pneg %p54
      $region58: #{transformer_decoder_forward.7} parent=55 // pred_check_branch
        %429 = sbr.rel (%p427) target = $region60
      $region59: #{transformer_decoder_forward.7} parent=55 // pred_region
        %p430 = scmp.lt.s32.totalorder %s27, 1
        %s431 = scalar_select %p430, %s27, 1
        %p432 = scmp.lt.s32.totalorder %s28, 0
        %s433 = scalar_select %p432, %s28, 0
        %s434 = sadd.s32 %s433, %s431
        %s435 = smul.addr %s434, 8
        %s436 = scalar_lea.vmem %s0, %s435
      $region60: #{transformer_decoder_forward.7} parent=55 // pred_fallthru
        _
      // Predicated region
      $region61: #{transformer_decoder_forward.7} parent=55 // pred_check
        %p437 = pneg %p82
      $region62: #{transformer_decoder_forward.7} parent=55 // pred_check_branch
        %439 = sbr.rel (%p437) target = $region64
      $region63: #{transformer_decoder_forward.7} parent=55 // pred_region
        %p440 = scmp.lt.s32.totalorder %s27, 1
        %s441 = scalar_select %p440, %s27, 1
        %p442 = scmp.lt.s32.totalorder %s28, 0
        %s443 = scalar_select %p442, %s28, 0
        %s444 = sadd.s32 %s443, %s441
        %s445 = smul.addr %s444, 8
        %s446 = scalar_lea.vmem %s1, %s445
      $region64: #{transformer_decoder_forward.7} parent=55 // pred_fallthru
        _
      // Predicated region
      $region65: #{transformer_decoder_forward.7} parent=55 // pred_check
        %p447 = pneg %p108
      $region66: #{transformer_decoder_forward.7} parent=55 // pred_check_branch
        %449 = sbr.rel (%p447) target = $region68
      $region67: #{transformer_decoder_forward.7} parent=55 // pred_region
        %p450 = scmp.lt.s32.totalorder %s27, 1
        %s451 = scalar_select %p450, %s27, 1
        %s452 = smul.addr %s451, 2
        %s453 = smul.addr %s452, 8
        %s454 = scalar_lea.vmem %s2, %s453
      $region68: #{transformer_decoder_forward.7} parent=55 // pred_fallthru
        _
      // Predicated region
      $region69: #{transformer_decoder_forward.7} parent=55 // pred_check
        %p455 = pneg %p134
      $region70: #{transformer_decoder_forward.7} parent=55 // pred_check_branch
        %457 = sbr.rel (%p455) target = $region72
      $region71: #{transformer_decoder_forward.7} parent=55 // pred_region
        %p458 = scmp.lt.s32.totalorder %s27, 1
        %s459 = scalar_select %p458, %s27, 1
        %s460 = smul.addr %s459, 2
        %s461 = smul.addr %s460, 8
        %s462 = scalar_lea.vmem %s3, %s461
      $region72: #{transformer_decoder_forward.7} parent=55 // pred_fallthru
        _
    $region56: #{transformer_decoder_forward.7} parent=5 // pred_fallthru
      _
    %p463 = scmp.le.s32.totalorder 1, %s20
    %p464 = scmp.lt.s32.totalorder %s20, 3
    %p465 = pnand %p463, %p464
    %p466 = pneg %p465
    // Predicated region
    $region73: #{transformer_decoder_forward.7} parent=5 // pred_check
      _
    $region74: #{transformer_decoder_forward.7} parent=5 // pred_check_branch
      %468 = sbr.rel (%p465) target = $region76
    $region75: #{transformer_decoder_forward.7} parent=5 // pred_region
      %s469 = ssub.s32 %s20, 1
      %p470 = scmp.lt.s32.totalorder %s29, 1
      %s471 = scalar_select %p470, %s29, 1
      %p472 = scmp.lt.s32.totalorder %s30, 0
      %s473 = scalar_select %p472, %s30, 0
      %s474 = sadd.s32 %s473, %s471
      %s475 = smul.addr %s474, 8
      %s476 = scalar_lea.vmem %s0, %s475
      %p477 = pneg %p60
      %p478 = pneg %p57
      %p479 = scmp.lt.s32.totalorder %s29, 1
      %s480 = scalar_select %p479, %s29, 1
      %p481 = scmp.lt.s32.totalorder %s30, 0
      %s482 = scalar_select %p481, %s30, 0
      %s483 = sadd.s32 %s482, %s480
      %s484 = smul.addr %s483, 8
      %s485 = scalar_lea.vmem %s1, %s484
      %p486 = pneg %p88
      %p487 = pneg %p85
      %p488 = scmp.lt.s32.totalorder %s29, 1
      %s489 = scalar_select %p488, %s29, 1
      %s490 = smul.addr %s489, 2
      %s491 = smul.addr %s490, 8
      %s492 = scalar_lea.vmem %s2, %s491
      %p493 = pneg %p114
      %p494 = pneg %p111
      %p495 = scmp.lt.s32.totalorder %s29, 1
      %s496 = scalar_select %p495, %s29, 1
      %s497 = smul.addr %s496, 2
      %s498 = smul.addr %s497, 8
      %s499 = scalar_lea.vmem %s3, %s498
      %p500 = pneg %p140
      %p501 = pneg %p137
      %p502 = pneg %p161
      %p503 = pneg %p158
      %p504 = pneg %p182
      %p505 = pneg %p179
      %p506 = pneg %p203
      %p507 = pneg %p200
      %p508 = pneg %p224
      %p509 = pneg %p221
      %p510 = pneg %p245
      %p511 = pneg %p242
      %p512 = pneg %p266
      %p513 = pneg %p263
      %p514 = pneg %p287
      %p515 = pneg %p284
      %p516 = pneg %p308
      %p517 = pneg %p305
      %p518 = pneg %p329
      %p519 = pneg %p326
      %p520 = pneg %p350
      %p521 = pneg %p347
      %p522 = pneg %p378
      %p523 = pneg %p375
      %p524 = scmp.lt.s32.totalorder %s29, 1
      %s525 = scalar_select %p524, %s29, 1
      %p526 = scmp.lt.s32.totalorder %s30, 0
      %s527 = scalar_select %p526, %s30, 0
      %s528 = sadd.s32 %s527, %s525
      %s529 = smul.addr %s528, 8
      %s530 = scalar_lea.vmem %s14, %s529
      %p531 = scmp.lt.s32.totalorder %s29, 1
      %s532 = scalar_select %p531, %s29, 1
      %p533 = scmp.lt.s32.totalorder %s30, 0
      %s534 = scalar_select %p533, %s30, 0
      %s535 = sadd.s32 %s534, %s532
      %s536 = smul.addr %s535, 8
      %s537 = scalar_lea.vmem %s0, %s536
      %p538 = scmp.lt.s32.totalorder %s29, 1
      %s539 = scalar_select %p538, %s29, 1
      %p540 = scmp.lt.s32.totalorder %s30, 0
      %s541 = scalar_select %p540, %s30, 0
      %s542 = sadd.s32 %s541, %s539
      %s543 = smul.addr %s542, 8
      %s544 = scalar_lea.vmem %s1, %s543
      %p545 = scmp.lt.s32.totalorder %s29, 1
      %s546 = scalar_select %p545, %s29, 1
      %s547 = smul.addr %s546, 2
      %s548 = smul.addr %s547, 8
      %s549 = scalar_lea.vmem %s2, %s548
      %p550 = scmp.lt.s32.totalorder %s29, 1
      %s551 = scalar_select %p550, %s29, 1
      %s552 = smul.addr %s551, 2
      %s553 = smul.addr %s552, 8
      %s554 = scalar_lea.vmem %s3, %s553
      %p555 = scmp.lt.s32.totalorder %s29, 1
      %s556 = scalar_select %p555, %s29, 1
      %p557 = scmp.lt.s32.totalorder %s30, 0
      %s558 = scalar_select %p557, %s30, 0
      %s559 = sadd.s32 %s558, %s556
      %s560 = smul.addr %s559, 8
      %s561 = scalar_lea.vmem %s14, %s560
      %v563 = vld [vmem:[%s537] sm:$0xff]
      %v564 = vld [vmem:[%s544] sm:$0xff]
      %v565 = vadd.f32 %v563, %v564
      %v566 = vld [vmem:[%s549] sm:$0xff]
      %v567 = vld [vmem:[%s549 + $0x8] sm:$0xff]
      %v568 = vld [vmem:[%s554] sm:$0xff]
      %v569 = vld [vmem:[%s554 + $0x8] sm:$0xff]
      %v570 = vadd.f32 %v566, %v568
      %v571 = vadd.f32 %v567, %v569
      %v572 = vld [vmem:[%s4] sm:$0xf]
      %v573 = vld [vmem:[%s4 + $0x4] sm:$0xf]
      %v574 = vld [vmem:[%s4 + $0x8] sm:$0xf]
      %v575 = vld [vmem:[%s4 + $0xc] sm:$0xf]
      %v576 = vld [vmem:[%s4 + $0x10] sm:$0xf]
      %v577 = vld [vmem:[%s4 + $0x14] sm:$0xf]
      %v578 = vld [vmem:[%s4 + $0x18] sm:$0xf]
      %v579 = vld [vmem:[%s4 + $0x1c] sm:$0xf]
      %v580 = vpack.c.bf16 %v565, %v565
      %v581 = vld [vmem:[%s5] sm:$0x1]
      %v583 = vperm.slane %v581, 0
      %v593 = vunpack.c.l.b16 %v572
      %v594 = vunpack.c.l.b16 %v573
      %v595 = vunpack.c.l.b16 %v574
      %v596 = vunpack.c.l.b16 %v575
      %v597 = vunpack.c.l.b16 %v576
      %v598 = vunpack.c.l.b16 %v577
      %v599 = vunpack.c.l.b16 %v578
      %v600 = vunpack.c.l.b16 %v579
      %v601 = vpack.c.b16 %v594, %v593
      %v602 = vpack.c.b16 %v596, %v595
      %v603 = vpack.c.b16 %v598, %v597
      %v604 = vpack.c.b16 %v600, %v599
      %vm609 = vcmask 523264
      %v611 = vsel %vm609, %v580, 0
      %613 = vmatpush.bf16.msra.mxu0 0
      %614 = vmatpush.bf16.msra.mxu0 0
      %615 = vmatpush.bf16.msra.mxu0 0
      %616 = vmatpush.bf16.msra.mxu0 0
      %617 = vmatpush.bf16.msra.mxu0 %v604
      %618 = vmatpush.bf16.msra.mxu0 %v603
      %619 = vmatpush.bf16.msra.mxu0 %v602
      %620 = vmatpush.bf16.msra.mxu0 %v601
      %621 = vmatmul.bf16.gmra.mxu0 %v611
      %v622 = vpop.f32.mrf.mxu0
      %v623 = vadd.f32 %v583, %v622
      %v624 = vpop.f32.mrf.mxu0
      %625 = vdwg.mxu0
      %v626 = vld [vmem:[%s6] sm:$0xf]
      %v627 = vld [vmem:[%s6 + $0x4] sm:$0xf]
      %v628 = vld [vmem:[%s6 + $0x8] sm:$0xf]
      %v629 = vld [vmem:[%s6 + $0xc] sm:$0xf]
      %v630 = vld [vmem:[%s6 + $0x10] sm:$0xf]
      %v631 = vld [vmem:[%s6 + $0x14] sm:$0xf]
      %v632 = vld [vmem:[%s6 + $0x18] sm:$0xf]
      %v633 = vld [vmem:[%s6 + $0x1c] sm:$0xf]
      %v634 = vpack.c.bf16 %v571, %v570
      %v635 = vld [vmem:[%s7] sm:$0x1]
      %v637 = vperm.slane %v635, 0
      %v647 = vunpack.c.l.b16 %v626
      %v648 = vunpack.c.l.b16 %v627
      %v649 = vunpack.c.l.b16 %v628
      %v650 = vunpack.c.l.b16 %v629
      %v651 = vunpack.c.l.b16 %v630
      %v652 = vunpack.c.l.b16 %v631
      %v653 = vunpack.c.l.b16 %v632
      %v654 = vunpack.c.l.b16 %v633
      %v655 = vpack.c.b16 %v648, %v647
      %v656 = vpack.c.b16 %v650, %v649
      %v657 = vpack.c.b16 %v652, %v651
      %v658 = vpack.c.b16 %v654, %v653
      %v664 = vsel %vm609, %v634, 0
      %666 = vmatpush.bf16.msra.mxu0 0
      %667 = vmatpush.bf16.msra.mxu0 0
      %668 = vmatpush.bf16.msra.mxu0 0
      %669 = vmatpush.bf16.msra.mxu0 0
      %670 = vmatpush.bf16.msra.mxu0 %v658
      %671 = vmatpush.bf16.msra.mxu0 %v657
      %672 = vmatpush.bf16.msra.mxu0 %v656
      %673 = vmatpush.bf16.msra.mxu0 %v655
      %674 = vmatmul.bf16.gmra.mxu0 %v664
      %v675 = vpop.f32.mrf.mxu0
      %v676 = vadd.f32 %v637, %v675
      %v677 = vpop.f32.mrf.mxu0
      %v678 = vadd.f32 %v637, %v677
      %679 = vdwg.mxu0
      %v680 = vld [vmem:[%s8] sm:$0xf]
      %v681 = vld [vmem:[%s8 + $0x4] sm:$0xf]
      %v682 = vld [vmem:[%s8 + $0x8] sm:$0xf]
      %v683 = vld [vmem:[%s8 + $0xc] sm:$0xf]
      %v684 = vld [vmem:[%s8 + $0x10] sm:$0xf]
      %v685 = vld [vmem:[%s8 + $0x14] sm:$0xf]
      %v686 = vld [vmem:[%s8 + $0x18] sm:$0xf]
      %v687 = vld [vmem:[%s8 + $0x1c] sm:$0xf]
      %v688 = vpack.c.bf16 %v567, %v566
      %v689 = vld [vmem:[%s9] sm:$0x1]
      %v691 = vperm.slane %v689, 0
      %v701 = vunpack.c.l.b16 %v680
      %v702 = vunpack.c.l.b16 %v681
      %v703 = vunpack.c.l.b16 %v682
      %v704 = vunpack.c.l.b16 %v683
      %v705 = vunpack.c.l.b16 %v684
      %v706 = vunpack.c.l.b16 %v685
      %v707 = vunpack.c.l.b16 %v686
      %v708 = vunpack.c.l.b16 %v687
      %v709 = vpack.c.b16 %v702, %v701
      %v710 = vpack.c.b16 %v704, %v703
      %v711 = vpack.c.b16 %v706, %v705
      %v712 = vpack.c.b16 %v708, %v707
      %v718 = vsel %vm609, %v688, 0
      %720 = vmatpush.bf16.msra.mxu0 0
      %721 = vmatpush.bf16.msra.mxu0 0
      %722 = vmatpush.bf16.msra.mxu0 0
      %723 = vmatpush.bf16.msra.mxu0 0
      %724 = vmatpush.bf16.msra.mxu0 %v712
      %725 = vmatpush.bf16.msra.mxu0 %v711
      %726 = vmatpush.bf16.msra.mxu0 %v710
      %727 = vmatpush.bf16.msra.mxu0 %v709
      %728 = vmatmul.bf16.gmra.mxu0 %v718
      %v729 = vpop.f32.mrf.mxu0
      %v730 = vadd.f32 %v691, %v729
      %v731 = vpop.f32.mrf.mxu0
      %v732 = vadd.f32 %v691, %v731
      %733 = vdwg.mxu0
      %v734 = vpack.c.bf16 %v730, %v730
      %v735 = vpack.c.bf16 %v732, %v732
      %v736 = vpack.c.bf16 %v623, %v623
      %v737 = vpack.c.bf16 %v678, %v676
      %vm738 = vcmask 130048
      %v740 = vsel %vm738, %v736, 0
      %v743 = vsel %vm738, %v737, 0
      %745 = vmatpush.bf16.xpose.msra.mxu0 0
      %746 = vmatpush.bf16.xpose.msra.mxu0 0
      %747 = vmatpush.bf16.xpose.msra.mxu0 0
      %748 = vmatpush.bf16.xpose.msra.mxu0 0
      %749 = vmatpush.bf16.xpose.msra.mxu0 0
      %750 = vmatpush.bf16.xpose.msra.mxu0 0
      %751 = vmatpush.bf16.xpose.msra.mxu0 0
      %752 = vmatpush.bf16.xpose.msra.mxu0 %v743
      %753 = vmatmul.bf16.gmra.mxu0 %v740
      %v754 = vpop.f32.mrf.mxu0
      %v755 = vadd.f32 0.0, %v754
      %v756 = vpop.f32.mrf.mxu0
      %757 = vdwg.mxu0
      %v758 = vmul.f32 %v755, 0.25
      %v759 = vsel %vm738, %v758, -inf
      %760 = vmax.xlane.f32.xlu0 %v759
      %v761 = vpop.xlane.xlu0 %760
      %v762 = vsub.f32 %v758, %v761
      %v763 = vmul.f32 %v762, 1.442695
      %v764 = vpow.pop %v763
      %v765 = vsel %vm738, %v764, 0.0
      %766 = vadd.xlane.f32.xlu0 %v765
      %v767 = vpop.xlane.xlu0 %766
      %v768 = vpack.c.bf16 %v764, %v764
      %v771 = vunpack.c.l.b16 %v734
      %v772 = vunpack.c.l.b16 %v735
      %v773 = vpack.c.b16 %v772, %v771
      %v776 = vsel %vm738, %v768, 0
      %778 = vmatpush.bf16.msra.mxu0 0
      %779 = vmatpush.bf16.msra.mxu0 0
      %780 = vmatpush.bf16.msra.mxu0 0
      %781 = vmatpush.bf16.msra.mxu0 0
      %782 = vmatpush.bf16.msra.mxu0 0
      %783 = vmatpush.bf16.msra.mxu0 0
      %784 = vmatpush.bf16.msra.mxu0 0
      %785 = vmatpush.bf16.msra.mxu0 %v773
      %786 = vmatmul.bf16.gmra.mxu0 %v776
      %v787 = vpop.f32.mrf.mxu0
      %v788 = vadd.f32 0.0, %v787
      %v789 = vpop.f32.mrf.mxu0
      %790 = vdwg.mxu0
      %v791 = vrcp.pop %v767
      %v792 = vmul.f32 %v788, %v791
      %794 = vrot.lane.b32.xlu0 %v736, 112
      %v795 = vpop.permute.xlu0 %794
      %797 = vrot.lane.b32.xlu0 %v737, 112
      %v798 = vpop.permute.xlu0 %797
      %v800 = vsel %vm738, %v795, 0
      %v803 = vsel %vm738, %v798, 0
      %805 = vmatpush.bf16.xpose.msra.mxu0 0
      %806 = vmatpush.bf16.xpose.msra.mxu0 0
      %807 = vmatpush.bf16.xpose.msra.mxu0 0
      %808 = vmatpush.bf16.xpose.msra.mxu0 0
      %809 = vmatpush.bf16.xpose.msra.mxu0 0
      %810 = vmatpush.bf16.xpose.msra.mxu0 0
      %811 = vmatpush.bf16.xpose.msra.mxu0 0
      %812 = vmatpush.bf16.xpose.msra.mxu0 %v803
      %813 = vmatmul.bf16.gmra.mxu0 %v800
      %v814 = vpop.f32.mrf.mxu0
      %v815 = vadd.f32 0.0, %v814
      %v816 = vpop.f32.mrf.mxu0
      %817 = vdwg.mxu0
      %v818 = vmul.f32 %v815, 0.25
      %v819 = vsel %vm738, %v818, -inf
      %820 = vmax.xlane.f32.xlu0 %v819
      %v821 = vpop.xlane.xlu0 %820
      %v822 = vsub.f32 %v818, %v821
      %v823 = vmul.f32 %v822, 1.442695
      %v824 = vpow.pop %v823
      %v825 = vsel %vm738, %v824, 0.0
      %826 = vadd.xlane.f32.xlu0 %v825
      %v827 = vpop.xlane.xlu0 %826
      %v828 = vpack.c.bf16 %v824, %v824
      %829 = vrot.lane.b32.xlu0 %v773, 112
      %v830 = vpop.permute.xlu0 %829
      %v833 = vsel %vm738, %v828, 0
      %835 = vmatpush.bf16.msra.mxu0 0
      %836 = vmatpush.bf16.msra.mxu0 0
      %837 = vmatpush.bf16.msra.mxu0 0
      %838 = vmatpush.bf16.msra.mxu0 0
      %839 = vmatpush.bf16.msra.mxu0 0
      %840 = vmatpush.bf16.msra.mxu0 0
      %841 = vmatpush.bf16.msra.mxu0 0
      %842 = vmatpush.bf16.msra.mxu0 %v830
      %843 = vmatmul.bf16.gmra.mxu0 %v833
      %v844 = vpop.f32.mrf.mxu0
      %v845 = vadd.f32 0.0, %v844
      %v846 = vpop.f32.mrf.mxu0
      %847 = vdwg.mxu0
      %v848 = vrcp.pop %v827
      %v849 = vmul.f32 %v845, %v848
      %850 = vrot.lane.b32.xlu0 %v736, 96
      %v851 = vpop.permute.xlu0 %850
      %852 = vrot.lane.b32.xlu0 %v737, 96
      %v853 = vpop.permute.xlu0 %852
      %v855 = vsel %vm738, %v851, 0
      %v858 = vsel %vm738, %v853, 0
      %860 = vmatpush.bf16.xpose.msra.mxu0 0
      %861 = vmatpush.bf16.xpose.msra.mxu0 0
      %862 = vmatpush.bf16.xpose.msra.mxu0 0
      %863 = vmatpush.bf16.xpose.msra.mxu0 0
      %864 = vmatpush.bf16.xpose.msra.mxu0 0
      %865 = vmatpush.bf16.xpose.msra.mxu0 0
      %866 = vmatpush.bf16.xpose.msra.mxu0 0
      %867 = vmatpush.bf16.xpose.msra.mxu0 %v858
      %868 = vmatmul.bf16.gmra.mxu0 %v855
      %v869 = vpop.f32.mrf.mxu0
      %v870 = vadd.f32 0.0, %v869
      %v871 = vpop.f32.mrf.mxu0
      %872 = vdwg.mxu0
      %v873 = vmul.f32 %v870, 0.25
      %v874 = vsel %vm738, %v873, -inf
      %875 = vmax.xlane.f32.xlu0 %v874
      %v876 = vpop.xlane.xlu0 %875
      %v877 = vsub.f32 %v873, %v876
      %v878 = vmul.f32 %v877, 1.442695
      %v879 = vpow.pop %v878
      %v880 = vsel %vm738, %v879, 0.0
      %881 = vadd.xlane.f32.xlu0 %v880
      %v882 = vpop.xlane.xlu0 %881
      %v883 = vpack.c.bf16 %v879, %v879
      %884 = vrot.lane.b32.xlu0 %v773, 96
      %v885 = vpop.permute.xlu0 %884
      %v888 = vsel %vm738, %v883, 0
      %890 = vmatpush.bf16.msra.mxu0 0
      %891 = vmatpush.bf16.msra.mxu0 0
      %892 = vmatpush.bf16.msra.mxu0 0
      %893 = vmatpush.bf16.msra.mxu0 0
      %894 = vmatpush.bf16.msra.mxu0 0
      %895 = vmatpush.bf16.msra.mxu0 0
      %896 = vmatpush.bf16.msra.mxu0 0
      %897 = vmatpush.bf16.msra.mxu0 %v885
      %898 = vmatmul.bf16.gmra.mxu0 %v888
      %v899 = vpop.f32.mrf.mxu0
      %v900 = vadd.f32 0.0, %v899
      %v901 = vpop.f32.mrf.mxu0
      %902 = vdwg.mxu0
      %v903 = vrcp.pop %v882
      %v904 = vmul.f32 %v900, %v903
      %905 = vrot.lane.b32.xlu0 %v736, 80
      %v906 = vpop.permute.xlu0 %905
      %907 = vrot.lane.b32.xlu0 %v737, 80
      %v908 = vpop.permute.xlu0 %907
      %v910 = vsel %vm738, %v906, 0
      %v913 = vsel %vm738, %v908, 0
      %915 = vmatpush.bf16.xpose.msra.mxu0 0
      %916 = vmatpush.bf16.xpose.msra.mxu0 0
      %917 = vmatpush.bf16.xpose.msra.mxu0 0
      %918 = vmatpush.bf16.xpose.msra.mxu0 0
      %919 = vmatpush.bf16.xpose.msra.mxu0 0
      %920 = vmatpush.bf16.xpose.msra.mxu0 0
      %921 = vmatpush.bf16.xpose.msra.mxu0 0
      %922 = vmatpush.bf16.xpose.msra.mxu0 %v913
      %923 = vmatmul.bf16.gmra.mxu0 %v910
      %v924 = vpop.f32.mrf.mxu0
      %v925 = vadd.f32 0.0, %v924
      %v926 = vpop.f32.mrf.mxu0
      %927 = vdwg.mxu0
      %v928 = vmul.f32 %v925, 0.25
      %v929 = vsel %vm738, %v928, -inf
      %930 = vmax.xlane.f32.xlu0 %v929
      %v931 = vpop.xlane.xlu0 %930
      %v932 = vsub.f32 %v928, %v931
      %v933 = vmul.f32 %v932, 1.442695
      %v934 = vpow.pop %v933
      %v935 = vsel %vm738, %v934, 0.0
      %936 = vadd.xlane.f32.xlu0 %v935
      %v937 = vpop.xlane.xlu0 %936
      %v938 = vpack.c.bf16 %v934, %v934
      %939 = vrot.lane.b32.xlu0 %v773, 80
      %v940 = vpop.permute.xlu0 %939
      %v943 = vsel %vm738, %v938, 0
      %945 = vmatpush.bf16.msra.mxu0 0
      %946 = vmatpush.bf16.msra.mxu0 0
      %947 = vmatpush.bf16.msra.mxu0 0
      %948 = vmatpush.bf16.msra.mxu0 0
      %949 = vmatpush.bf16.msra.mxu0 0
      %950 = vmatpush.bf16.msra.mxu0 0
      %951 = vmatpush.bf16.msra.mxu0 0
      %952 = vmatpush.bf16.msra.mxu0 %v940
      %953 = vmatmul.bf16.gmra.mxu0 %v943
      %v954 = vpop.f32.mrf.mxu0
      %v955 = vadd.f32 0.0, %v954
      %v956 = vpop.f32.mrf.mxu0
      %957 = vdwg.mxu0
      %v958 = vrcp.pop %v937
      %v959 = vmul.f32 %v955, %v958
      %961 = vrot.lane.b32.xlu0 %v849, 16
      %v962 = vpop.permute.xlu0 %961
      %965 = vrot.lane.b32.xlu0 %v904, 32
      %v966 = vpop.permute.xlu0 %965
      %969 = vrot.lane.b32.xlu0 %v959, 48
      %v970 = vpop.permute.xlu0 %969
      %v972 = vsel %vm738, %v792, %v962
      %vm973 = vcmask 261120
      %v974 = vsel %vm973, %v972, %v966
      %vm975 = vcmask 392192
      %v976 = vsel %vm975, %v974, %v970
      %v977 = vld [vmem:[%s10] sm:$0xf]
      %v978 = vld [vmem:[%s10 + $0x4] sm:$0xf]
      %v979 = vld [vmem:[%s10 + $0x8] sm:$0xf]
      %v980 = vld [vmem:[%s10 + $0xc] sm:$0xf]
      %v981 = vld [vmem:[%s10 + $0x10] sm:$0xf]
      %v982 = vld [vmem:[%s10 + $0x14] sm:$0xf]
      %v983 = vld [vmem:[%s10 + $0x18] sm:$0xf]
      %v984 = vld [vmem:[%s10 + $0x1c] sm:$0xf]
      %v985 = vpack.c.bf16 %v976, %v976
      %v986 = vld [vmem:[%s11] sm:$0x1]
      %v988 = vperm.slane %v986, 0
      %v998 = vunpack.c.l.b16 %v977
      %v999 = vunpack.c.l.b16 %v978
      %v1000 = vunpack.c.l.b16 %v979
      %v1001 = vunpack.c.l.b16 %v980
      %v1002 = vunpack.c.l.b16 %v981
      %v1003 = vunpack.c.l.b16 %v982
      %v1004 = vunpack.c.l.b16 %v983
      %v1005 = vunpack.c.l.b16 %v984
      %v1006 = vpack.c.b16 %v999, %v998
      %v1007 = vpack.c.b16 %v1001, %v1000
      %v1008 = vpack.c.b16 %v1003, %v1002
      %v1009 = vpack.c.b16 %v1005, %v1004
      %v1015 = vsel %vm609, %v985, 0
      %1017 = vmatpush.bf16.msra.mxu0 0
      %1018 = vmatpush.bf16.msra.mxu0 0
      %1019 = vmatpush.bf16.msra.mxu0 0
      %1020 = vmatpush.bf16.msra.mxu0 0
      %1021 = vmatpush.bf16.msra.mxu0 %v1009
      %1022 = vmatpush.bf16.msra.mxu0 %v1008
      %1023 = vmatpush.bf16.msra.mxu0 %v1007
      %1024 = vmatpush.bf16.msra.mxu0 %v1006
      %1025 = vmatmul.bf16.gmra.mxu0 %v1015
      %v1026 = vpop.f32.mrf.mxu0
      %v1027 = vadd.f32 %v988, %v1026
      %v1028 = vpop.f32.mrf.mxu0
      %1029 = vdwg.mxu0
      %v1030 = vadd.f32 %v563, %v1027
      %v1031 = vld [vmem:[%s12] sm:$0x1]
      %v1032 = vld [vmem:[%s13] sm:$0x1]
      %v1033 = vsel %vm609, %v1030, 0.0
      %1034 = vadd.xlane.f32.xlu0 %v1033
      %v1035 = vpop.xlane.xlu0 %1034
      %v1036 = vrcp.pop 64.0
      %v1037 = vmul.f32 64.0, %v1036
      %v1038 = vsub.f32 1.0, %v1037
      %v1039 = vmul.f32 %v1036, %v1038
      %v1040 = vadd.f32 %v1036, %v1039
      %vm1041 = vweird.f32 %v1036
      %v1042 = vsel %vm1041, %v1036, %v1040
      %v1043 = vmul.f32 %v1035, %v1042
      %v1044 = vsub.f32 %v1030, %v1043
      %v1045 = vmul.f32 %v1044, %v1044
      %v1046 = vsel %vm609, %v1045, 0.0
      %1047 = vadd.xlane.f32.xlu0 %v1046
      %v1048 = vpop.xlane.xlu0 %1047
      %v1049 = vmul.f32 %v1048, %v1042
      %v1050 = vadd.f32 %v1049, 1e-05
      %v1051 = vrsqrt.pop %v1050
      %v1052 = vmul.f32 %v1051, %v1050
      %v1053 = vmul.f32 %v1052, %v1051
      %v1054 = vmul.f32 0.5, %v1053
      %v1055 = vsub.f32 1.5, %v1054
      %v1056 = vmul.f32 %v1051, %v1055
      %vm1057 = vweird.f32 %v1050
      %vm1058 = vweird.f32 %v1051
      %vm1059 = vmor %vm1057, %vm1058
      %v1060 = vsel %vm1059, %v1051, %v1056
      %v1061 = vmul.f32 %v1044, %v1060
      %v1063 = vperm.slane %v1031, 0
      %v1065 = vmul.f32 %v1061, %v1063
      %v1067 = vperm.slane %v1032, 0
      %v1069 = vadd.f32 %v1065, %v1067
      %1070 = vst.msk [vmem:[%s561] sm:$0xff] %vm609, %v1069
      %p1071 = scmp.lt.s32.totalorder %s29, 1
      %s1072 = scalar_select %p1071, %s29, 1
      %p1073 = scmp.lt.s32.totalorder %s30, 0
      %s1074 = scalar_select %p1073, %s30, 0
      %s1075 = sadd.s32 %s1074, %s1072
      %s1076 = smul.addr %s1075, 8
      %s1077 = scalar_lea.vmem %s14, %s1076
      // Predicated region
      $region77: #{transformer_decoder_forward.7} parent=75 // pred_check
        %p1078 = pneg %p375
      $region78: #{transformer_decoder_forward.7} parent=75 // pred_check_branch
        %1080 = sbr.rel (%p1078) target = $region80
      $region79: #{transformer_decoder_forward.7} parent=75 // pred_region
        _
      $region80: #{transformer_decoder_forward.7} parent=75 // pred_fallthru
        _
    $region76: #{transformer_decoder_forward.7} parent=5 // pred_fallthru
      _
    %p1081 = scmp.le.s32.totalorder 2, %s20
    // Predicated region
    $region81: #{transformer_decoder_forward.7} parent=5 // pred_check
      %p1082 = pneg %p1081
    $region82: #{transformer_decoder_forward.7} parent=5 // pred_check_branch
      %1084 = sbr.rel (%p1082) target = $region84
    $region83: #{transformer_decoder_forward.7} parent=5 // pred_region
      %s1085 = ssub.s32 %s20, 2
      // Predicated region
      $region85: #{transformer_decoder_forward.7} parent=83 // pred_check
        %p1086 = pneg %p381
      $region86: #{transformer_decoder_forward.7} parent=83 // pred_check_branch
        %1088 = sbr.rel (%p1086) target = $region88
      $region87: #{transformer_decoder_forward.7} parent=83 // pred_region
        %p1089 = scmp.lt.s32.totalorder %s31, 1
        %s1090 = scalar_select %p1089, %s31, 1
        %p1091 = scmp.lt.s32.totalorder %s32, 0
        %s1092 = scalar_select %p1091, %s32, 0
        %s1093 = sadd.s32 %s1092, %s1090
        %s1094 = smul.addr %s1093, 8
        %s1095 = scalar_lea.vmem %s14, %s1094
      $region88: #{transformer_decoder_forward.7} parent=83 // pred_fallthru
        _
    $region84: #{transformer_decoder_forward.7} parent=5 // pred_fallthru
      _
  $region6: #{transformer_decoder_forward.7} parent=0 // loop_footer
    %s24 = sadd.s32 1, %s20
  $region7: #{transformer_decoder_forward.7} parent=0 // loop_footer_branch
    %19 = sbr.rel target = $region3
  $region8: #{transformer_decoder_forward.7} parent=0 // loop_exit
    _

// kernel: transformer_decoder_forward.6
$region0: #{transformer_decoder_forward.6}
  #allocation0 [shape = 'u32[]', space=smem, size = 0x4, offset = 0x4, fixed_abs, tag = 'smem constant byte address 0x4 - core index']
  #allocation1 [shape = 'u32[72,128]{1,0:T(1,128)}', space=vmem, size = 0x9000, scoped, tag = 'internal scratch']
  %s0 = inlined_call_operand.vmem [shape: f32[2,8,64], index: 0, kind: input, shape index: {}]
  %s1 = inlined_call_operand.vmem [shape: f32[2,8,64], index: 1, kind: input, shape index: {}]
  %s2 = inlined_call_operand.vmem [shape: bf16[64,64], index: 2, kind: input, shape index: {}]
  %s3 = inlined_call_operand.vmem [shape: f32[1,64], index: 3, kind: input, shape index: {}]
  %s4 = inlined_call_operand.vmem [shape: bf16[64,64], index: 4, kind: input, shape index: {}]
  %s5 = inlined_call_operand.vmem [shape: f32[1,64], index: 5, kind: input, shape index: {}]
  %s6 = inlined_call_operand.vmem [shape: bf16[64,64], index: 6, kind: input, shape index: {}]
  %s7 = inlined_call_operand.vmem [shape: f32[1,64], index: 7, kind: input, shape index: {}]
  %s8 = inlined_call_operand.vmem [shape: bf16[64,64], index: 8, kind: input, shape index: {}]
  %s9 = inlined_call_operand.vmem [shape: f32[1,64], index: 9, kind: input, shape index: {}]
  %s10 = inlined_call_operand.vmem [shape: f32[1,64], index: 10, kind: input, shape index: {}]
  %s11 = inlined_call_operand.vmem [shape: f32[1,64], index: 11, kind: input, shape index: {}]
  %s12 = inlined_call_operand.vmem [shape: f32[2,8,64], index: 12, kind: output, shape index: {}]
  %s13 = sld [smem:[#allocation0]]
  $region81: #{transformer_decoder_forward.6} parent=0
    _
  %s15 = ssub.s32 1, %s13
  %s16 = scalar_select 0, %s15, %s13
  loop: start=0, step=1, limit=4
  $region2: #{transformer_decoder_forward.6} parent=0 // loop_pre_header
    _
  $region3: #{transformer_decoder_forward.6} parent=0 // loop_header
    %s18 = sphi 0, %s22
    %p19 = scmp.ge.s32.totalorder %s18, 4
    %s25 = sphi 0, %s37
    %s26 = sphi 0, %s33
    %s27 = sphi 0, %s25
    %s28 = sphi 0, %s26
    %s29 = sphi 0, %s27
    %s30 = sphi 0, %s28
    %s42 = sphi 0, %s44
    %s45 = sphi 0, %s42
    %s46 = sphi 0, %s45
    %s62 = sphi 0, %s46
    %s70 = sphi 0, %s72
    %s73 = sphi 0, %s70
    %s74 = sphi 0, %s73
    %s90 = sphi 0, %s74
    %s94 = sphi 0, %s94
    %s96 = sphi 0, %s94
    %s97 = sphi 0, %s96
    %s111 = sphi 0, %s97
    %s115 = sphi 0, %s115
    %s117 = sphi 0, %s115
    %s118 = sphi 0, %s117
    %s132 = sphi 0, %s118
    %s136 = sphi 0, %s136
    %s138 = sphi 0, %s136
    %s139 = sphi 0, %s138
    %s153 = sphi 0, %s139
    %s157 = sphi 0, %s157
    %s159 = sphi 0, %s157
    %s160 = sphi 0, %s159
    %s174 = sphi 0, %s160
    %s178 = sphi 0, %s178
    %s180 = sphi 0, %s178
    %s181 = sphi 0, %s180
    %s195 = sphi 0, %s181
    %s199 = sphi 0, %s199
    %s201 = sphi 0, %s199
    %s202 = sphi 0, %s201
    %s216 = sphi 0, %s202
    %s220 = sphi 0, %s220
    %s222 = sphi 0, %s220
    %s223 = sphi 0, %s222
    %s237 = sphi 0, %s223
    %s241 = sphi 0, %s241
    %s243 = sphi 0, %s241
    %s244 = sphi 0, %s243
    %s258 = sphi 0, %s244
    %s262 = sphi 0, %s262
    %s264 = sphi 0, %s262
    %s265 = sphi 0, %s264
    %s279 = sphi 0, %s265
    %s283 = sphi 0, %s283
    %s285 = sphi 0, %s283
    %s286 = sphi 0, %s285
    %s300 = sphi 0, %s286
    %s308 = sphi 0, %s310
    %s311 = sphi 0, %s308
    %s312 = sphi 0, %s311
    %s328 = sphi 0, %s312
  $region4: #{transformer_decoder_forward.6} parent=0 // loop_header_branch
    %21 = sbr.rel (%p19) target = $region8
  $region5: #{transformer_decoder_forward.6} parent=0 // loop_body
    %s23 = ssub.s32 %s18, 1
    %s24 = ssub.s32 %s18, 2
    %s31 = sadd.s32 1, %s26
    %p32 = scmp.ge.s32.totalorder %s31, 1
    %s33 = scalar_select %p32, 0, %s31
    %s34 = sadd.s32 1, %s25
    %s35 = scalar_select %p32, %s34, %s25
    %p36 = scmp.ge.s32.totalorder %s35, 2
    %s37 = scalar_select %p36, 0, %s35
    %s38 = ssub.s32 %s25, %s37
    %s39 = ssub.s32 %s26, %s33
    %s40 = sor.u32 %s38, %s39
    %p41 = scmp.eq.s32.totalorder %s40, 0
    %s43 = sadd.s32 %s42, 1
    %s44 = scalar_select %p41, %s42, %s43
    %p47 = pneg %p41
    %p48 = scmp.eq.s32.totalorder %s18, 1
    %p49 = por %p47, %p48
    %p50 = scmp.ne.s32.totalorder %s42, %s45
    %p51 = scmp.eq.s32.totalorder %s18, 0
    %p52 = por %p50, %p51
    %p53 = scmp.ne.s32.totalorder %s42, %s45
    %p54 = scmp.eq.s32.totalorder %s23, 1
    %p55 = por %p53, %p54
    %p56 = scmp.ne.s32.totalorder %s45, %s46
    %p57 = scmp.eq.s32.totalorder %s23, 0
    %p58 = por %p56, %p57
    %p59 = scmp.ne.s32.totalorder %s45, %s46
    %p60 = scmp.eq.s32.totalorder %s24, 1
    %p61 = por %p59, %p60
    %p63 = scmp.ne.s32.totalorder %s46, %s62
    %p64 = scmp.eq.s32.totalorder %s24, 0
    %p65 = por %p63, %p64
    %s66 = ssub.s32 %s25, %s37
    %s67 = ssub.s32 %s26, %s33
    %s68 = sor.u32 %s66, %s67
    %p69 = scmp.eq.s32.totalorder %s68, 0
    %s71 = sadd.s32 %s70, 1
    %s72 = scalar_select %p69, %s70, %s71
    %p75 = pneg %p69
    %p76 = scmp.eq.s32.totalorder %s18, 1
    %p77 = por %p75, %p76
    %p78 = scmp.ne.s32.totalorder %s70, %s73
    %p79 = scmp.eq.s32.totalorder %s18, 0
    %p80 = por %p78, %p79
    %p81 = scmp.ne.s32.totalorder %s70, %s73
    %p82 = scmp.eq.s32.totalorder %s23, 1
    %p83 = por %p81, %p82
    %p84 = scmp.ne.s32.totalorder %s73, %s74
    %p85 = scmp.eq.s32.totalorder %s23, 0
    %p86 = por %p84, %p85
    %p87 = scmp.ne.s32.totalorder %s73, %s74
    %p88 = scmp.eq.s32.totalorder %s24, 1
    %p89 = por %p87, %p88
    %p91 = scmp.ne.s32.totalorder %s74, %s90
    %p92 = scmp.eq.s32.totalorder %s24, 0
    %p93 = por %p91, %p92
    %s95 = sadd.s32 %s94, 1
    %p98 = scmp.eq.s32.totalorder %s18, 1
    %p99 = scmp.ne.s32.totalorder %s94, %s96
    %p100 = scmp.eq.s32.totalorder %s18, 0
    %p101 = por %p99, %p100
    %p102 = scmp.ne.s32.totalorder %s94, %s96
    %p103 = scmp.eq.s32.totalorder %s23, 1
    %p104 = por %p102, %p103
    %p105 = scmp.ne.s32.totalorder %s96, %s97
    %p106 = scmp.eq.s32.totalorder %s23, 0
    %p107 = por %p105, %p106
    %p108 = scmp.ne.s32.totalorder %s96, %s97
    %p109 = scmp.eq.s32.totalorder %s24, 1
    %p110 = por %p108, %p109
    %p112 = scmp.ne.s32.totalorder %s97, %s111
    %p113 = scmp.eq.s32.totalorder %s24, 0
    %p114 = por %p112, %p113
    %s116 = sadd.s32 %s115, 1
    %p119 = scmp.eq.s32.totalorder %s18, 1
    %p120 = scmp.ne.s32.totalorder %s115, %s117
    %p121 = scmp.eq.s32.totalorder %s18, 0
    %p122 = por %p120, %p121
    %p123 = scmp.ne.s32.totalorder %s115, %s117
    %p124 = scmp.eq.s32.totalorder %s23, 1
    %p125 = por %p123, %p124
    %p126 = scmp.ne.s32.totalorder %s117, %s118
    %p127 = scmp.eq.s32.totalorder %s23, 0
    %p128 = por %p126, %p127
    %p129 = scmp.ne.s32.totalorder %s117, %s118
    %p130 = scmp.eq.s32.totalorder %s24, 1
    %p131 = por %p129, %p130
    %p133 = scmp.ne.s32.totalorder %s118, %s132
    %p134 = scmp.eq.s32.totalorder %s24, 0
    %p135 = por %p133, %p134
    %s137 = sadd.s32 %s136, 1
    %p140 = scmp.eq.s32.totalorder %s18, 1
    %p141 = scmp.ne.s32.totalorder %s136, %s138
    %p142 = scmp.eq.s32.totalorder %s18, 0
    %p143 = por %p141, %p142
    %p144 = scmp.ne.s32.totalorder %s136, %s138
    %p145 = scmp.eq.s32.totalorder %s23, 1
    %p146 = por %p144, %p145
    %p147 = scmp.ne.s32.totalorder %s138, %s139
    %p148 = scmp.eq.s32.totalorder %s23, 0
    %p149 = por %p147, %p148
    %p150 = scmp.ne.s32.totalorder %s138, %s139
    %p151 = scmp.eq.s32.totalorder %s24, 1
    %p152 = por %p150, %p151
    %p154 = scmp.ne.s32.totalorder %s139, %s153
    %p155 = scmp.eq.s32.totalorder %s24, 0
    %p156 = por %p154, %p155
    %s158 = sadd.s32 %s157, 1
    %p161 = scmp.eq.s32.totalorder %s18, 1
    %p162 = scmp.ne.s32.totalorder %s157, %s159
    %p163 = scmp.eq.s32.totalorder %s18, 0
    %p164 = por %p162, %p163
    %p165 = scmp.ne.s32.totalorder %s157, %s159
    %p166 = scmp.eq.s32.totalorder %s23, 1
    %p167 = por %p165, %p166
    %p168 = scmp.ne.s32.totalorder %s159, %s160
    %p169 = scmp.eq.s32.totalorder %s23, 0
    %p170 = por %p168, %p169
    %p171 = scmp.ne.s32.totalorder %s159, %s160
    %p172 = scmp.eq.s32.totalorder %s24, 1
    %p173 = por %p171, %p172
    %p175 = scmp.ne.s32.totalorder %s160, %s174
    %p176 = scmp.eq.s32.totalorder %s24, 0
    %p177 = por %p175, %p176
    %s179 = sadd.s32 %s178, 1
    %p182 = scmp.eq.s32.totalorder %s18, 1
    %p183 = scmp.ne.s32.totalorder %s178, %s180
    %p184 = scmp.eq.s32.totalorder %s18, 0
    %p185 = por %p183, %p184
    %p186 = scmp.ne.s32.totalorder %s178, %s180
    %p187 = scmp.eq.s32.totalorder %s23, 1
    %p188 = por %p186, %p187
    %p189 = scmp.ne.s32.totalorder %s180, %s181
    %p190 = scmp.eq.s32.totalorder %s23, 0
    %p191 = por %p189, %p190
    %p192 = scmp.ne.s32.totalorder %s180, %s181
    %p193 = scmp.eq.s32.totalorder %s24, 1
    %p194 = por %p192, %p193
    %p196 = scmp.ne.s32.totalorder %s181, %s195
    %p197 = scmp.eq.s32.totalorder %s24, 0
    %p198 = por %p196, %p197
    %s200 = sadd.s32 %s199, 1
    %p203 = scmp.eq.s32.totalorder %s18, 1
    %p204 = scmp.ne.s32.totalorder %s199, %s201
    %p205 = scmp.eq.s32.totalorder %s18, 0
    %p206 = por %p204, %p205
    %p207 = scmp.ne.s32.totalorder %s199, %s201
    %p208 = scmp.eq.s32.totalorder %s23, 1
    %p209 = por %p207, %p208
    %p210 = scmp.ne.s32.totalorder %s201, %s202
    %p211 = scmp.eq.s32.totalorder %s23, 0
    %p212 = por %p210, %p211
    %p213 = scmp.ne.s32.totalorder %s201, %s202
    %p214 = scmp.eq.s32.totalorder %s24, 1
    %p215 = por %p213, %p214
    %p217 = scmp.ne.s32.totalorder %s202, %s216
    %p218 = scmp.eq.s32.totalorder %s24, 0
    %p219 = por %p217, %p218
    %s221 = sadd.s32 %s220, 1
    %p224 = scmp.eq.s32.totalorder %s18, 1
    %p225 = scmp.ne.s32.totalorder %s220, %s222
    %p226 = scmp.eq.s32.totalorder %s18, 0
    %p227 = por %p225, %p226
    %p228 = scmp.ne.s32.totalorder %s220, %s222
    %p229 = scmp.eq.s32.totalorder %s23, 1
    %p230 = por %p228, %p229
    %p231 = scmp.ne.s32.totalorder %s222, %s223
    %p232 = scmp.eq.s32.totalorder %s23, 0
    %p233 = por %p231, %p232
    %p234 = scmp.ne.s32.totalorder %s222, %s223
    %p235 = scmp.eq.s32.totalorder %s24, 1
    %p236 = por %p234, %p235
    %p238 = scmp.ne.s32.totalorder %s223, %s237
    %p239 = scmp.eq.s32.totalorder %s24, 0
    %p240 = por %p238, %p239
    %s242 = sadd.s32 %s241, 1
    %p245 = scmp.eq.s32.totalorder %s18, 1
    %p246 = scmp.ne.s32.totalorder %s241, %s243
    %p247 = scmp.eq.s32.totalorder %s18, 0
    %p248 = por %p246, %p247
    %p249 = scmp.ne.s32.totalorder %s241, %s243
    %p250 = scmp.eq.s32.totalorder %s23, 1
    %p251 = por %p249, %p250
    %p252 = scmp.ne.s32.totalorder %s243, %s244
    %p253 = scmp.eq.s32.totalorder %s23, 0
    %p254 = por %p252, %p253
    %p255 = scmp.ne.s32.totalorder %s243, %s244
    %p256 = scmp.eq.s32.totalorder %s24, 1
    %p257 = por %p255, %p256
    %p259 = scmp.ne.s32.totalorder %s244, %s258
    %p260 = scmp.eq.s32.totalorder %s24, 0
    %p261 = por %p259, %p260
    %s263 = sadd.s32 %s262, 1
    %p266 = scmp.eq.s32.totalorder %s18, 1
    %p267 = scmp.ne.s32.totalorder %s262, %s264
    %p268 = scmp.eq.s32.totalorder %s18, 0
    %p269 = por %p267, %p268
    %p270 = scmp.ne.s32.totalorder %s262, %s264
    %p271 = scmp.eq.s32.totalorder %s23, 1
    %p272 = por %p270, %p271
    %p273 = scmp.ne.s32.totalorder %s264, %s265
    %p274 = scmp.eq.s32.totalorder %s23, 0
    %p275 = por %p273, %p274
    %p276 = scmp.ne.s32.totalorder %s264, %s265
    %p277 = scmp.eq.s32.totalorder %s24, 1
    %p278 = por %p276, %p277
    %p280 = scmp.ne.s32.totalorder %s265, %s279
    %p281 = scmp.eq.s32.totalorder %s24, 0
    %p282 = por %p280, %p281
    %s284 = sadd.s32 %s283, 1
    %p287 = scmp.eq.s32.totalorder %s18, 1
    %p288 = scmp.ne.s32.totalorder %s283, %s285
    %p289 = scmp.eq.s32.totalorder %s18, 0
    %p290 = por %p288, %p289
    %p291 = scmp.ne.s32.totalorder %s283, %s285
    %p292 = scmp.eq.s32.totalorder %s23, 1
    %p293 = por %p291, %p292
    %p294 = scmp.ne.s32.totalorder %s285, %s286
    %p295 = scmp.eq.s32.totalorder %s23, 0
    %p296 = por %p294, %p295
    %p297 = scmp.ne.s32.totalorder %s285, %s286
    %p298 = scmp.eq.s32.totalorder %s24, 1
    %p299 = por %p297, %p298
    %p301 = scmp.ne.s32.totalorder %s286, %s300
    %p302 = scmp.eq.s32.totalorder %s24, 0
    %p303 = por %p301, %p302
    %s304 = ssub.s32 %s25, %s37
    %s305 = ssub.s32 %s26, %s33
    %s306 = sor.u32 %s304, %s305
    %p307 = scmp.eq.s32.totalorder %s306, 0
    %s309 = sadd.s32 %s308, 1
    %s310 = scalar_select %p307, %s308, %s309
    %p313 = pneg %p307
    %p314 = scmp.eq.s32.totalorder %s18, 1
    %p315 = por %p313, %p314
    %p316 = scmp.ne.s32.totalorder %s308, %s311
    %p317 = scmp.eq.s32.totalorder %s18, 0
    %p318 = por %p316, %p317
    %p319 = scmp.ne.s32.totalorder %s308, %s311
    %p320 = scmp.eq.s32.totalorder %s23, 1
    %p321 = por %p319, %p320
    %p322 = scmp.ne.s32.totalorder %s311, %s312
    %p323 = scmp.eq.s32.totalorder %s23, 0
    %p324 = por %p322, %p323
    %p325 = scmp.ne.s32.totalorder %s311, %s312
    %p326 = scmp.eq.s32.totalorder %s24, 1
    %p327 = por %p325, %p326
    %p329 = scmp.ne.s32.totalorder %s312, %s328
    %p330 = scmp.eq.s32.totalorder %s24, 0
    %p331 = por %p329, %p330
    %p332 = scmp.le.s32.totalorder 1, %s18
    %p333 = scmp.lt.s32.totalorder %s18, 3
    %p334 = pnand %p332, %p333
    %p335 = pneg %p334
    // Predicated region
    $region9: #{transformer_decoder_forward.6} parent=5 // pred_check
      _
    $region10: #{transformer_decoder_forward.6} parent=5 // pred_check_branch
      %337 = sbr.rel (%p334) target = $region12
    $region11: #{transformer_decoder_forward.6} parent=5 // pred_region
      %s338 = ssub.s32 %s18, 1
      // Predicated region
      $region13: #{transformer_decoder_forward.6} parent=11 // pred_check
        %p339 = pneg %p107
      $region14: #{transformer_decoder_forward.6} parent=11 // pred_check_branch
        %341 = sbr.rel (%p339) target = $region16
      $region15: #{transformer_decoder_forward.6} parent=11 // pred_region
        _
      $region16: #{transformer_decoder_forward.6} parent=11 // pred_fallthru
        _
      // Predicated region
      $region17: #{transformer_decoder_forward.6} parent=11 // pred_check
        %p342 = pneg %p128
      $region18: #{transformer_decoder_forward.6} parent=11 // pred_check_branch
        %344 = sbr.rel (%p342) target = $region20
      $region19: #{transformer_decoder_forward.6} parent=11 // pred_region
        _
      $region20: #{transformer_decoder_forward.6} parent=11 // pred_fallthru
        _
      // Predicated region
      $region21: #{transformer_decoder_forward.6} parent=11 // pred_check
        %p345 = pneg %p149
      $region22: #{transformer_decoder_forward.6} parent=11 // pred_check_branch
        %347 = sbr.rel (%p345) target = $region24
      $region23: #{transformer_decoder_forward.6} parent=11 // pred_region
        _
      $region24: #{transformer_decoder_forward.6} parent=11 // pred_fallthru
        _
      // Predicated region
      $region25: #{transformer_decoder_forward.6} parent=11 // pred_check
        %p348 = pneg %p170
      $region26: #{transformer_decoder_forward.6} parent=11 // pred_check_branch
        %350 = sbr.rel (%p348) target = $region28
      $region27: #{transformer_decoder_forward.6} parent=11 // pred_region
        _
      $region28: #{transformer_decoder_forward.6} parent=11 // pred_fallthru
        _
      // Predicated region
      $region29: #{transformer_decoder_forward.6} parent=11 // pred_check
        %p351 = pneg %p191
      $region30: #{transformer_decoder_forward.6} parent=11 // pred_check_branch
        %353 = sbr.rel (%p351) target = $region32
      $region31: #{transformer_decoder_forward.6} parent=11 // pred_region
        _
      $region32: #{transformer_decoder_forward.6} parent=11 // pred_fallthru
        _
      // Predicated region
      $region33: #{transformer_decoder_forward.6} parent=11 // pred_check
        %p354 = pneg %p212
      $region34: #{transformer_decoder_forward.6} parent=11 // pred_check_branch
        %356 = sbr.rel (%p354) target = $region36
      $region35: #{transformer_decoder_forward.6} parent=11 // pred_region
        _
      $region36: #{transformer_decoder_forward.6} parent=11 // pred_fallthru
        _
      // Predicated region
      $region37: #{transformer_decoder_forward.6} parent=11 // pred_check
        %p357 = pneg %p233
      $region38: #{transformer_decoder_forward.6} parent=11 // pred_check_branch
        %359 = sbr.rel (%p357) target = $region40
      $region39: #{transformer_decoder_forward.6} parent=11 // pred_region
        _
      $region40: #{transformer_decoder_forward.6} parent=11 // pred_fallthru
        _
      // Predicated region
      $region41: #{transformer_decoder_forward.6} parent=11 // pred_check
        %p360 = pneg %p254
      $region42: #{transformer_decoder_forward.6} parent=11 // pred_check_branch
        %362 = sbr.rel (%p360) target = $region44
      $region43: #{transformer_decoder_forward.6} parent=11 // pred_region
        _
      $region44: #{transformer_decoder_forward.6} parent=11 // pred_fallthru
        _
      // Predicated region
      $region45: #{transformer_decoder_forward.6} parent=11 // pred_check
        %p363 = pneg %p275
      $region46: #{transformer_decoder_forward.6} parent=11 // pred_check_branch
        %365 = sbr.rel (%p363) target = $region48
      $region47: #{transformer_decoder_forward.6} parent=11 // pred_region
        _
      $region48: #{transformer_decoder_forward.6} parent=11 // pred_fallthru
        _
      // Predicated region
      $region49: #{transformer_decoder_forward.6} parent=11 // pred_check
        %p366 = pneg %p296
      $region50: #{transformer_decoder_forward.6} parent=11 // pred_check_branch
        %368 = sbr.rel (%p366) target = $region52
      $region51: #{transformer_decoder_forward.6} parent=11 // pred_region
        _
      $region52: #{transformer_decoder_forward.6} parent=11 // pred_fallthru
        _
    $region12: #{transformer_decoder_forward.6} parent=5 // pred_fallthru
      _
    %p369 = scmp.lt.s32.totalorder %s18, 2
    // Predicated region
    $region53: #{transformer_decoder_forward.6} parent=5 // pred_check
      %p370 = pneg %p369
    $region54: #{transformer_decoder_forward.6} parent=5 // pred_check_branch
      %372 = sbr.rel (%p370) target = $region56
    $region55: #{transformer_decoder_forward.6} parent=5 // pred_region
      // Predicated region
      $region57: #{transformer_decoder_forward.6} parent=55 // pred_check
        %p373 = pneg %p52
      $region58: #{transformer_decoder_forward.6} parent=55 // pred_check_branch
        %375 = sbr.rel (%p373) target = $region60
      $region59: #{transformer_decoder_forward.6} parent=55 // pred_region
        %p376 = scmp.lt.s32.totalorder %s25, 1
        %s377 = scalar_select %p376, %s25, 1
        %p378 = scmp.lt.s32.totalorder %s26, 0
        %s379 = scalar_select %p378, %s26, 0
        %s380 = sadd.s32 %s379, %s377
        %s381 = smul.addr %s380, 8
        %s382 = scalar_lea.vmem %s0, %s381
      $region60: #{transformer_decoder_forward.6} parent=55 // pred_fallthru
        _
      // Predicated region
      $region61: #{transformer_decoder_forward.6} parent=55 // pred_check
        %p383 = pneg %p80
      $region62: #{transformer_decoder_forward.6} parent=55 // pred_check_branch
        %385 = sbr.rel (%p383) target = $region64
      $region63: #{transformer_decoder_forward.6} parent=55 // pred_region
        %p386 = scmp.lt.s32.totalorder %s25, 1
        %s387 = scalar_select %p386, %s25, 1
        %p388 = scmp.lt.s32.totalorder %s26, 0
        %s389 = scalar_select %p388, %s26, 0
        %s390 = sadd.s32 %s389, %s387
        %s391 = smul.addr %s390, 8
        %s392 = scalar_lea.vmem %s1, %s391
      $region64: #{transformer_decoder_forward.6} parent=55 // pred_fallthru
        _
    $region56: #{transformer_decoder_forward.6} parent=5 // pred_fallthru
      _
    %p393 = scmp.le.s32.totalorder 1, %s18
    %p394 = scmp.lt.s32.totalorder %s18, 3
    %p395 = pnand %p393, %p394
    %p396 = pneg %p395
    // Predicated region
    $region65: #{transformer_decoder_forward.6} parent=5 // pred_check
      _
    $region66: #{transformer_decoder_forward.6} parent=5 // pred_check_branch
      %398 = sbr.rel (%p395) target = $region68
    $region67: #{transformer_decoder_forward.6} parent=5 // pred_region
      %s399 = ssub.s32 %s18, 1
      %p400 = scmp.lt.s32.totalorder %s27, 1
      %s401 = scalar_select %p400, %s27, 1
      %p402 = scmp.lt.s32.totalorder %s28, 0
      %s403 = scalar_select %p402, %s28, 0
      %s404 = sadd.s32 %s403, %s401
      %s405 = smul.addr %s404, 8
      %s406 = scalar_lea.vmem %s0, %s405
      %p407 = pneg %p58
      %p408 = pneg %p55
      %p409 = scmp.lt.s32.totalorder %s27, 1
      %s410 = scalar_select %p409, %s27, 1
      %p411 = scmp.lt.s32.totalorder %s28, 0
      %s412 = scalar_select %p411, %s28, 0
      %s413 = sadd.s32 %s412, %s410
      %s414 = smul.addr %s413, 8
      %s415 = scalar_lea.vmem %s1, %s414
      %p416 = pneg %p86
      %p417 = pneg %p83
      %p418 = pneg %p107
      %p419 = pneg %p104
      %p420 = pneg %p128
      %p421 = pneg %p125
      %p422 = pneg %p149
      %p423 = pneg %p146
      %p424 = pneg %p170
      %p425 = pneg %p167
      %p426 = pneg %p191
      %p427 = pneg %p188
      %p428 = pneg %p212
      %p429 = pneg %p209
      %p430 = pneg %p233
      %p431 = pneg %p230
      %p432 = pneg %p254
      %p433 = pneg %p251
      %p434 = pneg %p275
      %p435 = pneg %p272
      %p436 = pneg %p296
      %p437 = pneg %p293
      %p438 = pneg %p324
      %p439 = pneg %p321
      %p440 = scmp.lt.s32.totalorder %s27, 1
      %s441 = scalar_select %p440, %s27, 1
      %p442 = scmp.lt.s32.totalorder %s28, 0
      %s443 = scalar_select %p442, %s28, 0
      %s444 = sadd.s32 %s443, %s441
      %s445 = smul.addr %s444, 8
      %s446 = scalar_lea.vmem %s12, %s445
      %p447 = scmp.lt.s32.totalorder %s27, 1
      %s448 = scalar_select %p447, %s27, 1
      %p449 = scmp.lt.s32.totalorder %s28, 0
      %s450 = scalar_select %p449, %s28, 0
      %s451 = sadd.s32 %s450, %s448
      %s452 = smul.addr %s451, 8
      %s453 = scalar_lea.vmem %s0, %s452
      %p454 = scmp.lt.s32.totalorder %s27, 1
      %s455 = scalar_select %p454, %s27, 1
      %p456 = scmp.lt.s32.totalorder %s28, 0
      %s457 = scalar_select %p456, %s28, 0
      %s458 = sadd.s32 %s457, %s455
      %s459 = smul.addr %s458, 8
      %s460 = scalar_lea.vmem %s1, %s459
      %p461 = scmp.lt.s32.totalorder %s27, 1
      %s462 = scalar_select %p461, %s27, 1
      %p463 = scmp.lt.s32.totalorder %s28, 0
      %s464 = scalar_select %p463, %s28, 0
      %s465 = sadd.s32 %s464, %s462
      %s466 = smul.addr %s465, 8
      %s467 = scalar_lea.vmem %s12, %s466
      %v469 = vld [vmem:[%s453] sm:$0xff]
      %v470 = vld [vmem:[%s460] sm:$0xff]
      %v471 = vadd.f32 %v469, %v470
      %v472 = vld [vmem:[%s2] sm:$0xf]
      %v473 = vld [vmem:[%s2 + $0x4] sm:$0xf]
      %v474 = vld [vmem:[%s2 + $0x8] sm:$0xf]
      %v475 = vld [vmem:[%s2 + $0xc] sm:$0xf]
      %v476 = vld [vmem:[%s2 + $0x10] sm:$0xf]
      %v477 = vld [vmem:[%s2 + $0x14] sm:$0xf]
      %v478 = vld [vmem:[%s2 + $0x18] sm:$0xf]
      %v479 = vld [vmem:[%s2 + $0x1c] sm:$0xf]
      %v480 = vpack.c.bf16 %v471, %v471
      %v481 = vld [vmem:[%s3] sm:$0x1]
      %v483 = vperm.slane %v481, 0
      %v493 = vunpack.c.l.b16 %v472
      %v494 = vunpack.c.l.b16 %v473
      %v495 = vunpack.c.l.b16 %v474
      %v496 = vunpack.c.l.b16 %v475
      %v497 = vunpack.c.l.b16 %v476
      %v498 = vunpack.c.l.b16 %v477
      %v499 = vunpack.c.l.b16 %v478
      %v500 = vunpack.c.l.b16 %v479
      %v501 = vpack.c.b16 %v494, %v493
      %v502 = vpack.c.b16 %v496, %v495
      %v503 = vpack.c.b16 %v498, %v497
      %v504 = vpack.c.b16 %v500, %v499
      %vm509 = vcmask 523264
      %v511 = vsel %vm509, %v480, 0
      %513 = vmatpush.bf16.msra.mxu0 0
      %514 = vmatpush.bf16.msra.mxu0 0
      %515 = vmatpush.bf16.msra.mxu0 0
      %516 = vmatpush.bf16.msra.mxu0 0
      %517 = vmatpush.bf16.msra.mxu0 %v504
      %518 = vmatpush.bf16.msra.mxu0 %v503
      %519 = vmatpush.bf16.msra.mxu0 %v502
      %520 = vmatpush.bf16.msra.mxu0 %v501
      %521 = vmatmul.bf16.gmra.mxu0 %v511
      %v522 = vpop.f32.mrf.mxu0
      %v523 = vadd.f32 %v483, %v522
      %v524 = vpop.f32.mrf.mxu0
      %525 = vdwg.mxu0
      %v526 = vld [vmem:[%s4] sm:$0xf]
      %v527 = vld [vmem:[%s4 + $0x4] sm:$0xf]
      %v528 = vld [vmem:[%s4 + $0x8] sm:$0xf]
      %v529 = vld [vmem:[%s4 + $0xc] sm:$0xf]
      %v530 = vld [vmem:[%s4 + $0x10] sm:$0xf]
      %v531 = vld [vmem:[%s4 + $0x14] sm:$0xf]
      %v532 = vld [vmem:[%s4 + $0x18] sm:$0xf]
      %v533 = vld [vmem:[%s4 + $0x1c] sm:$0xf]
      %v534 = vld [vmem:[%s5] sm:$0x1]
      %v536 = vperm.slane %v534, 0
      %v546 = vunpack.c.l.b16 %v526
      %v547 = vunpack.c.l.b16 %v527
      %v548 = vunpack.c.l.b16 %v528
      %v549 = vunpack.c.l.b16 %v529
      %v550 = vunpack.c.l.b16 %v530
      %v551 = vunpack.c.l.b16 %v531
      %v552 = vunpack.c.l.b16 %v532
      %v553 = vunpack.c.l.b16 %v533
      %v554 = vpack.c.b16 %v547, %v546
      %v555 = vpack.c.b16 %v549, %v548
      %v556 = vpack.c.b16 %v551, %v550
      %v557 = vpack.c.b16 %v553, %v552
      %562 = vmatpush.bf16.msra.mxu0 0
      %563 = vmatpush.bf16.msra.mxu0 0
      %564 = vmatpush.bf16.msra.mxu0 0
      %565 = vmatpush.bf16.msra.mxu0 0
      %566 = vmatpush.bf16.msra.mxu0 %v557
      %567 = vmatpush.bf16.msra.mxu0 %v556
      %568 = vmatpush.bf16.msra.mxu0 %v555
      %569 = vmatpush.bf16.msra.mxu0 %v554
      %570 = vmatmul.bf16.gmra.mxu0 %v511
      %v571 = vpop.f32.mrf.mxu0
      %v572 = vadd.f32 %v536, %v571
      %v573 = vpop.f32.mrf.mxu0
      %574 = vdwg.mxu0
      %v575 = vld [vmem:[%s6] sm:$0xf]
      %v576 = vld [vmem:[%s6 + $0x4] sm:$0xf]
      %v577 = vld [vmem:[%s6 + $0x8] sm:$0xf]
      %v578 = vld [vmem:[%s6 + $0xc] sm:$0xf]
      %v579 = vld [vmem:[%s6 + $0x10] sm:$0xf]
      %v580 = vld [vmem:[%s6 + $0x14] sm:$0xf]
      %v581 = vld [vmem:[%s6 + $0x18] sm:$0xf]
      %v582 = vld [vmem:[%s6 + $0x1c] sm:$0xf]
      %v583 = vpack.c.bf16 %v469, %v469
      %v584 = vld [vmem:[%s7] sm:$0x1]
      %v586 = vperm.slane %v584, 0
      %v596 = vunpack.c.l.b16 %v575
      %v597 = vunpack.c.l.b16 %v576
      %v598 = vunpack.c.l.b16 %v577
      %v599 = vunpack.c.l.b16 %v578
      %v600 = vunpack.c.l.b16 %v579
      %v601 = vunpack.c.l.b16 %v580
      %v602 = vunpack.c.l.b16 %v581
      %v603 = vunpack.c.l.b16 %v582
      %v604 = vpack.c.b16 %v597, %v596
      %v605 = vpack.c.b16 %v599, %v598
      %v606 = vpack.c.b16 %v601, %v600
      %v607 = vpack.c.b16 %v603, %v602
      %v613 = vsel %vm509, %v583, 0
      %615 = vmatpush.bf16.msra.mxu0 0
      %616 = vmatpush.bf16.msra.mxu0 0
      %617 = vmatpush.bf16.msra.mxu0 0
      %618 = vmatpush.bf16.msra.mxu0 0
      %619 = vmatpush.bf16.msra.mxu0 %v607
      %620 = vmatpush.bf16.msra.mxu0 %v606
      %621 = vmatpush.bf16.msra.mxu0 %v605
      %622 = vmatpush.bf16.msra.mxu0 %v604
      %623 = vmatmul.bf16.gmra.mxu0 %v613
      %v624 = vpop.f32.mrf.mxu0
      %v625 = vadd.f32 %v586, %v624
      %v626 = vpop.f32.mrf.mxu0
      %627 = vdwg.mxu0
      %v628 = vpack.c.bf16 %v625, %v625
      %v629 = vpack.c.bf16 %v523, %v523
      %v630 = vpack.c.bf16 %v572, %v572
      %vm631 = vcmask 130048
      %v633 = vsel %vm631, %v629, 0
      %v636 = vsel %vm631, %v630, 0
      %638 = vmatpush.bf16.xpose.msra.mxu0 0
      %639 = vmatpush.bf16.xpose.msra.mxu0 0
      %640 = vmatpush.bf16.xpose.msra.mxu0 0
      %641 = vmatpush.bf16.xpose.msra.mxu0 0
      %642 = vmatpush.bf16.xpose.msra.mxu0 0
      %643 = vmatpush.bf16.xpose.msra.mxu0 0
      %644 = vmatpush.bf16.xpose.msra.mxu0 0
      %645 = vmatpush.bf16.xpose.msra.mxu0 %v636
      %646 = vmatmul.bf16.gmra.mxu0 %v633
      %v647 = vpop.f32.mrf.mxu0
      %v648 = vadd.f32 0.0, %v647
      %v649 = vpop.f32.mrf.mxu0
      %650 = vdwg.mxu0
      %v651 = vmul.f32 %v648, 0.25
      %vm652 = vcmask 64512
      %v653 = vsel %vm652, %v651, -inf
      %654 = vmax.xlane.f32.xlu0 %v653
      %v655 = vpop.xlane.xlu0 %654
      %v656 = vsub.f32 %v651, %v655
      %v657 = vmul.f32 %v656, 1.442695
      %v658 = vpow.pop %v657
      %v659 = vsel %vm652, %v658, 0.0
      %660 = vadd.xlane.f32.xlu0 %v659
      %v661 = vpop.xlane.xlu0 %660
      %v662 = vpack.c.bf16 %v658, %v658
      %v664 = vsel %vm652, %v662, 0
      %vm666 = vcmask 1043456
      %v668 = vsel %vm666, %v628, 0
      %670 = vmatpush.bf16.msra.mxu0 0
      %671 = vmatpush.bf16.msra.mxu0 0
      %672 = vmatpush.bf16.msra.mxu0 0
      %673 = vmatpush.bf16.msra.mxu0 0
      %674 = vmatpush.bf16.msra.mxu0 0
      %675 = vmatpush.bf16.msra.mxu0 0
      %676 = vmatpush.bf16.msra.mxu0 0
      %677 = vmatpush.bf16.msra.mxu0 %v668
      %678 = vmatmul.bf16.gmra.mxu0 %v664
      %v679 = vpop.f32.mrf.mxu0
      %v680 = vadd.f32 0.0, %v679
      %v681 = vpop.f32.mrf.mxu0
      %682 = vdwg.mxu0
      %v683 = vrcp.pop %v661
      %v684 = vmul.f32 %v680, %v683
      %686 = vrot.lane.b32.xlu0 %v629, 112
      %v687 = vpop.permute.xlu0 %686
      %689 = vrot.lane.b32.xlu0 %v630, 112
      %v690 = vpop.permute.xlu0 %689
      %v692 = vsel %vm631, %v687, 0
      %v695 = vsel %vm631, %v690, 0
      %697 = vmatpush.bf16.xpose.msra.mxu0 0
      %698 = vmatpush.bf16.xpose.msra.mxu0 0
      %699 = vmatpush.bf16.xpose.msra.mxu0 0
      %700 = vmatpush.bf16.xpose.msra.mxu0 0
      %701 = vmatpush.bf16.xpose.msra.mxu0 0
      %702 = vmatpush.bf16.xpose.msra.mxu0 0
      %703 = vmatpush.bf16.xpose.msra.mxu0 0
      %704 = vmatpush.bf16.xpose.msra.mxu0 %v695
      %705 = vmatmul.bf16.gmra.mxu0 %v692
      %v706 = vpop.f32.mrf.mxu0
      %v707 = vadd.f32 0.0, %v706
      %v708 = vpop.f32.mrf.mxu0
      %709 = vdwg.mxu0
      %v710 = vmul.f32 %v707, 0.25
      %v711 = vsel %vm652, %v710, -inf
      %712 = vmax.xlane.f32.xlu0 %v711
      %v713 = vpop.xlane.xlu0 %712
      %v714 = vsub.f32 %v710, %v713
      %v715 = vmul.f32 %v714, 1.442695
      %v716 = vpow.pop %v715
      %v717 = vsel %vm652, %v716, 0.0
      %718 = vadd.xlane.f32.xlu0 %v717
      %v719 = vpop.xlane.xlu0 %718
      %v720 = vpack.c.bf16 %v716, %v716
      %v722 = vunpack.c.l.b16 %v628
      %v723 = vpack.c.b16 %v722, %v722
      %724 = vrot.lane.b32.xlu0 %v723, 112
      %v725 = vpop.permute.xlu0 %724
      %v727 = vsel %vm652, %v720, 0
      %v730 = vsel %vm666, %v725, 0
      %732 = vmatpush.bf16.msra.mxu0 0
      %733 = vmatpush.bf16.msra.mxu0 0
      %734 = vmatpush.bf16.msra.mxu0 0
      %735 = vmatpush.bf16.msra.mxu0 0
      %736 = vmatpush.bf16.msra.mxu0 0
      %737 = vmatpush.bf16.msra.mxu0 0
      %738 = vmatpush.bf16.msra.mxu0 0
      %739 = vmatpush.bf16.msra.mxu0 %v730
      %740 = vmatmul.bf16.gmra.mxu0 %v727
      %v741 = vpop.f32.mrf.mxu0
      %v742 = vadd.f32 0.0, %v741
      %v743 = vpop.f32.mrf.mxu0
      %744 = vdwg.mxu0
      %v745 = vrcp.pop %v719
      %v746 = vmul.f32 %v742, %v745
      %747 = vrot.lane.b32.xlu0 %v629, 96
      %v748 = vpop.permute.xlu0 %747
      %749 = vrot.lane.b32.xlu0 %v630, 96
      %v750 = vpop.permute.xlu0 %749
      %v752 = vsel %vm631, %v748, 0
      %v755 = vsel %vm631, %v750, 0
      %757 = vmatpush.bf16.xpose.msra.mxu0 0
      %758 = vmatpush.bf16.xpose.msra.mxu0 0
      %759 = vmatpush.bf16.xpose.msra.mxu0 0
      %760 = vmatpush.bf16.xpose.msra.mxu0 0
      %761 = vmatpush.bf16.xpose.msra.mxu0 0
      %762 = vmatpush.bf16.xpose.msra.mxu0 0
      %763 = vmatpush.bf16.xpose.msra.mxu0 0
      %764 = vmatpush.bf16.xpose.msra.mxu0 %v755
      %765 = vmatmul.bf16.gmra.mxu0 %v752
      %v766 = vpop.f32.mrf.mxu0
      %v767 = vadd.f32 0.0, %v766
      %v768 = vpop.f32.mrf.mxu0
      %769 = vdwg.mxu0
      %v770 = vmul.f32 %v767, 0.25
      %v771 = vsel %vm652, %v770, -inf
      %772 = vmax.xlane.f32.xlu0 %v771
      %v773 = vpop.xlane.xlu0 %772
      %v774 = vsub.f32 %v770, %v773
      %v775 = vmul.f32 %v774, 1.442695
      %v776 = vpow.pop %v775
      %v777 = vsel %vm652, %v776, 0.0
      %778 = vadd.xlane.f32.xlu0 %v777
      %v779 = vpop.xlane.xlu0 %778
      %v780 = vpack.c.bf16 %v776, %v776
      %781 = vrot.lane.b32.xlu0 %v723, 96
      %v782 = vpop.permute.xlu0 %781
      %v784 = vsel %vm652, %v780, 0
      %v787 = vsel %vm666, %v782, 0
      %789 = vmatpush.bf16.msra.mxu0 0
      %790 = vmatpush.bf16.msra.mxu0 0
      %791 = vmatpush.bf16.msra.mxu0 0
      %792 = vmatpush.bf16.msra.mxu0 0
      %793 = vmatpush.bf16.msra.mxu0 0
      %794 = vmatpush.bf16.msra.mxu0 0
      %795 = vmatpush.bf16.msra.mxu0 0
      %796 = vmatpush.bf16.msra.mxu0 %v787
      %797 = vmatmul.bf16.gmra.mxu0 %v784
      %v798 = vpop.f32.mrf.mxu0
      %v799 = vadd.f32 0.0, %v798
      %v800 = vpop.f32.mrf.mxu0
      %801 = vdwg.mxu0
      %v802 = vrcp.pop %v779
      %v803 = vmul.f32 %v799, %v802
      %804 = vrot.lane.b32.xlu0 %v629, 80
      %v805 = vpop.permute.xlu0 %804
      %806 = vrot.lane.b32.xlu0 %v630, 80
      %v807 = vpop.permute.xlu0 %806
      %v809 = vsel %vm631, %v805, 0
      %v812 = vsel %vm631, %v807, 0
      %814 = vmatpush.bf16.xpose.msra.mxu0 0
      %815 = vmatpush.bf16.xpose.msra.mxu0 0
      %816 = vmatpush.bf16.xpose.msra.mxu0 0
      %817 = vmatpush.bf16.xpose.msra.mxu0 0
      %818 = vmatpush.bf16.xpose.msra.mxu0 0
      %819 = vmatpush.bf16.xpose.msra.mxu0 0
      %820 = vmatpush.bf16.xpose.msra.mxu0 0
      %821 = vmatpush.bf16.xpose.msra.mxu0 %v812
      %822 = vmatmul.bf16.gmra.mxu0 %v809
      %v823 = vpop.f32.mrf.mxu0
      %v824 = vadd.f32 0.0, %v823
      %v825 = vpop.f32.mrf.mxu0
      %826 = vdwg.mxu0
      %v827 = vmul.f32 %v824, 0.25
      %v828 = vsel %vm652, %v827, -inf
      %829 = vmax.xlane.f32.xlu0 %v828
      %v830 = vpop.xlane.xlu0 %829
      %v831 = vsub.f32 %v827, %v830
      %v832 = vmul.f32 %v831, 1.442695
      %v833 = vpow.pop %v832
      %v834 = vsel %vm652, %v833, 0.0
      %835 = vadd.xlane.f32.xlu0 %v834
      %v836 = vpop.xlane.xlu0 %835
      %v837 = vpack.c.bf16 %v833, %v833
      %838 = vrot.lane.b32.xlu0 %v723, 80
      %v839 = vpop.permute.xlu0 %838
      %v841 = vsel %vm652, %v837, 0
      %v844 = vsel %vm666, %v839, 0
      %846 = vmatpush.bf16.msra.mxu0 0
      %847 = vmatpush.bf16.msra.mxu0 0
      %848 = vmatpush.bf16.msra.mxu0 0
      %849 = vmatpush.bf16.msra.mxu0 0
      %850 = vmatpush.bf16.msra.mxu0 0
      %851 = vmatpush.bf16.msra.mxu0 0
      %852 = vmatpush.bf16.msra.mxu0 0
      %853 = vmatpush.bf16.msra.mxu0 %v844
      %854 = vmatmul.bf16.gmra.mxu0 %v841
      %v855 = vpop.f32.mrf.mxu0
      %v856 = vadd.f32 0.0, %v855
      %v857 = vpop.f32.mrf.mxu0
      %858 = vdwg.mxu0
      %v859 = vrcp.pop %v836
      %v860 = vmul.f32 %v856, %v859
      %862 = vrot.lane.b32.xlu0 %v746, 16
      %v863 = vpop.permute.xlu0 %862
      %866 = vrot.lane.b32.xlu0 %v803, 32
      %v867 = vpop.permute.xlu0 %866
      %870 = vrot.lane.b32.xlu0 %v860, 48
      %v871 = vpop.permute.xlu0 %870
      %v873 = vsel %vm631, %v684, %v863
      %vm874 = vcmask 261120
      %v875 = vsel %vm874, %v873, %v867
      %vm876 = vcmask 392192
      %v877 = vsel %vm876, %v875, %v871
      %v878 = vld [vmem:[%s8] sm:$0xf]
      %v879 = vld [vmem:[%s8 + $0x4] sm:$0xf]
      %v880 = vld [vmem:[%s8 + $0x8] sm:$0xf]
      %v881 = vld [vmem:[%s8 + $0xc] sm:$0xf]
      %v882 = vld [vmem:[%s8 + $0x10] sm:$0xf]
      %v883 = vld [vmem:[%s8 + $0x14] sm:$0xf]
      %v884 = vld [vmem:[%s8 + $0x18] sm:$0xf]
      %v885 = vld [vmem:[%s8 + $0x1c] sm:$0xf]
      %v886 = vpack.c.bf16 %v877, %v877
      %v887 = vld [vmem:[%s9] sm:$0x1]
      %v889 = vperm.slane %v887, 0
      %v899 = vunpack.c.l.b16 %v878
      %v900 = vunpack.c.l.b16 %v879
      %v901 = vunpack.c.l.b16 %v880
      %v902 = vunpack.c.l.b16 %v881
      %v903 = vunpack.c.l.b16 %v882
      %v904 = vunpack.c.l.b16 %v883
      %v905 = vunpack.c.l.b16 %v884
      %v906 = vunpack.c.l.b16 %v885
      %v907 = vpack.c.b16 %v900, %v899
      %v908 = vpack.c.b16 %v902, %v901
      %v909 = vpack.c.b16 %v904, %v903
      %v910 = vpack.c.b16 %v906, %v905
      %v916 = vsel %vm509, %v886, 0
      %918 = vmatpush.bf16.msra.mxu0 0
      %919 = vmatpush.bf16.msra.mxu0 0
      %920 = vmatpush.bf16.msra.mxu0 0
      %921 = vmatpush.bf16.msra.mxu0 0
      %922 = vmatpush.bf16.msra.mxu0 %v910
      %923 = vmatpush.bf16.msra.mxu0 %v909
      %924 = vmatpush.bf16.msra.mxu0 %v908
      %925 = vmatpush.bf16.msra.mxu0 %v907
      %926 = vmatmul.bf16.gmra.mxu0 %v916
      %v927 = vpop.f32.mrf.mxu0
      %v928 = vadd.f32 %v889, %v927
      %v929 = vpop.f32.mrf.mxu0
      %930 = vdwg.mxu0
      %v931 = vadd.f32 %v469, %v928
      %v932 = vld [vmem:[%s10] sm:$0x1]
      %v933 = vld [vmem:[%s11] sm:$0x1]
      %v934 = vsel %vm509, %v931, 0.0
      %935 = vadd.xlane.f32.xlu0 %v934
      %v936 = vpop.xlane.xlu0 %935
      %v937 = vrcp.pop 64.0
      %v938 = vmul.f32 64.0, %v937
      %v939 = vsub.f32 1.0, %v938
      %v940 = vmul.f32 %v937, %v939
      %v941 = vadd.f32 %v937, %v940
      %vm942 = vweird.f32 %v937
      %v943 = vsel %vm942, %v937, %v941
      %v944 = vmul.f32 %v936, %v943
      %v945 = vsub.f32 %v931, %v944
      %v946 = vmul.f32 %v945, %v945
      %v947 = vsel %vm509, %v946, 0.0
      %948 = vadd.xlane.f32.xlu0 %v947
      %v949 = vpop.xlane.xlu0 %948
      %v950 = vmul.f32 %v949, %v943
      %v951 = vadd.f32 %v950, 1e-05
      %v952 = vrsqrt.pop %v951
      %v953 = vmul.f32 %v952, %v951
      %v954 = vmul.f32 %v953, %v952
      %v955 = vmul.f32 0.5, %v954
      %v956 = vsub.f32 1.5, %v955
      %v957 = vmul.f32 %v952, %v956
      %vm958 = vweird.f32 %v951
      %vm959 = vweird.f32 %v952
      %vm960 = vmor %vm958, %vm959
      %v961 = vsel %vm960, %v952, %v957
      %v962 = vmul.f32 %v945, %v961
      %v964 = vperm.slane %v932, 0
      %v966 = vmul.f32 %v962, %v964
      %v968 = vperm.slane %v933, 0
      %v970 = vadd.f32 %v966, %v968
      %971 = vst.msk [vmem:[%s467] sm:$0xff] %vm509, %v970
      %p972 = scmp.lt.s32.totalorder %s27, 1
      %s973 = scalar_select %p972, %s27, 1
      %p974 = scmp.lt.s32.totalorder %s28, 0
      %s975 = scalar_select %p974, %s28, 0
      %s976 = sadd.s32 %s975, %s973
      %s977 = smul.addr %s976, 8
      %s978 = scalar_lea.vmem %s12, %s977
      // Predicated region
      $region69: #{transformer_decoder_forward.6} parent=67 // pred_check
        %p979 = pneg %p321
      $region70: #{transformer_decoder_forward.6} parent=67 // pred_check_branch
        %981 = sbr.rel (%p979) target = $region72
      $region71: #{transformer_decoder_forward.6} parent=67 // pred_region
        _
      $region72: #{transformer_decoder_forward.6} parent=67 // pred_fallthru
        _
    $region68: #{transformer_decoder_forward.6} parent=5 // pred_fallthru
      _
    %p982 = scmp.le.s32.totalorder 2, %s18
    // Predicated region
    $region73: #{transformer_decoder_forward.6} parent=5 // pred_check
      %p983 = pneg %p982
    $region74: #{transformer_decoder_forward.6} parent=5 // pred_check_branch
      %985 = sbr.rel (%p983) target = $region76
    $region75: #{transformer_decoder_forward.6} parent=5 // pred_region
      %s986 = ssub.s32 %s18, 2
      // Predicated region
      $region77: #{transformer_decoder_forward.6} parent=75 // pred_check
        %p987 = pneg %p327
      $region78: #{transformer_decoder_forward.6} parent=75 // pred_check_branch
        %989 = sbr.rel (%p987) target = $region80
      $region79: #{transformer_decoder_forward.6} parent=75 // pred_region
        %p990 = scmp.lt.s32.totalorder %s29, 1
        %s991 = scalar_select %p990, %s29, 1
        %p992 = scmp.lt.s32.totalorder %s30, 0
        %s993 = scalar_select %p992, %s30, 0
        %s994 = sadd.s32 %s993, %s991
        %s995 = smul.addr %s994, 8
        %s996 = scalar_lea.vmem %s12, %s995
      $region80: #{transformer_decoder_forward.6} parent=75 // pred_fallthru
        _
    $region76: #{transformer_decoder_forward.6} parent=5 // pred_fallthru
      _
  $region6: #{transformer_decoder_forward.6} parent=0 // loop_footer
    %s22 = sadd.s32 1, %s18
  $region7: #{transformer_decoder_forward.6} parent=0 // loop_footer_branch
    %17 = sbr.rel target = $region3
  $region8: #{transformer_decoder_forward.6} parent=0 // loop_exit
    _

// kernel: transformer_decoder_forward.11
$region0: #{transformer_decoder_forward.11}
  #allocation0 [shape = 'u32[]', space=smem, size = 0x4, offset = 0x4, fixed_abs, tag = 'smem constant byte address 0x4 - core index']
  #allocation1 [shape = 'u32[72,128]{1,0:T(1,128)}', space=vmem, size = 0x9000, scoped, tag = 'internal scratch']
  %s0 = inlined_call_operand.vmem [shape: f32[16,64], index: 0, kind: input, shape index: {}]
  %s1 = inlined_call_operand.vmem [shape: bf16[64,128], index: 1, kind: input, shape index: {}]
  %s2 = inlined_call_operand.vmem [shape: f32[1,128], index: 2, kind: input, shape index: {}]
  %s3 = inlined_call_operand.vmem [shape: bf16[128,64], index: 3, kind: input, shape index: {}]
  %s4 = inlined_call_operand.vmem [shape: f32[1,64], index: 4, kind: input, shape index: {}]
  %s5 = inlined_call_operand.vmem [shape: f32[1,64], index: 5, kind: input, shape index: {}]
  %s6 = inlined_call_operand.vmem [shape: f32[1,64], index: 6, kind: input, shape index: {}]
  %s7 = inlined_call_operand.vmem [shape: f32[1,64], index: 7, kind: input, shape index: {}]
  %s8 = inlined_call_operand.vmem [shape: f32[1,64], index: 8, kind: input, shape index: {}]
  %s9 = inlined_call_operand.vmem [shape: f32[16,64], index: 9, kind: output, shape index: {}]
  %s10 = sld [smem:[#allocation0]]
  $region46: #{transformer_decoder_forward.11} parent=0
    _
  %s12 = ssub.s32 1, %s10
  %s13 = scalar_select 0, %s12, %s10
  // Predicated region
  $region2: #{transformer_decoder_forward.11} parent=0 // pred_check
    _
  $region3: #{transformer_decoder_forward.11} parent=0 // pred_check_branch
    %15 = sbr.rel (0) target = $region5
  $region4: #{transformer_decoder_forward.11} parent=0 // pred_region
    _
  $region5: #{transformer_decoder_forward.11} parent=0 // pred_fallthru
    _
  // Predicated region
  $region6: #{transformer_decoder_forward.11} parent=0 // pred_check
    _
  $region7: #{transformer_decoder_forward.11} parent=0 // pred_check_branch
    %17 = sbr.rel (0) target = $region9
  $region8: #{transformer_decoder_forward.11} parent=0 // pred_region
    _
  $region9: #{transformer_decoder_forward.11} parent=0 // pred_fallthru
    _
  // Predicated region
  $region10: #{transformer_decoder_forward.11} parent=0 // pred_check
    _
  $region11: #{transformer_decoder_forward.11} parent=0 // pred_check_branch
    %19 = sbr.rel (0) target = $region13
  $region12: #{transformer_decoder_forward.11} parent=0 // pred_region
    _
  $region13: #{transformer_decoder_forward.11} parent=0 // pred_fallthru
    _
  // Predicated region
  $region14: #{transformer_decoder_forward.11} parent=0 // pred_check
    _
  $region15: #{transformer_decoder_forward.11} parent=0 // pred_check_branch
    %21 = sbr.rel (0) target = $region17
  $region16: #{transformer_decoder_forward.11} parent=0 // pred_region
    _
  $region17: #{transformer_decoder_forward.11} parent=0 // pred_fallthru
    _
  // Predicated region
  $region18: #{transformer_decoder_forward.11} parent=0 // pred_check
    _
  $region19: #{transformer_decoder_forward.11} parent=0 // pred_check_branch
    %23 = sbr.rel (0) target = $region21
  $region20: #{transformer_decoder_forward.11} parent=0 // pred_region
    _
  $region21: #{transformer_decoder_forward.11} parent=0 // pred_fallthru
    _
  // Predicated region
  $region22: #{transformer_decoder_forward.11} parent=0 // pred_check
    _
  $region23: #{transformer_decoder_forward.11} parent=0 // pred_check_branch
    %25 = sbr.rel (0) target = $region25
  $region24: #{transformer_decoder_forward.11} parent=0 // pred_region
    _
  $region25: #{transformer_decoder_forward.11} parent=0 // pred_fallthru
    _
  // Predicated region
  $region26: #{transformer_decoder_forward.11} parent=0 // pred_check
    _
  $region27: #{transformer_decoder_forward.11} parent=0 // pred_check_branch
    %27 = sbr.rel (0) target = $region29
  $region28: #{transformer_decoder_forward.11} parent=0 // pred_region
    _
  $region29: #{transformer_decoder_forward.11} parent=0 // pred_fallthru
    _
  // Predicated region
  $region30: #{transformer_decoder_forward.11} parent=0 // pred_check
    _
  $region31: #{transformer_decoder_forward.11} parent=0 // pred_check_branch
    %29 = sbr.rel (0) target = $region33
  $region32: #{transformer_decoder_forward.11} parent=0 // pred_region
    _
  $region33: #{transformer_decoder_forward.11} parent=0 // pred_fallthru
    _
  // Predicated region
  $region34: #{transformer_decoder_forward.11} parent=0 // pred_check
    _
  $region35: #{transformer_decoder_forward.11} parent=0 // pred_check_branch
    %31 = sbr.rel (0) target = $region37
  $region36: #{transformer_decoder_forward.11} parent=0 // pred_region
    _
  $region37: #{transformer_decoder_forward.11} parent=0 // pred_fallthru
    _
  %v33 = vld [vmem:[%s0] sm:$0xff]
  %v34 = vld [vmem:[%s0 + $0x8] sm:$0xff]
  %v35 = vld [vmem:[%s1] sm:$0xf]
  %v36 = vld [vmem:[%s1 + $0x4] sm:$0xf]
  %v37 = vld [vmem:[%s1 + $0x8] sm:$0xf]
  %v38 = vld [vmem:[%s1 + $0xc] sm:$0xf]
  %v39 = vld [vmem:[%s1 + $0x10] sm:$0xf]
  %v40 = vld [vmem:[%s1 + $0x14] sm:$0xf]
  %v41 = vld [vmem:[%s1 + $0x18] sm:$0xf]
  %v42 = vld [vmem:[%s1 + $0x1c] sm:$0xf]
  %v43 = vpack.c.bf16 %v34, %v33
  %v44 = vld [vmem:[%s2] sm:$0x1]
  %v46 = vperm.slane %v44, 0
  %v56 = vunpack.c.l.b16 %v35
  %v57 = vunpack.c.l.b16 %v36
  %v58 = vunpack.c.l.b16 %v37
  %v59 = vunpack.c.l.b16 %v38
  %v60 = vunpack.c.l.b16 %v39
  %v61 = vunpack.c.l.b16 %v40
  %v62 = vunpack.c.l.b16 %v41
  %v63 = vunpack.c.l.b16 %v42
  %v64 = vpack.c.b16 %v57, %v56
  %v65 = vpack.c.b16 %v59, %v58
  %v66 = vpack.c.b16 %v61, %v60
  %v67 = vpack.c.b16 %v63, %v62
  %vm72 = vcmask 523264
  %v74 = vsel %vm72, %v43, 0
  %76 = vmatpush.bf16.msra.mxu0 0
  %77 = vmatpush.bf16.msra.mxu0 0
  %78 = vmatpush.bf16.msra.mxu0 0
  %79 = vmatpush.bf16.msra.mxu0 0
  %80 = vmatpush.bf16.msra.mxu0 %v67
  %81 = vmatpush.bf16.msra.mxu0 %v66
  %82 = vmatpush.bf16.msra.mxu0 %v65
  %83 = vmatpush.bf16.msra.mxu0 %v64
  %84 = vmatmul.bf16.gmra.mxu0 %v74
  %v85 = vpop.f32.mrf.mxu0
  %v86 = vadd.f32 %v46, %v85
  %v87 = vpop.f32.mrf.mxu0
  %v88 = vadd.f32 %v46, %v87
  %89 = vdwg.mxu0
  %v90 = vmax.f32 %v86, 0.0
  %v91 = vmax.f32 %v88, 0.0
  %v92 = vld [vmem:[%s3] sm:$0xf]
  %v93 = vld [vmem:[%s3 + $0x4] sm:$0xf]
  %v94 = vld [vmem:[%s3 + $0x8] sm:$0xf]
  %v95 = vld [vmem:[%s3 + $0xc] sm:$0xf]
  %v96 = vld [vmem:[%s3 + $0x10] sm:$0xf]
  %v97 = vld [vmem:[%s3 + $0x14] sm:$0xf]
  %v98 = vld [vmem:[%s3 + $0x18] sm:$0xf]
  %v99 = vld [vmem:[%s3 + $0x1c] sm:$0xf]
  %v100 = vld [vmem:[%s3 + $0x20] sm:$0xf]
  %v101 = vld [vmem:[%s3 + $0x24] sm:$0xf]
  %v102 = vld [vmem:[%s3 + $0x28] sm:$0xf]
  %v103 = vld [vmem:[%s3 + $0x2c] sm:$0xf]
  %v104 = vld [vmem:[%s3 + $0x30] sm:$0xf]
  %v105 = vld [vmem:[%s3 + $0x34] sm:$0xf]
  %v106 = vld [vmem:[%s3 + $0x38] sm:$0xf]
  %v107 = vld [vmem:[%s3 + $0x3c] sm:$0xf]
  %v108 = vpack.c.bf16 %v91, %v90
  %v109 = vld [vmem:[%s4] sm:$0x1]
  %v111 = vperm.slane %v109, 0
  %v129 = vunpack.c.l.b16 %v92
  %v130 = vunpack.c.l.b16 %v93
  %v131 = vunpack.c.l.b16 %v94
  %v132 = vunpack.c.l.b16 %v95
  %v133 = vunpack.c.l.b16 %v96
  %v134 = vunpack.c.l.b16 %v97
  %v135 = vunpack.c.l.b16 %v98
  %v136 = vunpack.c.l.b16 %v99
  %v137 = vunpack.c.l.b16 %v100
  %v138 = vunpack.c.l.b16 %v101
  %v139 = vunpack.c.l.b16 %v102
  %v140 = vunpack.c.l.b16 %v103
  %v141 = vunpack.c.l.b16 %v104
  %v142 = vunpack.c.l.b16 %v105
  %v143 = vunpack.c.l.b16 %v106
  %v144 = vunpack.c.l.b16 %v107
  %v145 = vpack.c.b16 %v130, %v129
  %v146 = vpack.c.b16 %v132, %v131
  %v147 = vpack.c.b16 %v134, %v133
  %v148 = vpack.c.b16 %v136, %v135
  %v149 = vpack.c.b16 %v138, %v137
  %v150 = vpack.c.b16 %v140, %v139
  %v151 = vpack.c.b16 %v142, %v141
  %v152 = vpack.c.b16 %v144, %v143
  %161 = vmatpush.bf16.msra.mxu0 %v152
  %162 = vmatpush.bf16.msra.mxu0 %v151
  %163 = vmatpush.bf16.msra.mxu0 %v150
  %164 = vmatpush.bf16.msra.mxu0 %v149
  %165 = vmatpush.bf16.msra.mxu0 %v148
  %166 = vmatpush.bf16.msra.mxu0 %v147
  %167 = vmatpush.bf16.msra.mxu0 %v146
  %168 = vmatpush.bf16.msra.mxu0 %v145
  %169 = vmatmul.bf16.gmra.mxu0 %v108
  %v170 = vpop.f32.mrf.mxu0
  %v171 = vadd.f32 %v111, %v170
  %v172 = vpop.f32.mrf.mxu0
  %v173 = vadd.f32 %v111, %v172
  %174 = vdwg.mxu0
  %v175 = vadd.f32 %v33, %v171
  %v176 = vadd.f32 %v34, %v173
  %v177 = vld [vmem:[%s5] sm:$0x1]
  %v178 = vld [vmem:[%s6] sm:$0x1]
  %v179 = vsel %vm72, %v175, 0.0
  %180 = vadd.xlane.f32.xlu0 %v179
  %v181 = vpop.xlane.xlu0 %180
  %v182 = vsel %vm72, %v176, 0.0
  %183 = vadd.xlane.f32.xlu0 %v182
  %v184 = vpop.xlane.xlu0 %183
  %v185 = vrcp.pop 64.0
  %v186 = vmul.f32 64.0, %v185
  %v187 = vsub.f32 1.0, %v186
  %v188 = vmul.f32 %v185, %v187
  %v189 = vadd.f32 %v185, %v188
  %vm190 = vweird.f32 %v185
  %v191 = vsel %vm190, %v185, %v189
  %v192 = vmul.f32 %v181, %v191
  %v193 = vmul.f32 %v184, %v191
  %v194 = vsub.f32 %v175, %v192
  %v195 = vsub.f32 %v176, %v193
  %v196 = vmul.f32 %v194, %v194
  %v197 = vmul.f32 %v195, %v195
  %v198 = vsel %vm72, %v196, 0.0
  %199 = vadd.xlane.f32.xlu0 %v198
  %v200 = vpop.xlane.xlu0 %199
  %v201 = vsel %vm72, %v197, 0.0
  %202 = vadd.xlane.f32.xlu0 %v201
  %v203 = vpop.xlane.xlu0 %202
  %v204 = vmul.f32 %v200, %v191
  %v205 = vmul.f32 %v203, %v191
  %v206 = vadd.f32 %v204, 1e-05
  %v207 = vadd.f32 %v205, 1e-05
  %v208 = vrsqrt.pop %v206
  %v209 = vmul.f32 %v208, %v206
  %v210 = vmul.f32 %v209, %v208
  %v211 = vmul.f32 0.5, %v210
  %v212 = vsub.f32 1.5, %v211
  %v213 = vmul.f32 %v208, %v212
  %vm214 = vweird.f32 %v206
  %vm215 = vweird.f32 %v208
  %vm216 = vmor %vm214, %vm215
  %v217 = vsel %vm216, %v208, %v213
  %v218 = vrsqrt.pop %v207
  %v219 = vmul.f32 %v218, %v207
  %v220 = vmul.f32 %v219, %v218
  %v221 = vmul.f32 0.5, %v220
  %v222 = vsub.f32 1.5, %v221
  %v223 = vmul.f32 %v218, %v222
  %vm224 = vweird.f32 %v207
  %vm225 = vweird.f32 %v218
  %vm226 = vmor %vm224, %vm225
  %v227 = vsel %vm226, %v218, %v223
  %v228 = vmul.f32 %v194, %v217
  %v229 = vmul.f32 %v195, %v227
  %v231 = vperm.slane %v177, 0
  %v233 = vmul.f32 %v228, %v231
  %v234 = vmul.f32 %v229, %v231
  %v236 = vperm.slane %v178, 0
  %v238 = vadd.f32 %v233, %v236
  %v239 = vadd.f32 %v234, %v236
  %v240 = vld [vmem:[%s7] sm:$0x1]
  %v241 = vld [vmem:[%s8] sm:$0x1]
  %v242 = vsel %vm72, %v238, 0.0
  %243 = vadd.xlane.f32.xlu0 %v242
  %v244 = vpop.xlane.xlu0 %243
  %v245 = vsel %vm72, %v239, 0.0
  %246 = vadd.xlane.f32.xlu0 %v245
  %v247 = vpop.xlane.xlu0 %246
  %v248 = vmul.f32 %v244, %v191
  %v249 = vmul.f32 %v247, %v191
  %v250 = vsub.f32 %v238, %v248
  %v251 = vsub.f32 %v239, %v249
  %v252 = vmul.f32 %v250, %v250
  %v253 = vmul.f32 %v251, %v251
  %v254 = vsel %vm72, %v252, 0.0
  %255 = vadd.xlane.f32.xlu0 %v254
  %v256 = vpop.xlane.xlu0 %255
  %v257 = vsel %vm72, %v253, 0.0
  %258 = vadd.xlane.f32.xlu0 %v257
  %v259 = vpop.xlane.xlu0 %258
  %v260 = vmul.f32 %v256, %v191
  %v261 = vmul.f32 %v259, %v191
  %v262 = vadd.f32 %v260, 1e-05
  %v263 = vadd.f32 %v261, 1e-05
  %v264 = vrsqrt.pop %v262
  %v265 = vmul.f32 %v264, %v262
  %v266 = vmul.f32 %v265, %v264
  %v267 = vmul.f32 0.5, %v266
  %v268 = vsub.f32 1.5, %v267
  %v269 = vmul.f32 %v264, %v268
  %vm270 = vweird.f32 %v262
  %vm271 = vweird.f32 %v264
  %vm272 = vmor %vm270, %vm271
  %v273 = vsel %vm272, %v264, %v269
  %v274 = vrsqrt.pop %v263
  %v275 = vmul.f32 %v274, %v263
  %v276 = vmul.f32 %v275, %v274
  %v277 = vmul.f32 0.5, %v276
  %v278 = vsub.f32 1.5, %v277
  %v279 = vmul.f32 %v274, %v278
  %vm280 = vweird.f32 %v263
  %vm281 = vweird.f32 %v274
  %vm282 = vmor %vm280, %vm281
  %v283 = vsel %vm282, %v274, %v279
  %v284 = vmul.f32 %v250, %v273
  %v285 = vmul.f32 %v251, %v283
  %v287 = vperm.slane %v240, 0
  %v289 = vmul.f32 %v284, %v287
  %v290 = vmul.f32 %v285, %v287
  %v292 = vperm.slane %v241, 0
  %v294 = vadd.f32 %v289, %v292
  %v295 = vadd.f32 %v290, %v292
  %296 = vst.msk [vmem:[%s9] sm:$0xff] %vm72, %v294
  %297 = vst.msk [vmem:[%s9 + $0x8] sm:$0xff] %vm72, %v295
  // Predicated region
  $region38: #{transformer_decoder_forward.11} parent=0 // pred_check
    _
  $region39: #{transformer_decoder_forward.11} parent=0 // pred_check_branch
    %299 = sbr.rel (0) target = $region41
  $region40: #{transformer_decoder_forward.11} parent=0 // pred_region
    _
  $region41: #{transformer_decoder_forward.11} parent=0 // pred_fallthru
    _
  // Predicated region
  $region42: #{transformer_decoder_forward.11} parent=0 // pred_check
    _
  $region43: #{transformer_decoder_forward.11} parent=0 // pred_check_branch
    %301 = sbr.rel (0) target = $region45
  $region44: #{transformer_decoder_forward.11} parent=0 // pred_region
    _
  $region45: #{transformer_decoder_forward.11} parent=0 // pred_fallthru
    _

</llo_original>
